<compile_context>
chip_gen: v7x
topology: tpu7x:2x2x1
jax: 0.10.0
libtpu: 0.0.40
codegen_flags: <defaults>
</compile_context>

<pallas_src>
import functools

import jax
import jax.numpy as jnp
from jax.experimental import pallas as pl
from jax.experimental.pallas import tpu as pltpu


_TAPS = tuple((ky, kx) for ky in range(3) for kx in range(3))


def _vmem_limit_bytes(est_bytes):
    """Explicit scoped-VMEM budget: 2x working-set estimate + margin, in [32, 100] MiB."""
    return int(min(100 << 20, max(32 << 20, 2 * int(est_bytes) + (8 << 20))))


# ----------------------------------------------------------------------------
# In-kernel helpers
# ----------------------------------------------------------------------------
def _zero_border(pad_ref):
    """Zero only the 1-pixel halo of a (B, H+2, W+2, C) VMEM ref (interior untouched)."""
    B, Hp, Wp, C = pad_ref.shape
    zrow = jnp.zeros((B, 1, Wp, C), pad_ref.dtype)
    pad_ref[:, 0:1, :, :] = zrow
    pad_ref[:, Hp - 1:Hp, :, :] = zrow
    zcol = jnp.zeros((B, Hp, 1, C), pad_ref.dtype)
    pad_ref[:, :, 0:1, :] = zcol
    pad_ref[:, :, Wp - 1:Wp, :] = zcol


def _conv_from_pad(pad_ref, patch_ref, w2d, b_row):
    """3x3 'same' conv reading taps straight from a padded VMEM ref.

    pad_ref  : (B, H+2, W+2, C) VMEM ref, zero halo already in place.
    patch_ref: (B, H, W, 9*C) bf16 VMEM scratch (im2col buffer).
    w2d      : (9*C, Cout) bf16 value.   b_row: (1, Cout) f32 value.
    Returns (B*H*W, Cout) f32.
    """
    B, Hp, Wp, C = pad_ref.shape
    H, W = Hp - 2, Wp - 2
    # Row-aligned tap copies: static Ref-view slices (streaming loads, no
    # whole-padded-image value), destination keeps (B, H, W, .) structure so
    # there is no per-tap row-collapsing relayout.
    for t, (ky, kx) in enumerate(_TAPS):
        patch_ref[:, :, :, t * C:(t + 1) * C] = (
            pad_ref[:, ky:ky + H, kx:kx + W, :].astype(patch_ref.dtype))
    patch = patch_ref[...].reshape(B * H * W, 9 * C)     # lane dim unchanged: free
    return jnp.dot(patch, w2d, preferred_element_type=jnp.float32) + b_row


# ----------------------------------------------------------------------------
# Stand-alone conv kernel (head / upsampler / tail).
# ----------------------------------------------------------------------------
def _conv3x3_kernel(x_ref, w_ref, b_ref, o_ref, pad_ref, patch_ref, *, relu):
    B, H, W, Cin = x_ref.shape            # B == 1
    Cout = o_ref.shape[-1]
    _zero_border(pad_ref)                 # only the halo; interior rewritten below
    pad_ref[:, 1:H + 1, 1:W + 1, :] = x_ref[...].astype(pad_ref.dtype)
    acc = _conv_from_pad(pad_ref, patch_ref, w_ref[...], b_ref[...])
    if relu:
        acc = jnp.maximum(acc, 0.0)
    o_ref[...] = acc.reshape(B, H, W, Cout).astype(o_ref.dtype)


def conv3x3(x, w, b, *, relu=False, out_dtype=jnp.bfloat16):
    """x: (N,H,W,Cin); w: (3,3,Cin,Cout); b: (Cout,).  Returns (N,H,W,Cout)."""
    N, H, W, Cin = x.shape
    Cout = w.shape[-1]
    x = x.astype(jnp.bfloat16)
    w2d = w.reshape(9 * Cin, Cout).astype(jnp.bfloat16)
    b2 = b.reshape(1, Cout).astype(jnp.float32)

    out_isz = jnp.dtype(out_dtype).itemsize
    est = ((H + 2) * (W + 2) * Cin * 2            # bf16 halo scratch
           + H * W * 9 * Cin * 2                  # im2col scratch
           + 2 * (H * W * Cin * 2 + H * W * Cout * out_isz)   # act blocks (x2 buf)
           + 2 * (9 * Cin * Cout * 2 + Cout * 4))             # weights/bias

    kern = functools.partial(_conv3x3_kernel, relu=relu)
    return pl.pallas_call(
        kern,
        out_shape=jax.ShapeDtypeStruct((N, H, W, Cout), out_dtype),
        grid=(N,),
        in_specs=[pl.BlockSpec((1, H, W, Cin), lambda n: (n, 0, 0, 0)),
                  pl.BlockSpec((9 * Cin, Cout), lambda n: (0, 0)),
                  pl.BlockSpec((1, Cout), lambda n: (0, 0))],
        out_specs=pl.BlockSpec((1, H, W, Cout), lambda n: (n, 0, 0, 0)),
        scratch_shapes=[pltpu.VMEM((1, H + 2, W + 2, Cin), jnp.bfloat16),
                        pltpu.VMEM((1, H, W, 9 * Cin), jnp.bfloat16)],
        compiler_params=pltpu.CompilerParams(
            dimension_semantics=("parallel",),
            vmem_limit_bytes=_vmem_limit_bytes(est)),
    )(x, w2d, b2)


# ----------------------------------------------------------------------------
# Fused body: all ResBlocks + body[-1] conv + skip add + regressor per exit.
# grid = (n_resblocks,); the whole batch rides in the matmul M dim so each
# block's weights are streamed from HBM exactly once.  The residual is
# carried across grid steps in a padded f32 VMEM scratch.
# ----------------------------------------------------------------------------
def _body_exits_kernel(x_ref, w1_ref, b1_ref, w2_ref, b2_ref,
                       wl_ref, bl_ref, wr_ref, br_ref,
                       t_ref, ic_ref,
                       res_pad, h_pad, patch, ic_acc,
                       *, E, res_scale, flat_out):
    N, H, W, C = x_ref.shape
    i = pl.program_id(0)

    @pl.when(i == 0)
    def _init():
        _zero_border(res_pad)             # halos persist; interiors rewritten below
        _zero_border(h_pad)
        res_pad[:, 1:H + 1, 1:W + 1, :] = x_ref[...].astype(res_pad.dtype)

    # ResBlock i: res <- res + res_scale * conv2(relu(conv1(res))), all in VMEM.
    # conv1 reads its taps directly from the padded residual carry.
    h = _conv_from_pad(res_pad, patch, w1_ref[0], b1_ref[0])
    h = jnp.maximum(h, 0.0)
    h_pad[:, 1:H + 1, 1:W + 1, :] = h.reshape(N, H, W, C).astype(h_pad.dtype)
    c2 = _conv_from_pad(h_pad, patch, w2_ref[0], b2_ref[0])
    res_new = (res_pad[:, 1:H + 1, 1:W + 1, :]
               + res_scale * c2.reshape(N, H, W, C))
    res_pad[:, 1:H + 1, 1:W + 1, :] = res_new

    @pl.when(i % E == E - 1)
    def _exit():
        g = i // E
        # t = head_out + body[-1](res)   (exit conv taps straight from res_pad)
        t = _conv_from_pad(res_pad, patch, wl_ref[...], bl_ref[...])
        t = t + x_ref[...].reshape(N * H * W, C).astype(jnp.float32)
        if flat_out:
            # Lane-dense store for C < 128: one in-value relayout, unmasked vst.
            t_ref[...] = t.reshape(1, N, H, W * C).astype(t_ref.dtype)
        else:
            # C is a multiple of 128: NHWC store is already lane-dense (free reshape).
            t_ref[...] = t.reshape(1, N, H, W, C).astype(t_ref.dtype)
        # Regressor: tanh(Linear(GlobalAvgPool(res))) as a pure VPU reduction
        # (no MXU push/drain for a 1x1 result); result parked in ic_acc.
        feat = jnp.mean(res_new.reshape(N, H * W, C), axis=1)          # (N, C)
        ic = jnp.tanh(jnp.sum(feat * wr_ref[...], axis=-1, keepdims=True)
                      + br_ref[...])                                   # (N, 1)
        ic_acc[pl.ds(g, 1), :, :] = ic.reshape(1, N, 1)

    @pl.when(i == pl.num_programs(0) - 1)
    def _flush_ics():
        ic_ref[...] = ic_acc[...]         # single writeback of all exits' ICs


def body_with_exits(x_head, body_blocks, last_w, last_b, reg_w, reg_b,
                    *, exit_interval, res_scale):
    """Runs every ResBlock and produces, for each exit g:
         t_exits[g] = head_out + body[-1](res after block g*E + E - 1)
         ics[g]     = tanh(Linear(avgpool(res after block g*E + E - 1)))
    Returns (t_exits: (n_exits, N, H, W, C) bf16, ics: (n_exits, N, 1) f32).
    """
    N, H, W, C = x_head.shape
    R = len(body_blocks)
    E = int(exit_interval)
    n_exits = R // E
    assert n_exits >= 1, "need at least one exit"
    K9 = 9 * C
    flat_out = (C % 128) != 0         # lane-dense exit store for small n_feats

    w1 = jnp.stack([blk["w1"].reshape(K9, C) for blk in body_blocks]).astype(jnp.bfloat16)
    b1 = jnp.stack([blk["b1"].reshape(1, C) for blk in body_blocks]).astype(jnp.float32)
    w2 = jnp.stack([blk["w2"].reshape(K9, C) for blk in body_blocks]).astype(jnp.bfloat16)
    b2 = jnp.stack([blk["b2"].reshape(1, C) for blk in body_blocks]).astype(jnp.float32)
    wl = last_w.reshape(K9, C).astype(jnp.bfloat16)
    bl = last_b.reshape(1, C).astype(jnp.float32)
    wr = reg_w.reshape(1, C).astype(jnp.float32)      # regressor weight as a row
    br = reg_b.reshape(1, 1).astype(jnp.float32)

    def slot(i):
        # Trailing blocks past the last exit (R % E != 0) alias the last slot
        # but never write it (pl.when guards the write).
        return jnp.minimum(i // E, n_exits - 1)

    if flat_out:
        t_shape = (n_exits, N, H, W * C)
        t_spec = pl.BlockSpec((1, N, H, W * C), lambda i: (slot(i), 0, 0, 0))
    else:
        t_shape = (n_exits, N, H, W, C)
        t_spec = pl.BlockSpec((1, N, H, W, C), lambda i: (slot(i), 0, 0, 0, 0))

    est = (2 * N * H * W * C * 2                       # head activation block
           + 2 * 2 * (K9 * C * 2 + C * 4)              # w1/b1, w2/b2 (double-buffered)
           + K9 * C * 2 + 3 * C * 4 + 4                # wl, bl, wr, br
           + 2 * N * H * W * C * 2                     # t output block
           + N * (H + 2) * (W + 2) * C * (4 + 2)       # res_pad (f32) + h_pad (bf16)
           + N * H * W * K9 * 2                        # im2col patch
           + 2 * n_exits * N * 4)                      # ic output + accumulator

    kern = functools.partial(_body_exits_kernel, E=E,
                             res_scale=float(res_scale), flat_out=flat_out)
    t_out, ics = pl.pallas_call(
        kern,
        out_shape=(jax.ShapeDtypeStruct(t_shape, jnp.bfloat16),
                   jax.ShapeDtypeStruct((n_exits, N, 1), jnp.float32)),
        grid=(R,),
        in_specs=[
            pl.BlockSpec((N, H, W, C), lambda i: (0, 0, 0, 0)),   # head out (resident)
            pl.BlockSpec((1, K9, C), lambda i: (i, 0, 0)),        # w1[i]
            pl.BlockSpec((1, 1, C), lambda i: (i, 0, 0)),         # b1[i]
            pl.BlockSpec((1, K9, C), lambda i: (i, 0, 0)),        # w2[i]
            pl.BlockSpec((1, 1, C), lambda i: (i, 0, 0)),         # b2[i]
            pl.BlockSpec((K9, C), lambda i: (0, 0)),              # body[-1] w
            pl.BlockSpec((1, C), lambda i: (0, 0)),               # body[-1] b
            pl.BlockSpec((1, C), lambda i: (0, 0)),               # regressor w (row)
            pl.BlockSpec((1, 1), lambda i: (0, 0)),               # regressor b
        ],
        out_specs=(t_spec,
                   pl.BlockSpec((n_exits, N, 1), lambda i: (0, 0, 0))),
        scratch_shapes=[
            pltpu.VMEM((N, H + 2, W + 2, C), jnp.float32),        # padded res carry (f32)
            pltpu.VMEM((N, H + 2, W + 2, C), jnp.bfloat16),       # padded conv2 input (bf16)
            pltpu.VMEM((N, H, W, K9), jnp.bfloat16),              # im2col patch
            pltpu.VMEM((n_exits, N, 1), jnp.float32),             # ic accumulator
        ],
        compiler_params=pltpu.CompilerParams(
            dimension_semantics=("arbitrary",),                   # res carried across blocks
            vmem_limit_bytes=_vmem_limit_bytes(est)),
    )(x_head, w1, b1, w2, b2, wl, bl, wr, br)

    t_out = t_out.reshape(n_exits, N, H, W, C)   # contiguous host-side view (free)
    return t_out, ics


# ----------------------------------------------------------------------------
# Glue (pure data movement, XLA)
# ----------------------------------------------------------------------------
def pixel_shuffle_nhwc(x, r):
    """nn.PixelShuffle semantics in NHWC (channel ordering c*r*r + i*r + j)."""
    N, H, W, C = x.shape
    Co = C // (r * r)
    x = x.reshape(N, H, W, Co, r, r)
    x = jnp.transpose(x, (0, 1, 4, 2, 5, 3))   # (N, H, r, W, r, Co)
    return x.reshape(N, H * r, W * r, Co)


# ----------------------------------------------------------------------------
# Model
# ----------------------------------------------------------------------------
_RGB_MEAN = jnp.array([0.4488, 0.4371, 0.4040], jnp.float32)


def edsr_ape_forward(params, x_nchw, cfg):
    """EDSR (APE) training-mode forward: returns (outputs, ics)."""
    rgb_shift = _RGB_MEAN * cfg["rgb_range"]
    r = cfg["scale"]
    x = jnp.transpose(x_nchw, (0, 2, 3, 1)).astype(jnp.float32)   # NCHW -> NHWC
    x = x - rgb_shift                                             # sub_mean
    xh = conv3x3(x, params["head"]["w"], params["head"]["b"])     # head (bf16)

    t_exits, ics_all = body_with_exits(
        xh, params["body"],
        params["body_last"]["w"], params["body_last"]["b"],
        params["reg"]["w"], params["reg"]["b"],
        exit_interval=cfg["exit_interval"], res_scale=cfg["res_scale"])

    G, N, H, W, C = t_exits.shape
    # Run every exit's tail in one batched pass (exits*N images in the grid).
    t_flat = t_exits.reshape(G * N, H, W, C)
    u = conv3x3(t_flat, params["up"]["w"], params["up"]["b"])
    u = pixel_shuffle_nhwc(u, r)
    # add_mean fused into the last conv's bias (exact equivalence)
    out = conv3x3(u, params["tail"]["w"], params["tail"]["b"] + rgb_shift,
                  out_dtype=jnp.float32)
    out = out.reshape(G, N, H * r, W * r, cfg["n_colors"])

    outputs = [jnp.transpose(out[g], (0, 3, 1, 2)) for g in range(G)]  # NCHW
    ics = [ics_all[g] for g in range(G)]                               # (N, 1) each
    return outputs, ics


def init_params(key, *, n_colors, n_feats, n_resblocks, scale):
    def conv_init(k, cin, cout):
        kw, kb = jax.random.split(k)
        return {"w": 0.1 * jax.random.normal(kw, (3, 3, cin, cout), jnp.float32),
                "b": 0.01 * jax.random.normal(kb, (cout,), jnp.float32)}

    keys = jax.random.split(key, n_resblocks + 6)
    params = {
        "head": conv_init(keys[0], n_colors, n_feats),
        "body": [],
        "body_last": conv_init(keys[1], n_feats, n_feats),
        "up": conv_init(keys[2], n_feats, n_feats * scale * scale),
        "tail": conv_init(keys[3], n_feats, n_colors),
    }
    for i in range(n_resblocks):
        k1, k2 = jax.random.split(keys[4 + i])
        params["body"].append({
            "w1": 0.1 * jax.random.normal(k1, (3, 3, n_feats, n_feats), jnp.float32),
            "b1": jnp.zeros((n_feats,), jnp.float32),
            "w2": 0.1 * jax.random.normal(k2, (3, 3, n_feats, n_feats), jnp.float32),
            "b2": jnp.zeros((n_feats,), jnp.float32),
        })
    kr1, kr2 = jax.random.split(keys[-1])
    params["reg"] = {"w": 0.1 * jax.random.normal(kr1, (n_feats, 1), jnp.float32),
                     "b": 0.01 * jax.random.normal(kr2, (1,), jnp.float32)}
    return params


if __name__ == "__main__":
    # n_feats=128 keeps every activation store lane-dense (C % 128 == 0) while
    # staying a small, fast demo; the flattened (H, W*C) store path covers
    # smaller feature widths.
    cfg = dict(n_colors=3, n_feats=128, n_resblocks=4, scale=2,
               exit_interval=2, res_scale=0.1, rgb_range=1.0)

    key = jax.random.PRNGKey(0)
    kp, kx = jax.random.split(key)
    params = init_params(kp, n_colors=cfg["n_colors"], n_feats=cfg["n_feats"],
                         n_resblocks=cfg["n_resblocks"], scale=cfg["scale"])

    # x in NCHW, like the PyTorch module.
    x = jax.random.uniform(kx, (2, cfg["n_colors"], 16, 16), dtype=jnp.float32)

    outputs, ics = edsr_ape_forward(params, x, cfg)
    jax.block_until_ready((outputs, ics))

    n_exits = cfg["n_resblocks"] // cfg["exit_interval"]
    assert len(outputs) == n_exits and len(ics) == n_exits
    assert outputs[0].shape == (2, 3, 32, 32)
    assert ics[0].shape == (2, 1)
    print("KERNEL_OK")
</pallas_src>

<mosaic_0001>
module attributes {stable_mosaic.version = 11 : i64} {
  func.func @_conv3x3_kernel(%arg0: i32, %arg1: memref<1x16x16x3xbf16, #tpu.memory_space<vmem>>, %arg2: memref<27x128xbf16, #tpu.memory_space<vmem>>, %arg3: memref<1x128xf32, #tpu.memory_space<vmem>>, %arg4: memref<1x16x16x128xbf16, #tpu.memory_space<vmem>>, %arg5: memref<1x18x18x3xbf16, #tpu.memory_space<vmem>>, %arg6: memref<1x16x16x27xbf16, #tpu.memory_space<vmem>>) attributes {dimension_semantics = [#tpu.dimension_semantics<parallel>], iteration_bounds = array<i64: 2>, scalar_prefetch = 0 : i64, scratch_operands = 2 : i64, tpu.core_type = #tpu.core_type<tc>, window_params = [{transform_indices = @transform_0, window_bounds = array<i64: 1, 16, 16, 3>}, {pipeline_mode = #tpu.pipeline_mode<synchronous>, transform_indices = @transform_1, window_bounds = array<i64: 27, 128>}, {pipeline_mode = #tpu.pipeline_mode<synchronous>, transform_indices = @transform_2, window_bounds = array<i64: 1, 128>}, {transform_indices = @transform_3, window_bounds = array<i64: 1, 16, 16, 128>}]} {
    %cst = arith.constant 0.000000e+00 : bf16
    %0 = vector.broadcast %cst : bf16 to vector<1x1x18x3xbf16>
    %c0 = arith.constant 0 : index
    %c0_0 = arith.constant 0 : index
    %c0_1 = arith.constant 0 : index
    %c0_2 = arith.constant 0 : index
    %1 = vector.load %arg5[%c0, %c0_0, %c0_1, %c0_2] : memref<1x18x18x3xbf16, #tpu.memory_space<vmem>>, vector<1x1x18x3xbf16>
    tpu.vector_store %arg5[%c0, %c0_0, %c0_1, %c0_2], %0 {strides = array<i32>} : memref<1x18x18x3xbf16, #tpu.memory_space<vmem>>, vector<1x1x18x3xbf16>,
    %c0_3 = arith.constant 0 : index
    %c17 = arith.constant 17 : index
    %c0_4 = arith.constant 0 : index
    %c0_5 = arith.constant 0 : index
    %2 = vector.load %arg5[%c0_3, %c17, %c0_4, %c0_5] : memref<1x18x18x3xbf16, #tpu.memory_space<vmem>>, vector<1x1x18x3xbf16>
    tpu.vector_store %arg5[%c0_3, %c17, %c0_4, %c0_5], %0 {strides = array<i32>} : memref<1x18x18x3xbf16, #tpu.memory_space<vmem>>, vector<1x1x18x3xbf16>,
    %cst_6 = arith.constant 0.000000e+00 : bf16
    %3 = vector.broadcast %cst_6 : bf16 to vector<1x18x1x3xbf16>
    %c0_7 = arith.constant 0 : index
    %c0_8 = arith.constant 0 : index
    %c0_9 = arith.constant 0 : index
    %c0_10 = arith.constant 0 : index
    %4 = vector.load %arg5[%c0_7, %c0_8, %c0_9, %c0_10] : memref<1x18x18x3xbf16, #tpu.memory_space<vmem>>, vector<1x18x1x3xbf16>
    tpu.vector_store %arg5[%c0_7, %c0_8, %c0_9, %c0_10], %3 {strides = array<i32>} : memref<1x18x18x3xbf16, #tpu.memory_space<vmem>>, vector<1x18x1x3xbf16>,
    %c0_11 = arith.constant 0 : index
    %c0_12 = arith.constant 0 : index
    %c17_13 = arith.constant 17 : index
    %c0_14 = arith.constant 0 : index
    %5 = vector.load %arg5[%c0_11, %c0_12, %c17_13, %c0_14] : memref<1x18x18x3xbf16, #tpu.memory_space<vmem>>, vector<1x18x1x3xbf16>
    tpu.vector_store %arg5[%c0_11, %c0_12, %c17_13, %c0_14], %3 {strides = array<i32>} : memref<1x18x18x3xbf16, #tpu.memory_space<vmem>>, vector<1x18x1x3xbf16>,
    %c0_15 = arith.constant 0 : index
    %c0_16 = arith.constant 0 : index
    %c0_17 = arith.constant 0 : index
    %c0_18 = arith.constant 0 : index
    %6 = vector.load %arg1[%c0_15, %c0_16, %c0_17, %c0_18] : memref<1x16x16x3xbf16, #tpu.memory_space<vmem>>, vector<1x16x16x3xbf16>
    %c0_19 = arith.constant 0 : index
    %c1 = arith.constant 1 : index
    %c1_20 = arith.constant 1 : index
    %c0_21 = arith.constant 0 : index
    %7 = vector.load %arg5[%c0_19, %c1, %c1_20, %c0_21] : memref<1x18x18x3xbf16, #tpu.memory_space<vmem>>, vector<1x16x16x3xbf16>
    tpu.vector_store %arg5[%c0_19, %c1, %c1_20, %c0_21], %6 {strides = array<i32>} : memref<1x18x18x3xbf16, #tpu.memory_space<vmem>>, vector<1x16x16x3xbf16>,
    %c0_22 = arith.constant 0 : index
    %c0_23 = arith.constant 0 : index
    %8 = vector.load %arg2[%c0_22, %c0_23] : memref<27x128xbf16, #tpu.memory_space<vmem>>, vector<27x128xbf16>
    %c0_24 = arith.constant 0 : index
    %c0_25 = arith.constant 0 : index
    %9 = vector.load %arg3[%c0_24, %c0_25] : memref<1x128xf32, #tpu.memory_space<vmem>>, vector<1x128xf32>
    %c0_26 = arith.constant 0 : index
    %c0_27 = arith.constant 0 : index
    %c0_28 = arith.constant 0 : index
    %c0_29 = arith.constant 0 : index
    %10 = vector.load %arg5[%c0_26, %c0_27, %c0_28, %c0_29] : memref<1x18x18x3xbf16, #tpu.memory_space<vmem>>, vector<1x16x16x3xbf16>
    %c0_30 = arith.constant 0 : index
    %c0_31 = arith.constant 0 : index
    %c0_32 = arith.constant 0 : index
    %c0_33 = arith.constant 0 : index
    %11 = vector.load %arg6[%c0_30, %c0_31, %c0_32, %c0_33] : memref<1x16x16x27xbf16, #tpu.memory_space<vmem>>, vector<1x16x16x3xbf16>
    tpu.vector_store %arg6[%c0_30, %c0_31, %c0_32, %c0_33], %10 {strides = array<i32>} : memref<1x16x16x27xbf16, #tpu.memory_space<vmem>>, vector<1x16x16x3xbf16>,
    %c0_34 = arith.constant 0 : index
    %c0_35 = arith.constant 0 : index
    %c1_36 = arith.constant 1 : index
    %c0_37 = arith.constant 0 : index
    %12 = vector.load %arg5[%c0_34, %c0_35, %c1_36, %c0_37] : memref<1x18x18x3xbf16, #tpu.memory_space<vmem>>, vector<1x16x16x3xbf16>
    %c0_38 = arith.constant 0 : index
    %c0_39 = arith.constant 0 : index
    %c0_40 = arith.constant 0 : index
    %c3 = arith.constant 3 : index
    %13 = vector.load %arg6[%c0_38, %c0_39, %c0_40, %c3] : memref<1x16x16x27xbf16, #tpu.memory_space<vmem>>, vector<1x16x16x3xbf16>
    tpu.vector_store %arg6[%c0_38, %c0_39, %c0_40, %c3], %12 {strides = array<i32>} : memref<1x16x16x27xbf16, #tpu.memory_space<vmem>>, vector<1x16x16x3xbf16>,
    %c0_41 = arith.constant 0 : index
    %c0_42 = arith.constant 0 : index
    %c2 = arith.constant 2 : index
    %c0_43 = arith.constant 0 : index
    %14 = vector.load %arg5[%c0_41, %c0_42, %c2, %c0_43] : memref<1x18x18x3xbf16, #tpu.memory_space<vmem>>, vector<1x16x16x3xbf16>
    %c0_44 = arith.constant 0 : index
    %c0_45 = arith.constant 0 : index
    %c0_46 = arith.constant 0 : index
    %c6 = arith.constant 6 : index
    %15 = vector.load %arg6[%c0_44, %c0_45, %c0_46, %c6] : memref<1x16x16x27xbf16, #tpu.memory_space<vmem>>, vector<1x16x16x3xbf16>
    tpu.vector_store %arg6[%c0_44, %c0_45, %c0_46, %c6], %14 {strides = array<i32>} : memref<1x16x16x27xbf16, #tpu.memory_space<vmem>>, vector<1x16x16x3xbf16>,
    %c0_47 = arith.constant 0 : index
    %c1_48 = arith.constant 1 : index
    %c0_49 = arith.constant 0 : index
    %c0_50 = arith.constant 0 : index
    %16 = vector.load %arg5[%c0_47, %c1_48, %c0_49, %c0_50] : memref<1x18x18x3xbf16, #tpu.memory_space<vmem>>, vector<1x16x16x3xbf16>
    %c0_51 = arith.constant 0 : index
    %c0_52 = arith.constant 0 : index
    %c0_53 = arith.constant 0 : index
    %c9 = arith.constant 9 : index
    %17 = vector.load %arg6[%c0_51, %c0_52, %c0_53, %c9] : memref<1x16x16x27xbf16, #tpu.memory_space<vmem>>, vector<1x16x16x3xbf16>
    tpu.vector_store %arg6[%c0_51, %c0_52, %c0_53, %c9], %16 {strides = array<i32>} : memref<1x16x16x27xbf16, #tpu.memory_space<vmem>>, vector<1x16x16x3xbf16>,
    %c0_54 = arith.constant 0 : index
    %c1_55 = arith.constant 1 : index
    %c1_56 = arith.constant 1 : index
    %c0_57 = arith.constant 0 : index
    %18 = vector.load %arg5[%c0_54, %c1_55, %c1_56, %c0_57] : memref<1x18x18x3xbf16, #tpu.memory_space<vmem>>, vector<1x16x16x3xbf16>
    %c0_58 = arith.constant 0 : index
    %c0_59 = arith.constant 0 : index
    %c0_60 = arith.constant 0 : index
    %c12 = arith.constant 12 : index
    %19 = vector.load %arg6[%c0_58, %c0_59, %c0_60, %c12] : memref<1x16x16x27xbf16, #tpu.memory_space<vmem>>, vector<1x16x16x3xbf16>
    tpu.vector_store %arg6[%c0_58, %c0_59, %c0_60, %c12], %18 {strides = array<i32>} : memref<1x16x16x27xbf16, #tpu.memory_space<vmem>>, vector<1x16x16x3xbf16>,
    %c0_61 = arith.constant 0 : index
    %c1_62 = arith.constant 1 : index
    %c2_63 = arith.constant 2 : index
    %c0_64 = arith.constant 0 : index
    %20 = vector.load %arg5[%c0_61, %c1_62, %c2_63, %c0_64] : memref<1x18x18x3xbf16, #tpu.memory_space<vmem>>, vector<1x16x16x3xbf16>
    %c0_65 = arith.constant 0 : index
    %c0_66 = arith.constant 0 : index
    %c0_67 = arith.constant 0 : index
    %c15 = arith.constant 15 : index
    %21 = vector.load %arg6[%c0_65, %c0_66, %c0_67, %c15] : memref<1x16x16x27xbf16, #tpu.memory_space<vmem>>, vector<1x16x16x3xbf16>
    tpu.vector_store %arg6[%c0_65, %c0_66, %c0_67, %c15], %20 {strides = array<i32>} : memref<1x16x16x27xbf16, #tpu.memory_space<vmem>>, vector<1x16x16x3xbf16>,
    %c0_68 = arith.constant 0 : index
    %c2_69 = arith.constant 2 : index
    %c0_70 = arith.constant 0 : index
    %c0_71 = arith.constant 0 : index
    %22 = vector.load %arg5[%c0_68, %c2_69, %c0_70, %c0_71] : memref<1x18x18x3xbf16, #tpu.memory_space<vmem>>, vector<1x16x16x3xbf16>
    %c0_72 = arith.constant 0 : index
    %c0_73 = arith.constant 0 : index
    %c0_74 = arith.constant 0 : index
    %c18 = arith.constant 18 : index
    %23 = vector.load %arg6[%c0_72, %c0_73, %c0_74, %c18] : memref<1x16x16x27xbf16, #tpu.memory_space<vmem>>, vector<1x16x16x3xbf16>
    tpu.vector_store %arg6[%c0_72, %c0_73, %c0_74, %c18], %22 {strides = array<i32>} : memref<1x16x16x27xbf16, #tpu.memory_space<vmem>>, vector<1x16x16x3xbf16>,
    %c0_75 = arith.constant 0 : index
    %c2_76 = arith.constant 2 : index
    %c1_77 = arith.constant 1 : index
    %c0_78 = arith.constant 0 : index
    %24 = vector.load %arg5[%c0_75, %c2_76, %c1_77, %c0_78] : memref<1x18x18x3xbf16, #tpu.memory_space<vmem>>, vector<1x16x16x3xbf16>
    %c0_79 = arith.constant 0 : index
    %c0_80 = arith.constant 0 : index
    %c0_81 = arith.constant 0 : index
    %c21 = arith.constant 21 : index
    %25 = vector.load %arg6[%c0_79, %c0_80, %c0_81, %c21] : memref<1x16x16x27xbf16, #tpu.memory_space<vmem>>, vector<1x16x16x3xbf16>
    tpu.vector_store %arg6[%c0_79, %c0_80, %c0_81, %c21], %24 {strides = array<i32>} : memref<1x16x16x27xbf16, #tpu.memory_space<vmem>>, vector<1x16x16x3xbf16>,
    %c0_82 = arith.constant 0 : index
    %c2_83 = arith.constant 2 : index
    %c2_84 = arith.constant 2 : index
    %c0_85 = arith.constant 0 : index
    %26 = vector.load %arg5[%c0_82, %c2_83, %c2_84, %c0_85] : memref<1x18x18x3xbf16, #tpu.memory_space<vmem>>, vector<1x16x16x3xbf16>
    %c0_86 = arith.constant 0 : index
    %c0_87 = arith.constant 0 : index
    %c0_88 = arith.constant 0 : index
    %c24 = arith.constant 24 : index
    %27 = vector.load %arg6[%c0_86, %c0_87, %c0_88, %c24] : memref<1x16x16x27xbf16, #tpu.memory_space<vmem>>, vector<1x16x16x3xbf16>
    tpu.vector_store %arg6[%c0_86, %c0_87, %c0_88, %c24], %26 {strides = array<i32>} : memref<1x16x16x27xbf16, #tpu.memory_space<vmem>>, vector<1x16x16x3xbf16>,
    %c0_89 = arith.constant 0 : index
    %c0_90 = arith.constant 0 : index
    %c0_91 = arith.constant 0 : index
    %c0_92 = arith.constant 0 : index
    %28 = vector.load %arg6[%c0_89, %c0_90, %c0_91, %c0_92] : memref<1x16x16x27xbf16, #tpu.memory_space<vmem>>, vector<1x16x16x27xbf16>
    %29 = vector.shape_cast %28 : vector<1x16x16x27xbf16> to vector<256x27xbf16>
    %cst_93 = arith.constant dense<0.000000e+00> : vector<256x128xf32>
    %30 = tpu.matmul %29, %8, %cst_93 {dimension_numbers = #tpu.dot_dimension_numbers<[1], [0], [0], [1], [0, 0, 1, 1], [], []>} : vector<256x27xbf16>, vector<27x128xbf16>, vector<256x128xf32> -> vector<256x128xf32>
    %31 = vector.broadcast %9 : vector<1x128xf32> to vector<256x128xf32>
    %32 = arith.addf %30, %31 : vector<256x128xf32>
    %33 = vector.shape_cast %32 : vector<256x128xf32> to vector<1x16x16x128xf32>
    %34 = arith.truncf %33 : vector<1x16x16x128xf32> to vector<1x16x16x128xbf16>
    %c0_94 = arith.constant 0 : index
    %c0_95 = arith.constant 0 : index
    %c0_96 = arith.constant 0 : index
    %c0_97 = arith.constant 0 : index
    %35 = vector.load %arg4[%c0_94, %c0_95, %c0_96, %c0_97] : memref<1x16x16x128xbf16, #tpu.memory_space<vmem>>, vector<1x16x16x128xbf16>
    tpu.vector_store %arg4[%c0_94, %c0_95, %c0_96, %c0_97], %34 {strides = array<i32>} : memref<1x16x16x128xbf16, #tpu.memory_space<vmem>>, vector<1x16x16x128xbf16>,
    return
  }
  func.func @transform_0(%arg0: i32) -> (i32, i32, i32, i32) {
    %c0_i32 = arith.constant 0 : i32
    %c0_i32_0 = arith.constant 0 : i32
    %c0_i32_1 = arith.constant 0 : i32
    %c0_i32_2 = arith.constant 0 : i32
    return %arg0, %c0_i32, %c0_i32_0, %c0_i32_1 : i32, i32, i32, i32
  }
  func.func @transform_1(%arg0: i32) -> (i32, i32) {
    %c0_i32 = arith.constant 0 : i32
    %c0_i32_0 = arith.constant 0 : i32
    %c0_i32_1 = arith.constant 0 : i32
    return %c0_i32, %c0_i32_0 : i32, i32
  }
  func.func @transform_2(%arg0: i32) -> (i32, i32) {
    %c0_i32 = arith.constant 0 : i32
    %c0_i32_0 = arith.constant 0 : i32
    %c0_i32_1 = arith.constant 0 : i32
    return %c0_i32, %c0_i32_0 : i32, i32
  }
  func.func @transform_3(%arg0: i32) -> (i32, i32, i32, i32) {
    %c0_i32 = arith.constant 0 : i32
    %c0_i32_0 = arith.constant 0 : i32
    %c0_i32_1 = arith.constant 0 : i32
    %c0_i32_2 = arith.constant 0 : i32
    return %arg0, %c0_i32, %c0_i32_0, %c0_i32_1 : i32, i32, i32, i32
  }
}

</mosaic_0001>

<llo_original>
// kernel: tpu_custom_call.1
$region0: #{tpu_custom_call.1}
  #allocation0 [shape = 'u32[]', space=smem, size = 0x4, offset = 0x4, fixed_abs, tag = 'smem constant byte address 0x4 - core index']
  #allocation1 [shape = 'u32[144,128]{1,0:T(1,128)}', space=vmem, size = 0x12000, scoped, tag = 'internal scratch']
  #allocation2 [shape = 'bf16[1,18,18,3]{3,2,1,0:T(8,128)(2,1)}', space=vmem, size = 0x1b000, scoped, tag = 'scratch operand']
  #allocation3 [shape = 'bf16[1,16,16,27]{3,2,1,0:T(16,128)(2,1)}', space=vmem, size = 0x10000, scoped, tag = 'scratch operand']
  %s0 = inlined_call_operand.vmem [shape: bf16[2,16,16,3], index: 0, kind: input, shape index: {}]
  %s1 = inlined_call_operand.vmem [shape: bf16[27,128], index: 1, kind: input, shape index: {}]
  %s2 = inlined_call_operand.vmem [shape: f32[1,128], index: 2, kind: input, shape index: {}]
  %s3 = inlined_call_operand.hbm [shape: bf16[2,16,16,128], index: 3, kind: output, shape index: {}]
  %s4 = sld [smem:[#allocation0]]
  $region45: #{tpu_custom_call.1} parent=0
    _
  %s6 = ssub.s32 1, %s4
  %s7 = scalar_select 0, %s6, %s4
  $region1: #{tpu_custom_call.1} parent=0
    #allocation4 [shape = 'u8[131072]{0}', space=vmem, size = 0x20000, scoped, tag = 'output window, operand 0']
    #allocation5 [shape = 's32[2]{0}', space=sflag, size = 0x8, scoped, tag = 'scoped memory for tpu_custom_call.1']
    %8 = vsyncpa [#allocation5], 0
    %s9 = scalar_lea.sflag [#allocation5], 1
    %10 = vsyncpa %s9, 0
    loop: start=0, step=1, limit=4
    $region2: #{tpu_custom_call.1} parent=1 // loop_pre_header
      _
    $region3: #{tpu_custom_call.1} parent=1 // loop_header
      %s12 = sphi 0, %s16
      %p13 = scmp.ge.s32.totalorder %s12, 4
      %s22 = sphi 0, %s24
      %s25 = sphi 0, %s22
      %s26 = sphi 0, %s25
      %s42 = sphi 0, %s26
      %s46 = sphi 0, %s46
      %s48 = sphi 0, %s46
      %s49 = sphi 0, %s48
      %s63 = sphi 0, %s49
      %s67 = sphi 0, %s67
      %s69 = sphi 0, %s67
      %s70 = sphi 0, %s69
      %s84 = sphi 0, %s70
      %s90 = sphi 0, %s92
      %s93 = sphi 0, %s90
      %s94 = sphi 0, %s93
      %s110 = sphi 0, %s94
    $region4: #{tpu_custom_call.1} parent=1 // loop_header_branch
      %15 = sbr.rel (%p13) target = $region8
    $region5: #{tpu_custom_call.1} parent=1 // loop_body
      %s17 = ssub.s32 %s12, 1
      %s18 = ssub.s32 %s12, 2
      %s19 = sadd.s32 %s12, 1
      %s20 = ssub.s32 %s12, %s19
      %p21 = scmp.eq.s32.totalorder %s20, 0
      %s23 = sadd.s32 %s22, 1
      %s24 = scalar_select %p21, %s22, %s23
      %p27 = pneg %p21
      %p28 = scmp.eq.s32.totalorder %s12, 1
      %p29 = por %p27, %p28
      %p30 = scmp.ne.s32.totalorder %s22, %s25
      %p31 = scmp.eq.s32.totalorder %s12, 0
      %p32 = por %p30, %p31
      %p33 = scmp.ne.s32.totalorder %s22, %s25
      %p34 = scmp.eq.s32.totalorder %s17, 1
      %p35 = por %p33, %p34
      %p36 = scmp.ne.s32.totalorder %s25, %s26
      %p37 = scmp.eq.s32.totalorder %s17, 0
      %p38 = por %p36, %p37
      %p39 = scmp.ne.s32.totalorder %s25, %s26
      %p40 = scmp.eq.s32.totalorder %s18, 1
      %p41 = por %p39, %p40
      %p43 = scmp.ne.s32.totalorder %s26, %s42
      %p44 = scmp.eq.s32.totalorder %s18, 0
      %p45 = por %p43, %p44
      %s47 = sadd.s32 %s46, 1
      %p50 = scmp.eq.s32.totalorder %s12, 1
      %p51 = scmp.ne.s32.totalorder %s46, %s48
      %p52 = scmp.eq.s32.totalorder %s12, 0
      %p53 = por %p51, %p52
      %p54 = scmp.ne.s32.totalorder %s46, %s48
      %p55 = scmp.eq.s32.totalorder %s17, 1
      %p56 = por %p54, %p55
      %p57 = scmp.ne.s32.totalorder %s48, %s49
      %p58 = scmp.eq.s32.totalorder %s17, 0
      %p59 = por %p57, %p58
      %p60 = scmp.ne.s32.totalorder %s48, %s49
      %p61 = scmp.eq.s32.totalorder %s18, 1
      %p62 = por %p60, %p61
      %p64 = scmp.ne.s32.totalorder %s49, %s63
      %p65 = scmp.eq.s32.totalorder %s18, 0
      %p66 = por %p64, %p65
      %s68 = sadd.s32 %s67, 1
      %p71 = scmp.eq.s32.totalorder %s12, 1
      %p72 = scmp.ne.s32.totalorder %s67, %s69
      %p73 = scmp.eq.s32.totalorder %s12, 0
      %p74 = por %p72, %p73
      %p75 = scmp.ne.s32.totalorder %s67, %s69
      %p76 = scmp.eq.s32.totalorder %s17, 1
      %p77 = por %p75, %p76
      %p78 = scmp.ne.s32.totalorder %s69, %s70
      %p79 = scmp.eq.s32.totalorder %s17, 0
      %p80 = por %p78, %p79
      %p81 = scmp.ne.s32.totalorder %s69, %s70
      %p82 = scmp.eq.s32.totalorder %s18, 1
      %p83 = por %p81, %p82
      %p85 = scmp.ne.s32.totalorder %s70, %s84
      %p86 = scmp.eq.s32.totalorder %s18, 0
      %p87 = por %p85, %p86
      %s88 = ssub.s32 %s12, %s19
      %p89 = scmp.eq.s32.totalorder %s88, 0
      %s91 = sadd.s32 %s90, 1
      %s92 = scalar_select %p89, %s90, %s91
      %p95 = pneg %p89
      %p96 = scmp.eq.s32.totalorder %s12, 1
      %p97 = por %p95, %p96
      %p98 = scmp.ne.s32.totalorder %s90, %s93
      %p99 = scmp.eq.s32.totalorder %s12, 0
      %p100 = por %p98, %p99
      %p101 = scmp.ne.s32.totalorder %s90, %s93
      %p102 = scmp.eq.s32.totalorder %s17, 1
      %p103 = por %p101, %p102
      %p104 = scmp.ne.s32.totalorder %s93, %s94
      %p105 = scmp.eq.s32.totalorder %s17, 0
      %p106 = por %p104, %p105
      %p107 = scmp.ne.s32.totalorder %s93, %s94
      %p108 = scmp.eq.s32.totalorder %s18, 1
      %p109 = por %p107, %p108
      %p111 = scmp.ne.s32.totalorder %s94, %s110
      %p112 = scmp.eq.s32.totalorder %s18, 0
      %p113 = por %p111, %p112
      %p114 = scmp.le.s32.totalorder 1, %s12
      %p115 = scmp.lt.s32.totalorder %s12, 3
      %p116 = pnand %p114, %p115
      %p117 = pneg %p116
      // Predicated region
      $region9: #{tpu_custom_call.1} parent=5 // pred_check
        _
      $region10: #{tpu_custom_call.1} parent=5 // pred_check_branch
        %119 = sbr.rel (%p116) target = $region12
      $region11: #{tpu_custom_call.1} parent=5 // pred_region
        %s120 = ssub.s32 %s12, 1
        // Predicated region
        $region13: #{tpu_custom_call.1} parent=11 // pred_check
          %p121 = pneg %p59
        $region14: #{tpu_custom_call.1} parent=11 // pred_check_branch
          %123 = sbr.rel (%p121) target = $region16
        $region15: #{tpu_custom_call.1} parent=11 // pred_region
          _
        $region16: #{tpu_custom_call.1} parent=11 // pred_fallthru
          _
        // Predicated region
        $region17: #{tpu_custom_call.1} parent=11 // pred_check
          %p124 = pneg %p80
        $region18: #{tpu_custom_call.1} parent=11 // pred_check_branch
          %126 = sbr.rel (%p124) target = $region20
        $region19: #{tpu_custom_call.1} parent=11 // pred_region
          _
        $region20: #{tpu_custom_call.1} parent=11 // pred_fallthru
          _
      $region12: #{tpu_custom_call.1} parent=5 // pred_fallthru
        _
      %p127 = scmp.lt.s32.totalorder %s12, 2
      // Predicated region
      $region21: #{tpu_custom_call.1} parent=5 // pred_check
        %p128 = pneg %p127
      $region22: #{tpu_custom_call.1} parent=5 // pred_check_branch
        %130 = sbr.rel (%p128) target = $region24
      $region23: #{tpu_custom_call.1} parent=5 // pred_region
        // Predicated region
        $region25: #{tpu_custom_call.1} parent=23 // pred_check
          %p131 = pneg %p32
        $region26: #{tpu_custom_call.1} parent=23 // pred_check_branch
          %133 = sbr.rel (%p131) target = $region28
        $region27: #{tpu_custom_call.1} parent=23 // pred_region
          %p134 = scmp.lt.s32.totalorder %s12, 1
          %s135 = scalar_select %p134, %s12, 1
          %s136 = smul.addr %s135, 32
          %s137 = smul.addr %s136, 4
          %s138 = scalar_lea.vmem %s0, %s137
        $region28: #{tpu_custom_call.1} parent=23 // pred_fallthru
          _
      $region24: #{tpu_custom_call.1} parent=5 // pred_fallthru
        _
      %p139 = scmp.le.s32.totalorder 1, %s12
      %p140 = scmp.lt.s32.totalorder %s12, 3
      %p141 = pnand %p139, %p140
      %p142 = pneg %p141
      // Predicated region
      $region29: #{tpu_custom_call.1} parent=5 // pred_check
        _
      $region30: #{tpu_custom_call.1} parent=5 // pred_check_branch
        %144 = sbr.rel (%p141) target = $region32
      $region31: #{tpu_custom_call.1} parent=5 // pred_region
        %s145 = ssub.s32 %s12, 1
        %p146 = scmp.lt.s32.totalorder %s17, 1
        %s147 = scalar_select %p146, %s17, 1
        %s148 = smul.addr %s147, 32
        %s149 = smul.addr %s148, 4
        %s150 = scalar_lea.vmem %s0, %s149
        %p151 = pneg %p38
        %p152 = pneg %p35
        %p153 = pneg %p59
        %p154 = pneg %p56
        %p155 = pneg %p80
        %p156 = pneg %p77
        %p157 = pneg %p106
        %p158 = pneg %p103
        %s159 = sand.u32 %s93, 1
        %s160 = scalar_lea.sflag [#allocation5], %s159
        %s161 = sand.u32 %s93, 1
        %s162 = smul.addr %s161, 128
        %s163 = scalar_lea.vmem [#allocation4], %s162
        %p164 = scmp.lt.s32.totalorder %s17, 1
        %s165 = scalar_select %p164, %s17, 1
        %s166 = smul.addr %s165, 32
        %s167 = smul.addr %s166, 4
        %s168 = scalar_lea.vmem %s0, %s167
        %vm170 = vcmask 19456
        %171 = vst.msk [vmem:[#allocation2] sm:$0xf] %vm170, 0
        %172 = vst.msk [vmem:[#allocation2 + $0x4] sm:$0xf] %vm170, 0
        %vm173 = vcmask 16384
        %174 = vst.msk [vmem:[#allocation2 + $0x8] sm:$0x1] %vm173, 0
        %s175 = scalar_lea.vmem [#allocation2], 204
        %176 = vst.msk [vmem:[%s175] sm:$0xf] %vm170, 0
        %177 = vst.msk [vmem:[%s175 + $0x4] sm:$0xf] %vm170, 0
        %178 = vst.msk [vmem:[%s175 + $0x8] sm:$0x1] %vm173, 0
        %vm179 = vcmask 16384
        %vm180 = vsmask.f32 256
        %vm181 = vmand %vm179, %vm180
        %v182 = vld [vmem:[#allocation2] sm:$0x1]
        %v183 = vsel %vm181, 0, %v182
        %184 = vst [vmem:[#allocation2] sm:$0x1] %v183
        %v185 = vld [vmem:[#allocation2 + $0xc] sm:$0x1]
        %v186 = vsel %vm181, 0, %v185
        %187 = vst [vmem:[#allocation2 + $0xc] sm:$0x1] %v186
        %v188 = vld [vmem:[#allocation2 + $0x18] sm:$0x1]
        %v189 = vsel %vm181, 0, %v188
        %190 = vst [vmem:[#allocation2 + $0x18] sm:$0x1] %v189
        %v191 = vld [vmem:[#allocation2 + $0x24] sm:$0x1]
        %v192 = vsel %vm181, 0, %v191
        %193 = vst [vmem:[#allocation2 + $0x24] sm:$0x1] %v192
        %v194 = vld [vmem:[#allocation2 + $0x30] sm:$0x1]
        %v195 = vsel %vm181, 0, %v194
        %196 = vst [vmem:[#allocation2 + $0x30] sm:$0x1] %v195
        %v197 = vld [vmem:[#allocation2 + $0x3c] sm:$0x1]
        %v198 = vsel %vm181, 0, %v197
        %199 = vst [vmem:[#allocation2 + $0x3c] sm:$0x1] %v198
        %v200 = vld [vmem:[#allocation2 + $0x48] sm:$0x1]
        %v201 = vsel %vm181, 0, %v200
        %202 = vst [vmem:[#allocation2 + $0x48] sm:$0x1] %v201
        %v203 = vld [vmem:[#allocation2 + $0x54] sm:$0x1]
        %v204 = vsel %vm181, 0, %v203
        %205 = vst [vmem:[#allocation2 + $0x54] sm:$0x1] %v204
        %v206 = vld [vmem:[#allocation2 + $0x60] sm:$0x1]
        %v207 = vsel %vm181, 0, %v206
        %208 = vst [vmem:[#allocation2 + $0x60] sm:$0x1] %v207
        %v209 = vld [vmem:[#allocation2 + $0x6c] sm:$0x1]
        %v210 = vsel %vm181, 0, %v209
        %211 = vst [vmem:[#allocation2 + $0x6c] sm:$0x1] %v210
        %v212 = vld [vmem:[#allocation2 + $0x78] sm:$0x1]
        %v213 = vsel %vm181, 0, %v212
        %214 = vst [vmem:[#allocation2 + $0x78] sm:$0x1] %v213
        %v215 = vld [vmem:[#allocation2 + $0x84] sm:$0x1]
        %v216 = vsel %vm181, 0, %v215
        %217 = vst [vmem:[#allocation2 + $0x84] sm:$0x1] %v216
        %v218 = vld [vmem:[#allocation2 + $0x90] sm:$0x1]
        %v219 = vsel %vm181, 0, %v218
        %220 = vst [vmem:[#allocation2 + $0x90] sm:$0x1] %v219
        %v221 = vld [vmem:[#allocation2 + $0x9c] sm:$0x1]
        %v222 = vsel %vm181, 0, %v221
        %223 = vst [vmem:[#allocation2 + $0x9c] sm:$0x1] %v222
        %v224 = vld [vmem:[#allocation2 + $0xa8] sm:$0x1]
        %v225 = vsel %vm181, 0, %v224
        %226 = vst [vmem:[#allocation2 + $0xa8] sm:$0x1] %v225
        %v227 = vld [vmem:[#allocation2 + $0xb4] sm:$0x1]
        %v228 = vsel %vm181, 0, %v227
        %229 = vst [vmem:[#allocation2 + $0xb4] sm:$0x1] %v228
        %v230 = vld [vmem:[#allocation2 + $0xc0] sm:$0x1]
        %v231 = vsel %vm181, 0, %v230
        %232 = vst [vmem:[#allocation2 + $0xc0] sm:$0x1] %v231
        %v233 = vld [vmem:[#allocation2 + $0xcc] sm:$0x1]
        %v234 = vsel %vm181, 0, %v233
        %235 = vst [vmem:[#allocation2 + $0xcc] sm:$0x1] %v234
        %vm236 = vsmask.f32 7938
        %vm237 = vmand %vm179, %vm236
        %v238 = vld [vmem:[#allocation2 + $0x8] sm:$0x1]
        %v239 = vsel %vm237, 0, %v238
        %240 = vst [vmem:[#allocation2 + $0x8] sm:$0x1] %v239
        %v241 = vld [vmem:[#allocation2 + $0x14] sm:$0x1]
        %v242 = vsel %vm237, 0, %v241
        %243 = vst [vmem:[#allocation2 + $0x14] sm:$0x1] %v242
        %v244 = vld [vmem:[#allocation2 + $0x20] sm:$0x1]
        %v245 = vsel %vm237, 0, %v244
        %246 = vst [vmem:[#allocation2 + $0x20] sm:$0x1] %v245
        %v247 = vld [vmem:[#allocation2 + $0x2c] sm:$0x1]
        %v248 = vsel %vm237, 0, %v247
        %249 = vst [vmem:[#allocation2 + $0x2c] sm:$0x1] %v248
        %v250 = vld [vmem:[#allocation2 + $0x38] sm:$0x1]
        %v251 = vsel %vm237, 0, %v250
        %252 = vst [vmem:[#allocation2 + $0x38] sm:$0x1] %v251
        %v253 = vld [vmem:[#allocation2 + $0x44] sm:$0x1]
        %v254 = vsel %vm237, 0, %v253
        %255 = vst [vmem:[#allocation2 + $0x44] sm:$0x1] %v254
        %v256 = vld [vmem:[#allocation2 + $0x50] sm:$0x1]
        %v257 = vsel %vm237, 0, %v256
        %258 = vst [vmem:[#allocation2 + $0x50] sm:$0x1] %v257
        %v259 = vld [vmem:[#allocation2 + $0x5c] sm:$0x1]
        %v260 = vsel %vm237, 0, %v259
        %261 = vst [vmem:[#allocation2 + $0x5c] sm:$0x1] %v260
        %v262 = vld [vmem:[#allocation2 + $0x68] sm:$0x1]
        %v263 = vsel %vm237, 0, %v262
        %264 = vst [vmem:[#allocation2 + $0x68] sm:$0x1] %v263
        %v265 = vld [vmem:[#allocation2 + $0x74] sm:$0x1]
        %v266 = vsel %vm237, 0, %v265
        %267 = vst [vmem:[#allocation2 + $0x74] sm:$0x1] %v266
        %v268 = vld [vmem:[#allocation2 + $0x80] sm:$0x1]
        %v269 = vsel %vm237, 0, %v268
        %270 = vst [vmem:[#allocation2 + $0x80] sm:$0x1] %v269
        %v271 = vld [vmem:[#allocation2 + $0x8c] sm:$0x1]
        %v272 = vsel %vm237, 0, %v271
        %273 = vst [vmem:[#allocation2 + $0x8c] sm:$0x1] %v272
        %v274 = vld [vmem:[#allocation2 + $0x98] sm:$0x1]
        %v275 = vsel %vm237, 0, %v274
        %276 = vst [vmem:[#allocation2 + $0x98] sm:$0x1] %v275
        %v277 = vld [vmem:[#allocation2 + $0xa4] sm:$0x1]
        %v278 = vsel %vm237, 0, %v277
        %279 = vst [vmem:[#allocation2 + $0xa4] sm:$0x1] %v278
        %v280 = vld [vmem:[#allocation2 + $0xb0] sm:$0x1]
        %v281 = vsel %vm237, 0, %v280
        %282 = vst [vmem:[#allocation2 + $0xb0] sm:$0x1] %v281
        %v283 = vld [vmem:[#allocation2 + $0xbc] sm:$0x1]
        %v284 = vsel %vm237, 0, %v283
        %285 = vst [vmem:[#allocation2 + $0xbc] sm:$0x1] %v284
        %v286 = vld [vmem:[#allocation2 + $0xc8] sm:$0x1]
        %v287 = vsel %vm237, 0, %v286
        %288 = vst [vmem:[#allocation2 + $0xc8] sm:$0x1] %v287
        %v289 = vld [vmem:[#allocation2 + $0xd4] sm:$0x1]
        %v290 = vsel %vm237, 0, %v289
        %291 = vst [vmem:[#allocation2 + $0xd4] sm:$0x1] %v290
        %v292 = vld [vmem:[%s168] sm:$0xf]
        %v293 = vld [vmem:[%s168 + $0x4] sm:$0xf]
        %v294 = vld [vmem:[%s168 + $0x8] sm:$0xf]
        %v295 = vld [vmem:[%s168 + $0xc] sm:$0xf]
        %v296 = vld [vmem:[%s168 + $0x10] sm:$0xf]
        %v297 = vld [vmem:[%s168 + $0x14] sm:$0xf]
        %v298 = vld [vmem:[%s168 + $0x18] sm:$0xf]
        %v299 = vld [vmem:[%s168 + $0x1c] sm:$0xf]
        %v300 = vld [vmem:[%s168 + $0x20] sm:$0xf]
        %v301 = vld [vmem:[%s168 + $0x24] sm:$0xf]
        %v302 = vld [vmem:[%s168 + $0x28] sm:$0xf]
        %v303 = vld [vmem:[%s168 + $0x2c] sm:$0xf]
        %v304 = vld [vmem:[%s168 + $0x30] sm:$0xf]
        %v305 = vld [vmem:[%s168 + $0x34] sm:$0xf]
        %v306 = vld [vmem:[%s168 + $0x38] sm:$0xf]
        %v307 = vld [vmem:[%s168 + $0x3c] sm:$0xf]
        %v308 = vld [vmem:[%s168 + $0x40] sm:$0xf]
        %v309 = vld [vmem:[%s168 + $0x44] sm:$0xf]
        %v310 = vld [vmem:[%s168 + $0x48] sm:$0xf]
        %v311 = vld [vmem:[%s168 + $0x4c] sm:$0xf]
        %v312 = vld [vmem:[%s168 + $0x50] sm:$0xf]
        %v313 = vld [vmem:[%s168 + $0x54] sm:$0xf]
        %v314 = vld [vmem:[%s168 + $0x58] sm:$0xf]
        %v315 = vld [vmem:[%s168 + $0x5c] sm:$0xf]
        %v316 = vld [vmem:[%s168 + $0x60] sm:$0xf]
        %v317 = vld [vmem:[%s168 + $0x64] sm:$0xf]
        %v318 = vld [vmem:[%s168 + $0x68] sm:$0xf]
        %v319 = vld [vmem:[%s168 + $0x6c] sm:$0xf]
        %v320 = vld [vmem:[%s168 + $0x70] sm:$0xf]
        %v321 = vld [vmem:[%s168 + $0x74] sm:$0xf]
        %v322 = vld [vmem:[%s168 + $0x78] sm:$0xf]
        %v323 = vld [vmem:[%s168 + $0x7c] sm:$0xf]
        %vm324 = vsmask.f32 4368
        %vm325 = vmor %vm180, %vm324
        %v327 = vshrl.u32 %v292, 16
        %v329 = vrot.slane %v327, 7
        %v330 = vshll.u32 %v292, 16
        %v332 = vor.u32 %v329, %v330
        %v333 = vrot.slane %v329, 4
        %v335 = vshrl.u32 %v293, 16
        %v337 = vrot.slane %v335, 7
        %v338 = vshll.u32 %v293, 16
        %v340 = vor.u32 %v337, %v338
        %v341 = vsel %vm325, %v333, %v340
        %v342 = vrot.slane %v337, 4
        %v344 = vshrl.u32 %v294, 16
        %v346 = vrot.slane %v344, 7
        %v347 = vshll.u32 %v294, 16
        %v349 = vor.u32 %v346, %v347
        %v350 = vrot.slane %v346, 4
        %v352 = vshrl.u32 %v295, 16
        %v354 = vrot.slane %v352, 7
        %v355 = vshll.u32 %v295, 16
        %v357 = vor.u32 %v354, %v355
        %v358 = vsel %vm325, %v350, %v357
        %v359 = vrot.slane %v354, 4
        %v361 = vshrl.u32 %v296, 16
        %v363 = vrot.slane %v361, 7
        %v364 = vshll.u32 %v296, 16
        %v366 = vor.u32 %v363, %v364
        %v367 = vrot.slane %v363, 4
        %v369 = vshrl.u32 %v297, 16
        %v371 = vrot.slane %v369, 7
        %v372 = vshll.u32 %v297, 16
        %v374 = vor.u32 %v371, %v372
        %v375 = vsel %vm325, %v367, %v374
        %v376 = vrot.slane %v371, 4
        %v378 = vshrl.u32 %v298, 16
        %v380 = vrot.slane %v378, 7
        %v381 = vshll.u32 %v298, 16
        %v383 = vor.u32 %v380, %v381
        %v384 = vrot.slane %v380, 4
        %v386 = vshrl.u32 %v299, 16
        %v388 = vrot.slane %v386, 7
        %v389 = vshll.u32 %v299, 16
        %v391 = vor.u32 %v388, %v389
        %v392 = vsel %vm325, %v384, %v391
        %v393 = vrot.slane %v388, 4
        %v395 = vshrl.u32 %v300, 16
        %v397 = vrot.slane %v395, 7
        %v398 = vshll.u32 %v300, 16
        %v400 = vor.u32 %v397, %v398
        %v401 = vrot.slane %v397, 4
        %v403 = vshrl.u32 %v301, 16
        %v405 = vrot.slane %v403, 7
        %v406 = vshll.u32 %v301, 16
        %v408 = vor.u32 %v405, %v406
        %v409 = vsel %vm325, %v401, %v408
        %v410 = vrot.slane %v405, 4
        %v412 = vshrl.u32 %v302, 16
        %v414 = vrot.slane %v412, 7
        %v415 = vshll.u32 %v302, 16
        %v417 = vor.u32 %v414, %v415
        %v418 = vrot.slane %v414, 4
        %v420 = vshrl.u32 %v303, 16
        %v422 = vrot.slane %v420, 7
        %v423 = vshll.u32 %v303, 16
        %v425 = vor.u32 %v422, %v423
        %v426 = vsel %vm325, %v418, %v425
        %v427 = vrot.slane %v422, 4
        %v429 = vshrl.u32 %v304, 16
        %v431 = vrot.slane %v429, 7
        %v432 = vshll.u32 %v304, 16
        %v434 = vor.u32 %v431, %v432
        %v435 = vrot.slane %v431, 4
        %v437 = vshrl.u32 %v305, 16
        %v439 = vrot.slane %v437, 7
        %v440 = vshll.u32 %v305, 16
        %v442 = vor.u32 %v439, %v440
        %v443 = vsel %vm325, %v435, %v442
        %v444 = vrot.slane %v439, 4
        %v446 = vshrl.u32 %v306, 16
        %v448 = vrot.slane %v446, 7
        %v449 = vshll.u32 %v306, 16
        %v451 = vor.u32 %v448, %v449
        %v452 = vrot.slane %v448, 4
        %v454 = vshrl.u32 %v307, 16
        %v456 = vrot.slane %v454, 7
        %v457 = vshll.u32 %v307, 16
        %v459 = vor.u32 %v456, %v457
        %v460 = vsel %vm325, %v452, %v459
        %v461 = vrot.slane %v456, 4
        %v463 = vshrl.u32 %v308, 16
        %v465 = vrot.slane %v463, 7
        %v466 = vshll.u32 %v308, 16
        %v468 = vor.u32 %v465, %v466
        %v469 = vrot.slane %v465, 4
        %v471 = vshrl.u32 %v309, 16
        %v473 = vrot.slane %v471, 7
        %v474 = vshll.u32 %v309, 16
        %v476 = vor.u32 %v473, %v474
        %v477 = vsel %vm325, %v469, %v476
        %v478 = vrot.slane %v473, 4
        %v480 = vshrl.u32 %v310, 16
        %v482 = vrot.slane %v480, 7
        %v483 = vshll.u32 %v310, 16
        %v485 = vor.u32 %v482, %v483
        %v486 = vrot.slane %v482, 4
        %v488 = vshrl.u32 %v311, 16
        %v490 = vrot.slane %v488, 7
        %v491 = vshll.u32 %v311, 16
        %v493 = vor.u32 %v490, %v491
        %v494 = vsel %vm325, %v486, %v493
        %v495 = vrot.slane %v490, 4
        %v497 = vshrl.u32 %v312, 16
        %v499 = vrot.slane %v497, 7
        %v500 = vshll.u32 %v312, 16
        %v502 = vor.u32 %v499, %v500
        %v503 = vrot.slane %v499, 4
        %v505 = vshrl.u32 %v313, 16
        %v507 = vrot.slane %v505, 7
        %v508 = vshll.u32 %v313, 16
        %v510 = vor.u32 %v507, %v508
        %v511 = vsel %vm325, %v503, %v510
        %v512 = vrot.slane %v507, 4
        %v514 = vshrl.u32 %v314, 16
        %v516 = vrot.slane %v514, 7
        %v517 = vshll.u32 %v314, 16
        %v519 = vor.u32 %v516, %v517
        %v520 = vrot.slane %v516, 4
        %v522 = vshrl.u32 %v315, 16
        %v524 = vrot.slane %v522, 7
        %v525 = vshll.u32 %v315, 16
        %v527 = vor.u32 %v524, %v525
        %v528 = vsel %vm325, %v520, %v527
        %v529 = vrot.slane %v524, 4
        %v531 = vshrl.u32 %v316, 16
        %v533 = vrot.slane %v531, 7
        %v534 = vshll.u32 %v316, 16
        %v536 = vor.u32 %v533, %v534
        %v537 = vrot.slane %v533, 4
        %v539 = vshrl.u32 %v317, 16
        %v541 = vrot.slane %v539, 7
        %v542 = vshll.u32 %v317, 16
        %v544 = vor.u32 %v541, %v542
        %v545 = vsel %vm325, %v537, %v544
        %v546 = vrot.slane %v541, 4
        %v548 = vshrl.u32 %v318, 16
        %v550 = vrot.slane %v548, 7
        %v551 = vshll.u32 %v318, 16
        %v553 = vor.u32 %v550, %v551
        %v554 = vrot.slane %v550, 4
        %v556 = vshrl.u32 %v319, 16
        %v558 = vrot.slane %v556, 7
        %v559 = vshll.u32 %v319, 16
        %v561 = vor.u32 %v558, %v559
        %v562 = vsel %vm325, %v554, %v561
        %v563 = vrot.slane %v558, 4
        %v565 = vshrl.u32 %v320, 16
        %v567 = vrot.slane %v565, 7
        %v568 = vshll.u32 %v320, 16
        %v570 = vor.u32 %v567, %v568
        %v571 = vrot.slane %v567, 4
        %v573 = vshrl.u32 %v321, 16
        %v575 = vrot.slane %v573, 7
        %v576 = vshll.u32 %v321, 16
        %v578 = vor.u32 %v575, %v576
        %v579 = vsel %vm325, %v571, %v578
        %v580 = vrot.slane %v575, 4
        %v582 = vshrl.u32 %v322, 16
        %v584 = vrot.slane %v582, 7
        %v585 = vshll.u32 %v322, 16
        %v587 = vor.u32 %v584, %v585
        %v588 = vrot.slane %v584, 4
        %v590 = vshrl.u32 %v323, 16
        %v592 = vrot.slane %v590, 7
        %v593 = vshll.u32 %v323, 16
        %v595 = vor.u32 %v592, %v593
        %v596 = vsel %vm325, %v588, %v595
        %v597 = vrot.slane %v592, 4
        %s646 = scalar_lea.vmem [#allocation2], 12
        %vm647 = vcmask 19456
        %vm648 = vmand %vm647, %vm236
        %v649 = vld [vmem:[%s646] sm:$0xf]
        %v650 = vsel %vm648, %v332, %v649
        %651 = vst [vmem:[%s646] sm:$0xf] %v650
        %652 = vst.msk [vmem:[%s646 + $0x4] sm:$0xf] %vm170, %v341
        %v653 = vld [vmem:[%s646 + $0x8] sm:$0x1]
        %v654 = vsel %vm181, %v342, %v653
        %655 = vst [vmem:[%s646 + $0x8] sm:$0x1] %v654
        %v656 = vld [vmem:[%s646 + $0xc] sm:$0xf]
        %v657 = vsel %vm648, %v349, %v656
        %658 = vst [vmem:[%s646 + $0xc] sm:$0xf] %v657
        %659 = vst.msk [vmem:[%s646 + $0x10] sm:$0xf] %vm170, %v358
        %v660 = vld [vmem:[%s646 + $0x14] sm:$0x1]
        %v661 = vsel %vm181, %v359, %v660
        %662 = vst [vmem:[%s646 + $0x14] sm:$0x1] %v661
        %v663 = vld [vmem:[%s646 + $0x18] sm:$0xf]
        %v664 = vsel %vm648, %v366, %v663
        %665 = vst [vmem:[%s646 + $0x18] sm:$0xf] %v664
        %666 = vst.msk [vmem:[%s646 + $0x1c] sm:$0xf] %vm170, %v375
        %v667 = vld [vmem:[%s646 + $0x20] sm:$0x1]
        %v668 = vsel %vm181, %v376, %v667
        %669 = vst [vmem:[%s646 + $0x20] sm:$0x1] %v668
        %v670 = vld [vmem:[%s646 + $0x24] sm:$0xf]
        %v671 = vsel %vm648, %v383, %v670
        %672 = vst [vmem:[%s646 + $0x24] sm:$0xf] %v671
        %673 = vst.msk [vmem:[%s646 + $0x28] sm:$0xf] %vm170, %v392
        %v674 = vld [vmem:[%s646 + $0x2c] sm:$0x1]
        %v675 = vsel %vm181, %v393, %v674
        %676 = vst [vmem:[%s646 + $0x2c] sm:$0x1] %v675
        %v677 = vld [vmem:[%s646 + $0x30] sm:$0xf]
        %v678 = vsel %vm648, %v400, %v677
        %679 = vst [vmem:[%s646 + $0x30] sm:$0xf] %v678
        %680 = vst.msk [vmem:[%s646 + $0x34] sm:$0xf] %vm170, %v409
        %v681 = vld [vmem:[%s646 + $0x38] sm:$0x1]
        %v682 = vsel %vm181, %v410, %v681
        %683 = vst [vmem:[%s646 + $0x38] sm:$0x1] %v682
        %v684 = vld [vmem:[%s646 + $0x3c] sm:$0xf]
        %v685 = vsel %vm648, %v417, %v684
        %686 = vst [vmem:[%s646 + $0x3c] sm:$0xf] %v685
        %687 = vst.msk [vmem:[%s646 + $0x40] sm:$0xf] %vm170, %v426
        %v688 = vld [vmem:[%s646 + $0x44] sm:$0x1]
        %v689 = vsel %vm181, %v427, %v688
        %690 = vst [vmem:[%s646 + $0x44] sm:$0x1] %v689
        %v691 = vld [vmem:[%s646 + $0x48] sm:$0xf]
        %v692 = vsel %vm648, %v434, %v691
        %693 = vst [vmem:[%s646 + $0x48] sm:$0xf] %v692
        %694 = vst.msk [vmem:[%s646 + $0x4c] sm:$0xf] %vm170, %v443
        %v695 = vld [vmem:[%s646 + $0x50] sm:$0x1]
        %v696 = vsel %vm181, %v444, %v695
        %697 = vst [vmem:[%s646 + $0x50] sm:$0x1] %v696
        %v698 = vld [vmem:[%s646 + $0x54] sm:$0xf]
        %v699 = vsel %vm648, %v451, %v698
        %700 = vst [vmem:[%s646 + $0x54] sm:$0xf] %v699
        %701 = vst.msk [vmem:[%s646 + $0x58] sm:$0xf] %vm170, %v460
        %v702 = vld [vmem:[%s646 + $0x5c] sm:$0x1]
        %v703 = vsel %vm181, %v461, %v702
        %704 = vst [vmem:[%s646 + $0x5c] sm:$0x1] %v703
        %v705 = vld [vmem:[%s646 + $0x60] sm:$0xf]
        %v706 = vsel %vm648, %v468, %v705
        %707 = vst [vmem:[%s646 + $0x60] sm:$0xf] %v706
        %708 = vst.msk [vmem:[%s646 + $0x64] sm:$0xf] %vm170, %v477
        %v709 = vld [vmem:[%s646 + $0x68] sm:$0x1]
        %v710 = vsel %vm181, %v478, %v709
        %711 = vst [vmem:[%s646 + $0x68] sm:$0x1] %v710
        %v712 = vld [vmem:[%s646 + $0x6c] sm:$0xf]
        %v713 = vsel %vm648, %v485, %v712
        %714 = vst [vmem:[%s646 + $0x6c] sm:$0xf] %v713
        %715 = vst.msk [vmem:[%s646 + $0x70] sm:$0xf] %vm170, %v494
        %v716 = vld [vmem:[%s646 + $0x74] sm:$0x1]
        %v717 = vsel %vm181, %v495, %v716
        %718 = vst [vmem:[%s646 + $0x74] sm:$0x1] %v717
        %v719 = vld [vmem:[%s646 + $0x78] sm:$0xf]
        %v720 = vsel %vm648, %v502, %v719
        %721 = vst [vmem:[%s646 + $0x78] sm:$0xf] %v720
        %722 = vst.msk [vmem:[%s646 + $0x7c] sm:$0xf] %vm170, %v511
        %v723 = vld [vmem:[%s646 + $0x80] sm:$0x1]
        %v724 = vsel %vm181, %v512, %v723
        %725 = vst [vmem:[%s646 + $0x80] sm:$0x1] %v724
        %v726 = vld [vmem:[%s646 + $0x84] sm:$0xf]
        %v727 = vsel %vm648, %v519, %v726
        %728 = vst [vmem:[%s646 + $0x84] sm:$0xf] %v727
        %729 = vst.msk [vmem:[%s646 + $0x88] sm:$0xf] %vm170, %v528
        %v730 = vld [vmem:[%s646 + $0x8c] sm:$0x1]
        %v731 = vsel %vm181, %v529, %v730
        %732 = vst [vmem:[%s646 + $0x8c] sm:$0x1] %v731
        %v733 = vld [vmem:[%s646 + $0x90] sm:$0xf]
        %v734 = vsel %vm648, %v536, %v733
        %735 = vst [vmem:[%s646 + $0x90] sm:$0xf] %v734
        %736 = vst.msk [vmem:[%s646 + $0x94] sm:$0xf] %vm170, %v545
        %v737 = vld [vmem:[%s646 + $0x98] sm:$0x1]
        %v738 = vsel %vm181, %v546, %v737
        %739 = vst [vmem:[%s646 + $0x98] sm:$0x1] %v738
        %v740 = vld [vmem:[%s646 + $0x9c] sm:$0xf]
        %v741 = vsel %vm648, %v553, %v740
        %742 = vst [vmem:[%s646 + $0x9c] sm:$0xf] %v741
        %743 = vst.msk [vmem:[%s646 + $0xa0] sm:$0xf] %vm170, %v562
        %v744 = vld [vmem:[%s646 + $0xa4] sm:$0x1]
        %v745 = vsel %vm181, %v563, %v744
        %746 = vst [vmem:[%s646 + $0xa4] sm:$0x1] %v745
        %v747 = vld [vmem:[%s646 + $0xa8] sm:$0xf]
        %v748 = vsel %vm648, %v570, %v747
        %749 = vst [vmem:[%s646 + $0xa8] sm:$0xf] %v748
        %750 = vst.msk [vmem:[%s646 + $0xac] sm:$0xf] %vm170, %v579
        %v751 = vld [vmem:[%s646 + $0xb0] sm:$0x1]
        %v752 = vsel %vm181, %v580, %v751
        %753 = vst [vmem:[%s646 + $0xb0] sm:$0x1] %v752
        %v754 = vld [vmem:[%s646 + $0xb4] sm:$0xf]
        %v755 = vsel %vm648, %v587, %v754
        %756 = vst [vmem:[%s646 + $0xb4] sm:$0xf] %v755
        %757 = vst.msk [vmem:[%s646 + $0xb8] sm:$0xf] %vm170, %v596
        %v758 = vld [vmem:[%s646 + $0xbc] sm:$0x1]
        %v759 = vsel %vm181, %v597, %v758
        %760 = vst [vmem:[%s646 + $0xbc] sm:$0x1] %v759
        %v761 = vld [vmem:[%s1] sm:$0xf]
        %v762 = vld [vmem:[%s1 + $0x4] sm:$0xf]
        %v763 = vld [vmem:[%s1 + $0x8] sm:$0xf]
        %v764 = vld [vmem:[%s1 + $0xc] sm:$0x3]
        %v765 = vld [vmem:[%s2] sm:$0x1]
        %v766 = vld [vmem:[#allocation2] sm:$0xf]
        %v767 = vld [vmem:[#allocation2 + $0x4] sm:$0xf]
        %v768 = vld [vmem:[#allocation2 + $0xc] sm:$0xf]
        %v769 = vld [vmem:[#allocation2 + $0x10] sm:$0xf]
        %v770 = vld [vmem:[#allocation2 + $0x18] sm:$0xf]
        %v771 = vld [vmem:[#allocation2 + $0x1c] sm:$0xf]
        %v772 = vld [vmem:[#allocation2 + $0x24] sm:$0xf]
        %v773 = vld [vmem:[#allocation2 + $0x28] sm:$0xf]
        %v774 = vld [vmem:[#allocation2 + $0x30] sm:$0xf]
        %v775 = vld [vmem:[#allocation2 + $0x34] sm:$0xf]
        %v776 = vld [vmem:[#allocation2 + $0x3c] sm:$0xf]
        %v777 = vld [vmem:[#allocation2 + $0x40] sm:$0xf]
        %v778 = vld [vmem:[#allocation2 + $0x48] sm:$0xf]
        %v779 = vld [vmem:[#allocation2 + $0x4c] sm:$0xf]
        %v780 = vld [vmem:[#allocation2 + $0x54] sm:$0xf]
        %v781 = vld [vmem:[#allocation2 + $0x58] sm:$0xf]
        %v782 = vld [vmem:[#allocation2 + $0x60] sm:$0xf]
        %v783 = vld [vmem:[#allocation2 + $0x64] sm:$0xf]
        %v784 = vld [vmem:[#allocation2 + $0x6c] sm:$0xf]
        %v785 = vld [vmem:[#allocation2 + $0x70] sm:$0xf]
        %v786 = vld [vmem:[#allocation2 + $0x78] sm:$0xf]
        %v787 = vld [vmem:[#allocation2 + $0x7c] sm:$0xf]
        %v788 = vld [vmem:[#allocation2 + $0x84] sm:$0xf]
        %v789 = vld [vmem:[#allocation2 + $0x88] sm:$0xf]
        %v790 = vld [vmem:[#allocation2 + $0x90] sm:$0xf]
        %v791 = vld [vmem:[#allocation2 + $0x94] sm:$0xf]
        %v792 = vld [vmem:[#allocation2 + $0x9c] sm:$0xf]
        %v793 = vld [vmem:[#allocation2 + $0xa0] sm:$0xf]
        %v794 = vld [vmem:[#allocation2 + $0xa8] sm:$0xf]
        %v795 = vld [vmem:[#allocation2 + $0xac] sm:$0xf]
        %v796 = vld [vmem:[#allocation2 + $0xb4] sm:$0xf]
        %v797 = vld [vmem:[#allocation2 + $0xb8] sm:$0xf]
        %v830 = vunpack.c.l.b16 %v766
        %v831 = vunpack.c.l.b16 %v767
        %v832 = vunpack.c.l.b16 %v768
        %v833 = vunpack.c.l.b16 %v769
        %v834 = vunpack.c.l.b16 %v770
        %v835 = vunpack.c.l.b16 %v771
        %v836 = vunpack.c.l.b16 %v772
        %v837 = vunpack.c.l.b16 %v773
        %v838 = vunpack.c.l.b16 %v774
        %v839 = vunpack.c.l.b16 %v775
        %v840 = vunpack.c.l.b16 %v776
        %v841 = vunpack.c.l.b16 %v777
        %v842 = vunpack.c.l.b16 %v778
        %v843 = vunpack.c.l.b16 %v779
        %v844 = vunpack.c.l.b16 %v780
        %v845 = vunpack.c.l.b16 %v781
        %v846 = vunpack.c.l.b16 %v782
        %v847 = vunpack.c.l.b16 %v783
        %v848 = vunpack.c.l.b16 %v784
        %v849 = vunpack.c.l.b16 %v785
        %v850 = vunpack.c.l.b16 %v786
        %v851 = vunpack.c.l.b16 %v787
        %v852 = vunpack.c.l.b16 %v788
        %v853 = vunpack.c.l.b16 %v789
        %v854 = vunpack.c.l.b16 %v790
        %v855 = vunpack.c.l.b16 %v791
        %v856 = vunpack.c.l.b16 %v792
        %v857 = vunpack.c.l.b16 %v793
        %v858 = vunpack.c.l.b16 %v794
        %v859 = vunpack.c.l.b16 %v795
        %v860 = vunpack.c.l.b16 %v796
        %v861 = vunpack.c.l.b16 %v797
        %v862 = vpack.c.b16 %v831, %v830
        %v863 = vpack.c.b16 %v833, %v832
        %v864 = vpack.c.b16 %v835, %v834
        %v865 = vpack.c.b16 %v837, %v836
        %v866 = vpack.c.b16 %v839, %v838
        %v867 = vpack.c.b16 %v841, %v840
        %v868 = vpack.c.b16 %v843, %v842
        %v869 = vpack.c.b16 %v845, %v844
        %v870 = vpack.c.b16 %v847, %v846
        %v871 = vpack.c.b16 %v849, %v848
        %v872 = vpack.c.b16 %v851, %v850
        %v873 = vpack.c.b16 %v853, %v852
        %v874 = vpack.c.b16 %v855, %v854
        %v875 = vpack.c.b16 %v857, %v856
        %v876 = vpack.c.b16 %v859, %v858
        %v877 = vpack.c.b16 %v861, %v860
        %vm894 = vcmask 23552
        %895 = vst.msk [vmem:[#allocation3] sm:$0xff] %vm894, %v862
        %896 = vst.msk [vmem:[#allocation3 + $0x8] sm:$0xff] %vm894, %v863
        %897 = vst.msk [vmem:[#allocation3 + $0x10] sm:$0xff] %vm894, %v864
        %898 = vst.msk [vmem:[#allocation3 + $0x18] sm:$0xff] %vm894, %v865
        %899 = vst.msk [vmem:[#allocation3 + $0x20] sm:$0xff] %vm894, %v866
        %900 = vst.msk [vmem:[#allocation3 + $0x28] sm:$0xff] %vm894, %v867
        %901 = vst.msk [vmem:[#allocation3 + $0x30] sm:$0xff] %vm894, %v868
        %902 = vst.msk [vmem:[#allocation3 + $0x38] sm:$0xff] %vm894, %v869
        %903 = vst.msk [vmem:[#allocation3 + $0x40] sm:$0xff] %vm894, %v870
        %904 = vst.msk [vmem:[#allocation3 + $0x48] sm:$0xff] %vm894, %v871
        %905 = vst.msk [vmem:[#allocation3 + $0x50] sm:$0xff] %vm894, %v872
        %906 = vst.msk [vmem:[#allocation3 + $0x58] sm:$0xff] %vm894, %v873
        %907 = vst.msk [vmem:[#allocation3 + $0x60] sm:$0xff] %vm894, %v874
        %908 = vst.msk [vmem:[#allocation3 + $0x68] sm:$0xff] %vm894, %v875
        %909 = vst.msk [vmem:[#allocation3 + $0x70] sm:$0xff] %vm894, %v876
        %910 = vst.msk [vmem:[#allocation3 + $0x78] sm:$0xff] %vm894, %v877
        %v911 = vld [vmem:[#allocation2] sm:$0xf]
        %v912 = vld [vmem:[#allocation2 + $0x4] sm:$0xf]
        %v913 = vld [vmem:[#allocation2 + $0x8] sm:$0x1]
        %v914 = vld [vmem:[#allocation2 + $0xc] sm:$0xf]
        %v915 = vld [vmem:[#allocation2 + $0x10] sm:$0xf]
        %v916 = vld [vmem:[#allocation2 + $0x14] sm:$0x1]
        %v917 = vld [vmem:[#allocation2 + $0x18] sm:$0xf]
        %v918 = vld [vmem:[#allocation2 + $0x1c] sm:$0xf]
        %v919 = vld [vmem:[#allocation2 + $0x20] sm:$0x1]
        %v920 = vld [vmem:[#allocation2 + $0x24] sm:$0xf]
        %v921 = vld [vmem:[#allocation2 + $0x28] sm:$0xf]
        %v922 = vld [vmem:[#allocation2 + $0x2c] sm:$0x1]
        %v923 = vld [vmem:[#allocation2 + $0x30] sm:$0xf]
        %v924 = vld [vmem:[#allocation2 + $0x34] sm:$0xf]
        %v925 = vld [vmem:[#allocation2 + $0x38] sm:$0x1]
        %v926 = vld [vmem:[#allocation2 + $0x3c] sm:$0xf]
        %v927 = vld [vmem:[#allocation2 + $0x40] sm:$0xf]
        %v928 = vld [vmem:[#allocation2 + $0x44] sm:$0x1]
        %v929 = vld [vmem:[#allocation2 + $0x48] sm:$0xf]
        %v930 = vld [vmem:[#allocation2 + $0x4c] sm:$0xf]
        %v931 = vld [vmem:[#allocation2 + $0x50] sm:$0x1]
        %v932 = vld [vmem:[#allocation2 + $0x54] sm:$0xf]
        %v933 = vld [vmem:[#allocation2 + $0x58] sm:$0xf]
        %v934 = vld [vmem:[#allocation2 + $0x5c] sm:$0x1]
        %v935 = vld [vmem:[#allocation2 + $0x60] sm:$0xf]
        %v936 = vld [vmem:[#allocation2 + $0x64] sm:$0xf]
        %v937 = vld [vmem:[#allocation2 + $0x68] sm:$0x1]
        %v938 = vld [vmem:[#allocation2 + $0x6c] sm:$0xf]
        %v939 = vld [vmem:[#allocation2 + $0x70] sm:$0xf]
        %v940 = vld [vmem:[#allocation2 + $0x74] sm:$0x1]
        %v941 = vld [vmem:[#allocation2 + $0x78] sm:$0xf]
        %v942 = vld [vmem:[#allocation2 + $0x7c] sm:$0xf]
        %v943 = vld [vmem:[#allocation2 + $0x80] sm:$0x1]
        %v944 = vld [vmem:[#allocation2 + $0x84] sm:$0xf]
        %v945 = vld [vmem:[#allocation2 + $0x88] sm:$0xf]
        %v946 = vld [vmem:[#allocation2 + $0x8c] sm:$0x1]
        %v947 = vld [vmem:[#allocation2 + $0x90] sm:$0xf]
        %v948 = vld [vmem:[#allocation2 + $0x94] sm:$0xf]
        %v949 = vld [vmem:[#allocation2 + $0x98] sm:$0x1]
        %v950 = vld [vmem:[#allocation2 + $0x9c] sm:$0xf]
        %v951 = vld [vmem:[#allocation2 + $0xa0] sm:$0xf]
        %v952 = vld [vmem:[#allocation2 + $0xa4] sm:$0x1]
        %v953 = vld [vmem:[#allocation2 + $0xa8] sm:$0xf]
        %v954 = vld [vmem:[#allocation2 + $0xac] sm:$0xf]
        %v955 = vld [vmem:[#allocation2 + $0xb0] sm:$0x1]
        %v956 = vld [vmem:[#allocation2 + $0xb4] sm:$0xf]
        %v957 = vld [vmem:[#allocation2 + $0xb8] sm:$0xf]
        %v958 = vld [vmem:[#allocation2 + $0xbc] sm:$0x1]
        %v1007 = vunpack.c.l.b16 %v911
        %v1008 = vunpack.c.l.b16 %v912
        %v1009 = vunpack.c.l.b16 %v913
        %v1010 = vunpack.c.l.b16 %v914
        %v1011 = vunpack.c.l.b16 %v915
        %v1012 = vunpack.c.l.b16 %v916
        %v1013 = vunpack.c.l.b16 %v917
        %v1014 = vunpack.c.l.b16 %v918
        %v1015 = vunpack.c.l.b16 %v919
        %v1016 = vunpack.c.l.b16 %v920
        %v1017 = vunpack.c.l.b16 %v921
        %v1018 = vunpack.c.l.b16 %v922
        %v1019 = vunpack.c.l.b16 %v923
        %v1020 = vunpack.c.l.b16 %v924
        %v1021 = vunpack.c.l.b16 %v925
        %v1022 = vunpack.c.l.b16 %v926
        %v1023 = vunpack.c.l.b16 %v927
        %v1024 = vunpack.c.l.b16 %v928
        %v1025 = vunpack.c.l.b16 %v929
        %v1026 = vunpack.c.l.b16 %v930
        %v1027 = vunpack.c.l.b16 %v931
        %v1028 = vunpack.c.l.b16 %v932
        %v1029 = vunpack.c.l.b16 %v933
        %v1030 = vunpack.c.l.b16 %v934
        %v1031 = vunpack.c.l.b16 %v935
        %v1032 = vunpack.c.l.b16 %v936
        %v1033 = vunpack.c.l.b16 %v937
        %v1034 = vunpack.c.l.b16 %v938
        %v1035 = vunpack.c.l.b16 %v939
        %v1036 = vunpack.c.l.b16 %v940
        %v1037 = vunpack.c.l.b16 %v941
        %v1038 = vunpack.c.l.b16 %v942
        %v1039 = vunpack.c.l.b16 %v943
        %v1040 = vunpack.c.l.b16 %v944
        %v1041 = vunpack.c.l.b16 %v945
        %v1042 = vunpack.c.l.b16 %v946
        %v1043 = vunpack.c.l.b16 %v947
        %v1044 = vunpack.c.l.b16 %v948
        %v1045 = vunpack.c.l.b16 %v949
        %v1046 = vunpack.c.l.b16 %v950
        %v1047 = vunpack.c.l.b16 %v951
        %v1048 = vunpack.c.l.b16 %v952
        %v1049 = vunpack.c.l.b16 %v953
        %v1050 = vunpack.c.l.b16 %v954
        %v1051 = vunpack.c.l.b16 %v955
        %v1052 = vunpack.c.l.b16 %v956
        %v1053 = vunpack.c.l.b16 %v957
        %v1054 = vunpack.c.l.b16 %v958
        %v1055 = vpack.c.b16 %v1008, %v1007
        %v1056 = vpack.c.b16 %v1009, %v1009
        %v1057 = vpack.c.b16 %v1011, %v1010
        %v1058 = vpack.c.b16 %v1012, %v1012
        %v1059 = vpack.c.b16 %v1014, %v1013
        %v1060 = vpack.c.b16 %v1015, %v1015
        %v1061 = vpack.c.b16 %v1017, %v1016
        %v1062 = vpack.c.b16 %v1018, %v1018
        %v1063 = vpack.c.b16 %v1020, %v1019
        %v1064 = vpack.c.b16 %v1021, %v1021
        %v1065 = vpack.c.b16 %v1023, %v1022
        %v1066 = vpack.c.b16 %v1024, %v1024
        %v1067 = vpack.c.b16 %v1026, %v1025
        %v1068 = vpack.c.b16 %v1027, %v1027
        %v1069 = vpack.c.b16 %v1029, %v1028
        %v1070 = vpack.c.b16 %v1030, %v1030
        %v1071 = vpack.c.b16 %v1032, %v1031
        %v1072 = vpack.c.b16 %v1033, %v1033
        %v1073 = vpack.c.b16 %v1035, %v1034
        %v1074 = vpack.c.b16 %v1036, %v1036
        %v1075 = vpack.c.b16 %v1038, %v1037
        %v1076 = vpack.c.b16 %v1039, %v1039
        %v1077 = vpack.c.b16 %v1041, %v1040
        %v1078 = vpack.c.b16 %v1042, %v1042
        %v1079 = vpack.c.b16 %v1044, %v1043
        %v1080 = vpack.c.b16 %v1045, %v1045
        %v1081 = vpack.c.b16 %v1047, %v1046
        %v1082 = vpack.c.b16 %v1048, %v1048
        %v1083 = vpack.c.b16 %v1050, %v1049
        %v1084 = vpack.c.b16 %v1051, %v1051
        %v1085 = vpack.c.b16 %v1053, %v1052
        %v1086 = vpack.c.b16 %v1054, %v1054
        %vm1087 = vsmask.f32 7424
        %v1089 = vshrl.u32 %v1055, 16
        %v1091 = vshll.u32 %v1055, 16
        %v1093 = vrot.slane %v1091, 1
        %v1094 = vor.u32 %v1089, %v1093
        %v1096 = vshll.u32 %v1056, 16
        %v1098 = vrot.slane %v1096, 1
        %v1099 = vsel %vm1087, %v1094, %v1098
        %v1101 = vshrl.u32 %v1057, 16
        %v1103 = vshll.u32 %v1057, 16
        %v1105 = vrot.slane %v1103, 1
        %v1106 = vor.u32 %v1101, %v1105
        %v1108 = vshll.u32 %v1058, 16
        %v1110 = vrot.slane %v1108, 1
        %v1111 = vsel %vm1087, %v1106, %v1110
        %v1113 = vshrl.u32 %v1059, 16
        %v1115 = vshll.u32 %v1059, 16
        %v1117 = vrot.slane %v1115, 1
        %v1118 = vor.u32 %v1113, %v1117
        %v1120 = vshll.u32 %v1060, 16
        %v1122 = vrot.slane %v1120, 1
        %v1123 = vsel %vm1087, %v1118, %v1122
        %v1125 = vshrl.u32 %v1061, 16
        %v1127 = vshll.u32 %v1061, 16
        %v1129 = vrot.slane %v1127, 1
        %v1130 = vor.u32 %v1125, %v1129
        %v1132 = vshll.u32 %v1062, 16
        %v1134 = vrot.slane %v1132, 1
        %v1135 = vsel %vm1087, %v1130, %v1134
        %v1137 = vshrl.u32 %v1063, 16
        %v1139 = vshll.u32 %v1063, 16
        %v1141 = vrot.slane %v1139, 1
        %v1142 = vor.u32 %v1137, %v1141
        %v1144 = vshll.u32 %v1064, 16
        %v1146 = vrot.slane %v1144, 1
        %v1147 = vsel %vm1087, %v1142, %v1146
        %v1149 = vshrl.u32 %v1065, 16
        %v1151 = vshll.u32 %v1065, 16
        %v1153 = vrot.slane %v1151, 1
        %v1154 = vor.u32 %v1149, %v1153
        %v1156 = vshll.u32 %v1066, 16
        %v1158 = vrot.slane %v1156, 1
        %v1159 = vsel %vm1087, %v1154, %v1158
        %v1161 = vshrl.u32 %v1067, 16
        %v1163 = vshll.u32 %v1067, 16
        %v1165 = vrot.slane %v1163, 1
        %v1166 = vor.u32 %v1161, %v1165
        %v1168 = vshll.u32 %v1068, 16
        %v1170 = vrot.slane %v1168, 1
        %v1171 = vsel %vm1087, %v1166, %v1170
        %v1173 = vshrl.u32 %v1069, 16
        %v1175 = vshll.u32 %v1069, 16
        %v1177 = vrot.slane %v1175, 1
        %v1178 = vor.u32 %v1173, %v1177
        %v1180 = vshll.u32 %v1070, 16
        %v1182 = vrot.slane %v1180, 1
        %v1183 = vsel %vm1087, %v1178, %v1182
        %v1185 = vshrl.u32 %v1071, 16
        %v1187 = vshll.u32 %v1071, 16
        %v1189 = vrot.slane %v1187, 1
        %v1190 = vor.u32 %v1185, %v1189
        %v1192 = vshll.u32 %v1072, 16
        %v1194 = vrot.slane %v1192, 1
        %v1195 = vsel %vm1087, %v1190, %v1194
        %v1197 = vshrl.u32 %v1073, 16
        %v1199 = vshll.u32 %v1073, 16
        %v1201 = vrot.slane %v1199, 1
        %v1202 = vor.u32 %v1197, %v1201
        %v1204 = vshll.u32 %v1074, 16
        %v1206 = vrot.slane %v1204, 1
        %v1207 = vsel %vm1087, %v1202, %v1206
        %v1209 = vshrl.u32 %v1075, 16
        %v1211 = vshll.u32 %v1075, 16
        %v1213 = vrot.slane %v1211, 1
        %v1214 = vor.u32 %v1209, %v1213
        %v1216 = vshll.u32 %v1076, 16
        %v1218 = vrot.slane %v1216, 1
        %v1219 = vsel %vm1087, %v1214, %v1218
        %v1221 = vshrl.u32 %v1077, 16
        %v1223 = vshll.u32 %v1077, 16
        %v1225 = vrot.slane %v1223, 1
        %v1226 = vor.u32 %v1221, %v1225
        %v1228 = vshll.u32 %v1078, 16
        %v1230 = vrot.slane %v1228, 1
        %v1231 = vsel %vm1087, %v1226, %v1230
        %v1233 = vshrl.u32 %v1079, 16
        %v1235 = vshll.u32 %v1079, 16
        %v1237 = vrot.slane %v1235, 1
        %v1238 = vor.u32 %v1233, %v1237
        %v1240 = vshll.u32 %v1080, 16
        %v1242 = vrot.slane %v1240, 1
        %v1243 = vsel %vm1087, %v1238, %v1242
        %v1245 = vshrl.u32 %v1081, 16
        %v1247 = vshll.u32 %v1081, 16
        %v1249 = vrot.slane %v1247, 1
        %v1250 = vor.u32 %v1245, %v1249
        %v1252 = vshll.u32 %v1082, 16
        %v1254 = vrot.slane %v1252, 1
        %v1255 = vsel %vm1087, %v1250, %v1254
        %v1257 = vshrl.u32 %v1083, 16
        %v1259 = vshll.u32 %v1083, 16
        %v1261 = vrot.slane %v1259, 1
        %v1262 = vor.u32 %v1257, %v1261
        %v1264 = vshll.u32 %v1084, 16
        %v1266 = vrot.slane %v1264, 1
        %v1267 = vsel %vm1087, %v1262, %v1266
        %v1269 = vshrl.u32 %v1085, 16
        %v1271 = vshll.u32 %v1085, 16
        %v1273 = vrot.slane %v1271, 1
        %v1274 = vor.u32 %v1269, %v1273
        %v1276 = vshll.u32 %v1086, 16
        %v1278 = vrot.slane %v1276, 1
        %v1279 = vsel %vm1087, %v1274, %v1278
        %1280 = vrot.lane.b32.xlu0 %v1099, 3
        %v1281 = vpop.permute.xlu0 %1280
        %1282 = vrot.lane.b32.xlu0 %v1111, 3
        %v1283 = vpop.permute.xlu0 %1282
        %1284 = vrot.lane.b32.xlu0 %v1123, 3
        %v1285 = vpop.permute.xlu0 %1284
        %1286 = vrot.lane.b32.xlu0 %v1135, 3
        %v1287 = vpop.permute.xlu0 %1286
        %1288 = vrot.lane.b32.xlu0 %v1147, 3
        %v1289 = vpop.permute.xlu0 %1288
        %1290 = vrot.lane.b32.xlu0 %v1159, 3
        %v1291 = vpop.permute.xlu0 %1290
        %1292 = vrot.lane.b32.xlu0 %v1171, 3
        %v1293 = vpop.permute.xlu0 %1292
        %1294 = vrot.lane.b32.xlu0 %v1183, 3
        %v1295 = vpop.permute.xlu0 %1294
        %1296 = vrot.lane.b32.xlu0 %v1195, 3
        %v1297 = vpop.permute.xlu0 %1296
        %1298 = vrot.lane.b32.xlu0 %v1207, 3
        %v1299 = vpop.permute.xlu0 %1298
        %1300 = vrot.lane.b32.xlu0 %v1219, 3
        %v1301 = vpop.permute.xlu0 %1300
        %1302 = vrot.lane.b32.xlu0 %v1231, 3
        %v1303 = vpop.permute.xlu0 %1302
        %1304 = vrot.lane.b32.xlu0 %v1243, 3
        %v1305 = vpop.permute.xlu0 %1304
        %1306 = vrot.lane.b32.xlu0 %v1255, 3
        %v1307 = vpop.permute.xlu0 %1306
        %1308 = vrot.lane.b32.xlu0 %v1267, 3
        %v1309 = vpop.permute.xlu0 %1308
        %1310 = vrot.lane.b32.xlu0 %v1279, 3
        %v1311 = vpop.permute.xlu0 %1310
        %vm1328 = vcmask 48152
        %1329 = vst.msk [vmem:[#allocation3] sm:$0xff] %vm1328, %v1281
        %1330 = vst.msk [vmem:[#allocation3 + $0x8] sm:$0xff] %vm1328, %v1283
        %1331 = vst.msk [vmem:[#allocation3 + $0x10] sm:$0xff] %vm1328, %v1285
        %1332 = vst.msk [vmem:[#allocation3 + $0x18] sm:$0xff] %vm1328, %v1287
        %1333 = vst.msk [vmem:[#allocation3 + $0x20] sm:$0xff] %vm1328, %v1289
        %1334 = vst.msk [vmem:[#allocation3 + $0x28] sm:$0xff] %vm1328, %v1291
        %1335 = vst.msk [vmem:[#allocation3 + $0x30] sm:$0xff] %vm1328, %v1293
        %1336 = vst.msk [vmem:[#allocation3 + $0x38] sm:$0xff] %vm1328, %v1295
        %1337 = vst.msk [vmem:[#allocation3 + $0x40] sm:$0xff] %vm1328, %v1297
        %1338 = vst.msk [vmem:[#allocation3 + $0x48] sm:$0xff] %vm1328, %v1299
        %1339 = vst.msk [vmem:[#allocation3 + $0x50] sm:$0xff] %vm1328, %v1301
        %1340 = vst.msk [vmem:[#allocation3 + $0x58] sm:$0xff] %vm1328, %v1303
        %1341 = vst.msk [vmem:[#allocation3 + $0x60] sm:$0xff] %vm1328, %v1305
        %1342 = vst.msk [vmem:[#allocation3 + $0x68] sm:$0xff] %vm1328, %v1307
        %1343 = vst.msk [vmem:[#allocation3 + $0x70] sm:$0xff] %vm1328, %v1309
        %1344 = vst.msk [vmem:[#allocation3 + $0x78] sm:$0xff] %vm1328, %v1311
        %v1345 = vld [vmem:[#allocation2] sm:$0xe]
        %v1346 = vld [vmem:[#allocation2 + $0x4] sm:$0xf]
        %v1347 = vld [vmem:[#allocation2 + $0x8] sm:$0x1]
        %v1348 = vld [vmem:[#allocation2 + $0xc] sm:$0xe]
        %v1349 = vld [vmem:[#allocation2 + $0x10] sm:$0xf]
        %v1350 = vld [vmem:[#allocation2 + $0x14] sm:$0x1]
        %v1351 = vld [vmem:[#allocation2 + $0x18] sm:$0xe]
        %v1352 = vld [vmem:[#allocation2 + $0x1c] sm:$0xf]
        %v1353 = vld [vmem:[#allocation2 + $0x20] sm:$0x1]
        %v1354 = vld [vmem:[#allocation2 + $0x24] sm:$0xe]
        %v1355 = vld [vmem:[#allocation2 + $0x28] sm:$0xf]
        %v1356 = vld [vmem:[#allocation2 + $0x2c] sm:$0x1]
        %v1357 = vld [vmem:[#allocation2 + $0x30] sm:$0xe]
        %v1358 = vld [vmem:[#allocation2 + $0x34] sm:$0xf]
        %v1359 = vld [vmem:[#allocation2 + $0x38] sm:$0x1]
        %v1360 = vld [vmem:[#allocation2 + $0x3c] sm:$0xe]
        %v1361 = vld [vmem:[#allocation2 + $0x40] sm:$0xf]
        %v1362 = vld [vmem:[#allocation2 + $0x44] sm:$0x1]
        %v1363 = vld [vmem:[#allocation2 + $0x48] sm:$0xe]
        %v1364 = vld [vmem:[#allocation2 + $0x4c] sm:$0xf]
        %v1365 = vld [vmem:[#allocation2 + $0x50] sm:$0x1]
        %v1366 = vld [vmem:[#allocation2 + $0x54] sm:$0xe]
        %v1367 = vld [vmem:[#allocation2 + $0x58] sm:$0xf]
        %v1368 = vld [vmem:[#allocation2 + $0x5c] sm:$0x1]
        %v1369 = vld [vmem:[#allocation2 + $0x60] sm:$0xe]
        %v1370 = vld [vmem:[#allocation2 + $0x64] sm:$0xf]
        %v1371 = vld [vmem:[#allocation2 + $0x68] sm:$0x1]
        %v1372 = vld [vmem:[#allocation2 + $0x6c] sm:$0xe]
        %v1373 = vld [vmem:[#allocation2 + $0x70] sm:$0xf]
        %v1374 = vld [vmem:[#allocation2 + $0x74] sm:$0x1]
        %v1375 = vld [vmem:[#allocation2 + $0x78] sm:$0xe]
        %v1376 = vld [vmem:[#allocation2 + $0x7c] sm:$0xf]
        %v1377 = vld [vmem:[#allocation2 + $0x80] sm:$0x1]
        %v1378 = vld [vmem:[#allocation2 + $0x84] sm:$0xe]
        %v1379 = vld [vmem:[#allocation2 + $0x88] sm:$0xf]
        %v1380 = vld [vmem:[#allocation2 + $0x8c] sm:$0x1]
        %v1381 = vld [vmem:[#allocation2 + $0x90] sm:$0xe]
        %v1382 = vld [vmem:[#allocation2 + $0x94] sm:$0xf]
        %v1383 = vld [vmem:[#allocation2 + $0x98] sm:$0x1]
        %v1384 = vld [vmem:[#allocation2 + $0x9c] sm:$0xe]
        %v1385 = vld [vmem:[#allocation2 + $0xa0] sm:$0xf]
        %v1386 = vld [vmem:[#allocation2 + $0xa4] sm:$0x1]
        %v1387 = vld [vmem:[#allocation2 + $0xa8] sm:$0xe]
        %v1388 = vld [vmem:[#allocation2 + $0xac] sm:$0xf]
        %v1389 = vld [vmem:[#allocation2 + $0xb0] sm:$0x1]
        %v1390 = vld [vmem:[#allocation2 + $0xb4] sm:$0xe]
        %v1391 = vld [vmem:[#allocation2 + $0xb8] sm:$0xf]
        %v1392 = vld [vmem:[#allocation2 + $0xbc] sm:$0x1]
        %v1441 = vunpack.c.l.b16 %v1345
        %v1442 = vunpack.c.l.b16 %v1346
        %v1443 = vunpack.c.l.b16 %v1347
        %v1444 = vunpack.c.l.b16 %v1348
        %v1445 = vunpack.c.l.b16 %v1349
        %v1446 = vunpack.c.l.b16 %v1350
        %v1447 = vunpack.c.l.b16 %v1351
        %v1448 = vunpack.c.l.b16 %v1352
        %v1449 = vunpack.c.l.b16 %v1353
        %v1450 = vunpack.c.l.b16 %v1354
        %v1451 = vunpack.c.l.b16 %v1355
        %v1452 = vunpack.c.l.b16 %v1356
        %v1453 = vunpack.c.l.b16 %v1357
        %v1454 = vunpack.c.l.b16 %v1358
        %v1455 = vunpack.c.l.b16 %v1359
        %v1456 = vunpack.c.l.b16 %v1360
        %v1457 = vunpack.c.l.b16 %v1361
        %v1458 = vunpack.c.l.b16 %v1362
        %v1459 = vunpack.c.l.b16 %v1363
        %v1460 = vunpack.c.l.b16 %v1364
        %v1461 = vunpack.c.l.b16 %v1365
        %v1462 = vunpack.c.l.b16 %v1366
        %v1463 = vunpack.c.l.b16 %v1367
        %v1464 = vunpack.c.l.b16 %v1368
        %v1465 = vunpack.c.l.b16 %v1369
        %v1466 = vunpack.c.l.b16 %v1370
        %v1467 = vunpack.c.l.b16 %v1371
        %v1468 = vunpack.c.l.b16 %v1372
        %v1469 = vunpack.c.l.b16 %v1373
        %v1470 = vunpack.c.l.b16 %v1374
        %v1471 = vunpack.c.l.b16 %v1375
        %v1472 = vunpack.c.l.b16 %v1376
        %v1473 = vunpack.c.l.b16 %v1377
        %v1474 = vunpack.c.l.b16 %v1378
        %v1475 = vunpack.c.l.b16 %v1379
        %v1476 = vunpack.c.l.b16 %v1380
        %v1477 = vunpack.c.l.b16 %v1381
        %v1478 = vunpack.c.l.b16 %v1382
        %v1479 = vunpack.c.l.b16 %v1383
        %v1480 = vunpack.c.l.b16 %v1384
        %v1481 = vunpack.c.l.b16 %v1385
        %v1482 = vunpack.c.l.b16 %v1386
        %v1483 = vunpack.c.l.b16 %v1387
        %v1484 = vunpack.c.l.b16 %v1388
        %v1485 = vunpack.c.l.b16 %v1389
        %v1486 = vunpack.c.l.b16 %v1390
        %v1487 = vunpack.c.l.b16 %v1391
        %v1488 = vunpack.c.l.b16 %v1392
        %v1489 = vpack.c.b16 %v1442, %v1441
        %v1490 = vpack.c.b16 %v1443, %v1443
        %v1491 = vpack.c.b16 %v1445, %v1444
        %v1492 = vpack.c.b16 %v1446, %v1446
        %v1493 = vpack.c.b16 %v1448, %v1447
        %v1494 = vpack.c.b16 %v1449, %v1449
        %v1495 = vpack.c.b16 %v1451, %v1450
        %v1496 = vpack.c.b16 %v1452, %v1452
        %v1497 = vpack.c.b16 %v1454, %v1453
        %v1498 = vpack.c.b16 %v1455, %v1455
        %v1499 = vpack.c.b16 %v1457, %v1456
        %v1500 = vpack.c.b16 %v1458, %v1458
        %v1501 = vpack.c.b16 %v1460, %v1459
        %v1502 = vpack.c.b16 %v1461, %v1461
        %v1503 = vpack.c.b16 %v1463, %v1462
        %v1504 = vpack.c.b16 %v1464, %v1464
        %v1505 = vpack.c.b16 %v1466, %v1465
        %v1506 = vpack.c.b16 %v1467, %v1467
        %v1507 = vpack.c.b16 %v1469, %v1468
        %v1508 = vpack.c.b16 %v1470, %v1470
        %v1509 = vpack.c.b16 %v1472, %v1471
        %v1510 = vpack.c.b16 %v1473, %v1473
        %v1511 = vpack.c.b16 %v1475, %v1474
        %v1512 = vpack.c.b16 %v1476, %v1476
        %v1513 = vpack.c.b16 %v1478, %v1477
        %v1514 = vpack.c.b16 %v1479, %v1479
        %v1515 = vpack.c.b16 %v1481, %v1480
        %v1516 = vpack.c.b16 %v1482, %v1482
        %v1517 = vpack.c.b16 %v1484, %v1483
        %v1518 = vpack.c.b16 %v1485, %v1485
        %v1519 = vpack.c.b16 %v1487, %v1486
        %v1520 = vpack.c.b16 %v1488, %v1488
        %vm1521 = vcmask 1046528
        %v1522 = vrot.slane %v1489, 1
        %v1523 = vrot.slane %v1490, 1
        %v1524 = vsel %vm1521, %v1522, %v1523
        %v1525 = vrot.slane %v1491, 1
        %v1526 = vrot.slane %v1492, 1
        %v1527 = vsel %vm1521, %v1525, %v1526
        %v1528 = vrot.slane %v1493, 1
        %v1529 = vrot.slane %v1494, 1
        %v1530 = vsel %vm1521, %v1528, %v1529
        %v1531 = vrot.slane %v1495, 1
        %v1532 = vrot.slane %v1496, 1
        %v1533 = vsel %vm1521, %v1531, %v1532
        %v1534 = vrot.slane %v1497, 1
        %v1535 = vrot.slane %v1498, 1
        %v1536 = vsel %vm1521, %v1534, %v1535
        %v1537 = vrot.slane %v1499, 1
        %v1538 = vrot.slane %v1500, 1
        %v1539 = vsel %vm1521, %v1537, %v1538
        %v1540 = vrot.slane %v1501, 1
        %v1541 = vrot.slane %v1502, 1
        %v1542 = vsel %vm1521, %v1540, %v1541
        %v1543 = vrot.slane %v1503, 1
        %v1544 = vrot.slane %v1504, 1
        %v1545 = vsel %vm1521, %v1543, %v1544
        %v1546 = vrot.slane %v1505, 1
        %v1547 = vrot.slane %v1506, 1
        %v1548 = vsel %vm1521, %v1546, %v1547
        %v1549 = vrot.slane %v1507, 1
        %v1550 = vrot.slane %v1508, 1
        %v1551 = vsel %vm1521, %v1549, %v1550
        %v1552 = vrot.slane %v1509, 1
        %v1553 = vrot.slane %v1510, 1
        %v1554 = vsel %vm1521, %v1552, %v1553
        %v1555 = vrot.slane %v1511, 1
        %v1556 = vrot.slane %v1512, 1
        %v1557 = vsel %vm1521, %v1555, %v1556
        %v1558 = vrot.slane %v1513, 1
        %v1559 = vrot.slane %v1514, 1
        %v1560 = vsel %vm1521, %v1558, %v1559
        %v1561 = vrot.slane %v1515, 1
        %v1562 = vrot.slane %v1516, 1
        %v1563 = vsel %vm1521, %v1561, %v1562
        %v1564 = vrot.slane %v1517, 1
        %v1565 = vrot.slane %v1518, 1
        %v1566 = vsel %vm1521, %v1564, %v1565
        %v1567 = vrot.slane %v1519, 1
        %v1568 = vrot.slane %v1520, 1
        %v1569 = vsel %vm1521, %v1567, %v1568
        %1570 = vrot.lane.b32.xlu0 %v1524, 6
        %v1571 = vpop.permute.xlu0 %1570
        %1572 = vrot.lane.b32.xlu0 %v1527, 6
        %v1573 = vpop.permute.xlu0 %1572
        %1574 = vrot.lane.b32.xlu0 %v1530, 6
        %v1575 = vpop.permute.xlu0 %1574
        %1576 = vrot.lane.b32.xlu0 %v1533, 6
        %v1577 = vpop.permute.xlu0 %1576
        %1578 = vrot.lane.b32.xlu0 %v1536, 6
        %v1579 = vpop.permute.xlu0 %1578
        %1580 = vrot.lane.b32.xlu0 %v1539, 6
        %v1581 = vpop.permute.xlu0 %1580
        %1582 = vrot.lane.b32.xlu0 %v1542, 6
        %v1583 = vpop.permute.xlu0 %1582
        %1584 = vrot.lane.b32.xlu0 %v1545, 6
        %v1585 = vpop.permute.xlu0 %1584
        %1586 = vrot.lane.b32.xlu0 %v1548, 6
        %v1587 = vpop.permute.xlu0 %1586
        %1588 = vrot.lane.b32.xlu0 %v1551, 6
        %v1589 = vpop.permute.xlu0 %1588
        %1590 = vrot.lane.b32.xlu0 %v1554, 6
        %v1591 = vpop.permute.xlu0 %1590
        %1592 = vrot.lane.b32.xlu0 %v1557, 6
        %v1593 = vpop.permute.xlu0 %1592
        %1594 = vrot.lane.b32.xlu0 %v1560, 6
        %v1595 = vpop.permute.xlu0 %1594
        %1596 = vrot.lane.b32.xlu0 %v1563, 6
        %v1597 = vpop.permute.xlu0 %1596
        %1598 = vrot.lane.b32.xlu0 %v1566, 6
        %v1599 = vpop.permute.xlu0 %1598
        %1600 = vrot.lane.b32.xlu0 %v1569, 6
        %v1601 = vpop.permute.xlu0 %1600
        %vm1618 = vcmask 72752
        %1619 = vst.msk [vmem:[#allocation3] sm:$0xff] %vm1618, %v1571
        %1620 = vst.msk [vmem:[#allocation3 + $0x8] sm:$0xff] %vm1618, %v1573
        %1621 = vst.msk [vmem:[#allocation3 + $0x10] sm:$0xff] %vm1618, %v1575
        %1622 = vst.msk [vmem:[#allocation3 + $0x18] sm:$0xff] %vm1618, %v1577
        %1623 = vst.msk [vmem:[#allocation3 + $0x20] sm:$0xff] %vm1618, %v1579
        %1624 = vst.msk [vmem:[#allocation3 + $0x28] sm:$0xff] %vm1618, %v1581
        %1625 = vst.msk [vmem:[#allocation3 + $0x30] sm:$0xff] %vm1618, %v1583
        %1626 = vst.msk [vmem:[#allocation3 + $0x38] sm:$0xff] %vm1618, %v1585
        %1627 = vst.msk [vmem:[#allocation3 + $0x40] sm:$0xff] %vm1618, %v1587
        %1628 = vst.msk [vmem:[#allocation3 + $0x48] sm:$0xff] %vm1618, %v1589
        %1629 = vst.msk [vmem:[#allocation3 + $0x50] sm:$0xff] %vm1618, %v1591
        %1630 = vst.msk [vmem:[#allocation3 + $0x58] sm:$0xff] %vm1618, %v1593
        %1631 = vst.msk [vmem:[#allocation3 + $0x60] sm:$0xff] %vm1618, %v1595
        %1632 = vst.msk [vmem:[#allocation3 + $0x68] sm:$0xff] %vm1618, %v1597
        %1633 = vst.msk [vmem:[#allocation3 + $0x70] sm:$0xff] %vm1618, %v1599
        %1634 = vst.msk [vmem:[#allocation3 + $0x78] sm:$0xff] %vm1618, %v1601
        %v1635 = vld [vmem:[%s646] sm:$0xf]
        %v1636 = vld [vmem:[%s646 + $0x4] sm:$0xf]
        %v1637 = vld [vmem:[%s646 + $0xc] sm:$0xf]
        %v1638 = vld [vmem:[%s646 + $0x10] sm:$0xf]
        %v1639 = vld [vmem:[%s646 + $0x18] sm:$0xf]
        %v1640 = vld [vmem:[%s646 + $0x1c] sm:$0xf]
        %v1641 = vld [vmem:[%s646 + $0x24] sm:$0xf]
        %v1642 = vld [vmem:[%s646 + $0x28] sm:$0xf]
        %v1643 = vld [vmem:[%s646 + $0x30] sm:$0xf]
        %v1644 = vld [vmem:[%s646 + $0x34] sm:$0xf]
        %v1645 = vld [vmem:[%s646 + $0x3c] sm:$0xf]
        %v1646 = vld [vmem:[%s646 + $0x40] sm:$0xf]
        %v1647 = vld [vmem:[%s646 + $0x48] sm:$0xf]
        %v1648 = vld [vmem:[%s646 + $0x4c] sm:$0xf]
        %v1649 = vld [vmem:[%s646 + $0x54] sm:$0xf]
        %v1650 = vld [vmem:[%s646 + $0x58] sm:$0xf]
        %v1651 = vld [vmem:[%s646 + $0x60] sm:$0xf]
        %v1652 = vld [vmem:[%s646 + $0x64] sm:$0xf]
        %v1653 = vld [vmem:[%s646 + $0x6c] sm:$0xf]
        %v1654 = vld [vmem:[%s646 + $0x70] sm:$0xf]
        %v1655 = vld [vmem:[%s646 + $0x78] sm:$0xf]
        %v1656 = vld [vmem:[%s646 + $0x7c] sm:$0xf]
        %v1657 = vld [vmem:[%s646 + $0x84] sm:$0xf]
        %v1658 = vld [vmem:[%s646 + $0x88] sm:$0xf]
        %v1659 = vld [vmem:[%s646 + $0x90] sm:$0xf]
        %v1660 = vld [vmem:[%s646 + $0x94] sm:$0xf]
        %v1661 = vld [vmem:[%s646 + $0x9c] sm:$0xf]
        %v1662 = vld [vmem:[%s646 + $0xa0] sm:$0xf]
        %v1663 = vld [vmem:[%s646 + $0xa8] sm:$0xf]
        %v1664 = vld [vmem:[%s646 + $0xac] sm:$0xf]
        %v1665 = vld [vmem:[%s646 + $0xb4] sm:$0xf]
        %v1666 = vld [vmem:[%s646 + $0xb8] sm:$0xf]
        %v1699 = vunpack.c.l.b16 %v1635
        %v1700 = vunpack.c.l.b16 %v1636
        %v1701 = vunpack.c.l.b16 %v1637
        %v1702 = vunpack.c.l.b16 %v1638
        %v1703 = vunpack.c.l.b16 %v1639
        %v1704 = vunpack.c.l.b16 %v1640
        %v1705 = vunpack.c.l.b16 %v1641
        %v1706 = vunpack.c.l.b16 %v1642
        %v1707 = vunpack.c.l.b16 %v1643
        %v1708 = vunpack.c.l.b16 %v1644
        %v1709 = vunpack.c.l.b16 %v1645
        %v1710 = vunpack.c.l.b16 %v1646
        %v1711 = vunpack.c.l.b16 %v1647
        %v1712 = vunpack.c.l.b16 %v1648
        %v1713 = vunpack.c.l.b16 %v1649
        %v1714 = vunpack.c.l.b16 %v1650
        %v1715 = vunpack.c.l.b16 %v1651
        %v1716 = vunpack.c.l.b16 %v1652
        %v1717 = vunpack.c.l.b16 %v1653
        %v1718 = vunpack.c.l.b16 %v1654
        %v1719 = vunpack.c.l.b16 %v1655
        %v1720 = vunpack.c.l.b16 %v1656
        %v1721 = vunpack.c.l.b16 %v1657
        %v1722 = vunpack.c.l.b16 %v1658
        %v1723 = vunpack.c.l.b16 %v1659
        %v1724 = vunpack.c.l.b16 %v1660
        %v1725 = vunpack.c.l.b16 %v1661
        %v1726 = vunpack.c.l.b16 %v1662
        %v1727 = vunpack.c.l.b16 %v1663
        %v1728 = vunpack.c.l.b16 %v1664
        %v1729 = vunpack.c.l.b16 %v1665
        %v1730 = vunpack.c.l.b16 %v1666
        %v1731 = vpack.c.b16 %v1700, %v1699
        %v1732 = vpack.c.b16 %v1702, %v1701
        %v1733 = vpack.c.b16 %v1704, %v1703
        %v1734 = vpack.c.b16 %v1706, %v1705
        %v1735 = vpack.c.b16 %v1708, %v1707
        %v1736 = vpack.c.b16 %v1710, %v1709
        %v1737 = vpack.c.b16 %v1712, %v1711
        %v1738 = vpack.c.b16 %v1714, %v1713
        %v1739 = vpack.c.b16 %v1716, %v1715
        %v1740 = vpack.c.b16 %v1718, %v1717
        %v1741 = vpack.c.b16 %v1720, %v1719
        %v1742 = vpack.c.b16 %v1722, %v1721
        %v1743 = vpack.c.b16 %v1724, %v1723
        %v1744 = vpack.c.b16 %v1726, %v1725
        %v1745 = vpack.c.b16 %v1728, %v1727
        %v1746 = vpack.c.b16 %v1730, %v1729
        %1747 = vrot.lane.b32.xlu0 %v1731, 9
        %v1748 = vpop.permute.xlu0 %1747
        %1749 = vrot.lane.b32.xlu0 %v1732, 9
        %v1750 = vpop.permute.xlu0 %1749
        %1751 = vrot.lane.b32.xlu0 %v1733, 9
        %v1752 = vpop.permute.xlu0 %1751
        %1753 = vrot.lane.b32.xlu0 %v1734, 9
        %v1754 = vpop.permute.xlu0 %1753
        %1755 = vrot.lane.b32.xlu0 %v1735, 9
        %v1756 = vpop.permute.xlu0 %1755
        %1757 = vrot.lane.b32.xlu0 %v1736, 9
        %v1758 = vpop.permute.xlu0 %1757
        %1759 = vrot.lane.b32.xlu0 %v1737, 9
        %v1760 = vpop.permute.xlu0 %1759
        %1761 = vrot.lane.b32.xlu0 %v1738, 9
        %v1762 = vpop.permute.xlu0 %1761
        %1763 = vrot.lane.b32.xlu0 %v1739, 9
        %v1764 = vpop.permute.xlu0 %1763
        %1765 = vrot.lane.b32.xlu0 %v1740, 9
        %v1766 = vpop.permute.xlu0 %1765
        %1767 = vrot.lane.b32.xlu0 %v1741, 9
        %v1768 = vpop.permute.xlu0 %1767
        %1769 = vrot.lane.b32.xlu0 %v1742, 9
        %v1770 = vpop.permute.xlu0 %1769
        %1771 = vrot.lane.b32.xlu0 %v1743, 9
        %v1772 = vpop.permute.xlu0 %1771
        %1773 = vrot.lane.b32.xlu0 %v1744, 9
        %v1774 = vpop.permute.xlu0 %1773
        %1775 = vrot.lane.b32.xlu0 %v1745, 9
        %v1776 = vpop.permute.xlu0 %1775
        %1777 = vrot.lane.b32.xlu0 %v1746, 9
        %v1778 = vpop.permute.xlu0 %1777
        %vm1795 = vcmask 97352
        %1796 = vst.msk [vmem:[#allocation3] sm:$0xff] %vm1795, %v1748
        %1797 = vst.msk [vmem:[#allocation3 + $0x8] sm:$0xff] %vm1795, %v1750
        %1798 = vst.msk [vmem:[#allocation3 + $0x10] sm:$0xff] %vm1795, %v1752
        %1799 = vst.msk [vmem:[#allocation3 + $0x18] sm:$0xff] %vm1795, %v1754
        %1800 = vst.msk [vmem:[#allocation3 + $0x20] sm:$0xff] %vm1795, %v1756
        %1801 = vst.msk [vmem:[#allocation3 + $0x28] sm:$0xff] %vm1795, %v1758
        %1802 = vst.msk [vmem:[#allocation3 + $0x30] sm:$0xff] %vm1795, %v1760
        %1803 = vst.msk [vmem:[#allocation3 + $0x38] sm:$0xff] %vm1795, %v1762
        %1804 = vst.msk [vmem:[#allocation3 + $0x40] sm:$0xff] %vm1795, %v1764
        %1805 = vst.msk [vmem:[#allocation3 + $0x48] sm:$0xff] %vm1795, %v1766
        %1806 = vst.msk [vmem:[#allocation3 + $0x50] sm:$0xff] %vm1795, %v1768
        %1807 = vst.msk [vmem:[#allocation3 + $0x58] sm:$0xff] %vm1795, %v1770
        %1808 = vst.msk [vmem:[#allocation3 + $0x60] sm:$0xff] %vm1795, %v1772
        %1809 = vst.msk [vmem:[#allocation3 + $0x68] sm:$0xff] %vm1795, %v1774
        %1810 = vst.msk [vmem:[#allocation3 + $0x70] sm:$0xff] %vm1795, %v1776
        %1811 = vst.msk [vmem:[#allocation3 + $0x78] sm:$0xff] %vm1795, %v1778
        %v1812 = vld [vmem:[%s646] sm:$0xf]
        %v1813 = vld [vmem:[%s646 + $0x4] sm:$0xf]
        %v1814 = vld [vmem:[%s646 + $0x8] sm:$0x1]
        %v1815 = vld [vmem:[%s646 + $0xc] sm:$0xf]
        %v1816 = vld [vmem:[%s646 + $0x10] sm:$0xf]
        %v1817 = vld [vmem:[%s646 + $0x14] sm:$0x1]
        %v1818 = vld [vmem:[%s646 + $0x18] sm:$0xf]
        %v1819 = vld [vmem:[%s646 + $0x1c] sm:$0xf]
        %v1820 = vld [vmem:[%s646 + $0x20] sm:$0x1]
        %v1821 = vld [vmem:[%s646 + $0x24] sm:$0xf]
        %v1822 = vld [vmem:[%s646 + $0x28] sm:$0xf]
        %v1823 = vld [vmem:[%s646 + $0x2c] sm:$0x1]
        %v1824 = vld [vmem:[%s646 + $0x30] sm:$0xf]
        %v1825 = vld [vmem:[%s646 + $0x34] sm:$0xf]
        %v1826 = vld [vmem:[%s646 + $0x38] sm:$0x1]
        %v1827 = vld [vmem:[%s646 + $0x3c] sm:$0xf]
        %v1828 = vld [vmem:[%s646 + $0x40] sm:$0xf]
        %v1829 = vld [vmem:[%s646 + $0x44] sm:$0x1]
        %v1830 = vld [vmem:[%s646 + $0x48] sm:$0xf]
        %v1831 = vld [vmem:[%s646 + $0x4c] sm:$0xf]
        %v1832 = vld [vmem:[%s646 + $0x50] sm:$0x1]
        %v1833 = vld [vmem:[%s646 + $0x54] sm:$0xf]
        %v1834 = vld [vmem:[%s646 + $0x58] sm:$0xf]
        %v1835 = vld [vmem:[%s646 + $0x5c] sm:$0x1]
        %v1836 = vld [vmem:[%s646 + $0x60] sm:$0xf]
        %v1837 = vld [vmem:[%s646 + $0x64] sm:$0xf]
        %v1838 = vld [vmem:[%s646 + $0x68] sm:$0x1]
        %v1839 = vld [vmem:[%s646 + $0x6c] sm:$0xf]
        %v1840 = vld [vmem:[%s646 + $0x70] sm:$0xf]
        %v1841 = vld [vmem:[%s646 + $0x74] sm:$0x1]
        %v1842 = vld [vmem:[%s646 + $0x78] sm:$0xf]
        %v1843 = vld [vmem:[%s646 + $0x7c] sm:$0xf]
        %v1844 = vld [vmem:[%s646 + $0x80] sm:$0x1]
        %v1845 = vld [vmem:[%s646 + $0x84] sm:$0xf]
        %v1846 = vld [vmem:[%s646 + $0x88] sm:$0xf]
        %v1847 = vld [vmem:[%s646 + $0x8c] sm:$0x1]
        %v1848 = vld [vmem:[%s646 + $0x90] sm:$0xf]
        %v1849 = vld [vmem:[%s646 + $0x94] sm:$0xf]
        %v1850 = vld [vmem:[%s646 + $0x98] sm:$0x1]
        %v1851 = vld [vmem:[%s646 + $0x9c] sm:$0xf]
        %v1852 = vld [vmem:[%s646 + $0xa0] sm:$0xf]
        %v1853 = vld [vmem:[%s646 + $0xa4] sm:$0x1]
        %v1854 = vld [vmem:[%s646 + $0xa8] sm:$0xf]
        %v1855 = vld [vmem:[%s646 + $0xac] sm:$0xf]
        %v1856 = vld [vmem:[%s646 + $0xb0] sm:$0x1]
        %v1857 = vld [vmem:[%s646 + $0xb4] sm:$0xf]
        %v1858 = vld [vmem:[%s646 + $0xb8] sm:$0xf]
        %v1859 = vld [vmem:[%s646 + $0xbc] sm:$0x1]
        %v1908 = vunpack.c.l.b16 %v1812
        %v1909 = vunpack.c.l.b16 %v1813
        %v1910 = vunpack.c.l.b16 %v1814
        %v1911 = vunpack.c.l.b16 %v1815
        %v1912 = vunpack.c.l.b16 %v1816
        %v1913 = vunpack.c.l.b16 %v1817
        %v1914 = vunpack.c.l.b16 %v1818
        %v1915 = vunpack.c.l.b16 %v1819
        %v1916 = vunpack.c.l.b16 %v1820
        %v1917 = vunpack.c.l.b16 %v1821
        %v1918 = vunpack.c.l.b16 %v1822
        %v1919 = vunpack.c.l.b16 %v1823
        %v1920 = vunpack.c.l.b16 %v1824
        %v1921 = vunpack.c.l.b16 %v1825
        %v1922 = vunpack.c.l.b16 %v1826
        %v1923 = vunpack.c.l.b16 %v1827
        %v1924 = vunpack.c.l.b16 %v1828
        %v1925 = vunpack.c.l.b16 %v1829
        %v1926 = vunpack.c.l.b16 %v1830
        %v1927 = vunpack.c.l.b16 %v1831
        %v1928 = vunpack.c.l.b16 %v1832
        %v1929 = vunpack.c.l.b16 %v1833
        %v1930 = vunpack.c.l.b16 %v1834
        %v1931 = vunpack.c.l.b16 %v1835
        %v1932 = vunpack.c.l.b16 %v1836
        %v1933 = vunpack.c.l.b16 %v1837
        %v1934 = vunpack.c.l.b16 %v1838
        %v1935 = vunpack.c.l.b16 %v1839
        %v1936 = vunpack.c.l.b16 %v1840
        %v1937 = vunpack.c.l.b16 %v1841
        %v1938 = vunpack.c.l.b16 %v1842
        %v1939 = vunpack.c.l.b16 %v1843
        %v1940 = vunpack.c.l.b16 %v1844
        %v1941 = vunpack.c.l.b16 %v1845
        %v1942 = vunpack.c.l.b16 %v1846
        %v1943 = vunpack.c.l.b16 %v1847
        %v1944 = vunpack.c.l.b16 %v1848
        %v1945 = vunpack.c.l.b16 %v1849
        %v1946 = vunpack.c.l.b16 %v1850
        %v1947 = vunpack.c.l.b16 %v1851
        %v1948 = vunpack.c.l.b16 %v1852
        %v1949 = vunpack.c.l.b16 %v1853
        %v1950 = vunpack.c.l.b16 %v1854
        %v1951 = vunpack.c.l.b16 %v1855
        %v1952 = vunpack.c.l.b16 %v1856
        %v1953 = vunpack.c.l.b16 %v1857
        %v1954 = vunpack.c.l.b16 %v1858
        %v1955 = vunpack.c.l.b16 %v1859
        %v1956 = vpack.c.b16 %v1909, %v1908
        %v1957 = vpack.c.b16 %v1910, %v1910
        %v1958 = vpack.c.b16 %v1912, %v1911
        %v1959 = vpack.c.b16 %v1913, %v1913
        %v1960 = vpack.c.b16 %v1915, %v1914
        %v1961 = vpack.c.b16 %v1916, %v1916
        %v1962 = vpack.c.b16 %v1918, %v1917
        %v1963 = vpack.c.b16 %v1919, %v1919
        %v1964 = vpack.c.b16 %v1921, %v1920
        %v1965 = vpack.c.b16 %v1922, %v1922
        %v1966 = vpack.c.b16 %v1924, %v1923
        %v1967 = vpack.c.b16 %v1925, %v1925
        %v1968 = vpack.c.b16 %v1927, %v1926
        %v1969 = vpack.c.b16 %v1928, %v1928
        %v1970 = vpack.c.b16 %v1930, %v1929
        %v1971 = vpack.c.b16 %v1931, %v1931
        %v1972 = vpack.c.b16 %v1933, %v1932
        %v1973 = vpack.c.b16 %v1934, %v1934
        %v1974 = vpack.c.b16 %v1936, %v1935
        %v1975 = vpack.c.b16 %v1937, %v1937
        %v1976 = vpack.c.b16 %v1939, %v1938
        %v1977 = vpack.c.b16 %v1940, %v1940
        %v1978 = vpack.c.b16 %v1942, %v1941
        %v1979 = vpack.c.b16 %v1943, %v1943
        %v1980 = vpack.c.b16 %v1945, %v1944
        %v1981 = vpack.c.b16 %v1946, %v1946
        %v1982 = vpack.c.b16 %v1948, %v1947
        %v1983 = vpack.c.b16 %v1949, %v1949
        %v1984 = vpack.c.b16 %v1951, %v1950
        %v1985 = vpack.c.b16 %v1952, %v1952
        %v1986 = vpack.c.b16 %v1954, %v1953
        %v1987 = vpack.c.b16 %v1955, %v1955
        %v1989 = vshrl.u32 %v1956, 16
        %v1991 = vshll.u32 %v1956, 16
        %v1993 = vrot.slane %v1991, 1
        %v1994 = vor.u32 %v1989, %v1993
        %v1996 = vshll.u32 %v1957, 16
        %v1998 = vrot.slane %v1996, 1
        %v1999 = vsel %vm1087, %v1994, %v1998
        %v2001 = vshrl.u32 %v1958, 16
        %v2003 = vshll.u32 %v1958, 16
        %v2005 = vrot.slane %v2003, 1
        %v2006 = vor.u32 %v2001, %v2005
        %v2008 = vshll.u32 %v1959, 16
        %v2010 = vrot.slane %v2008, 1
        %v2011 = vsel %vm1087, %v2006, %v2010
        %v2013 = vshrl.u32 %v1960, 16
        %v2015 = vshll.u32 %v1960, 16
        %v2017 = vrot.slane %v2015, 1
        %v2018 = vor.u32 %v2013, %v2017
        %v2020 = vshll.u32 %v1961, 16
        %v2022 = vrot.slane %v2020, 1
        %v2023 = vsel %vm1087, %v2018, %v2022
        %v2025 = vshrl.u32 %v1962, 16
        %v2027 = vshll.u32 %v1962, 16
        %v2029 = vrot.slane %v2027, 1
        %v2030 = vor.u32 %v2025, %v2029
        %v2032 = vshll.u32 %v1963, 16
        %v2034 = vrot.slane %v2032, 1
        %v2035 = vsel %vm1087, %v2030, %v2034
        %v2037 = vshrl.u32 %v1964, 16
        %v2039 = vshll.u32 %v1964, 16
        %v2041 = vrot.slane %v2039, 1
        %v2042 = vor.u32 %v2037, %v2041
        %v2044 = vshll.u32 %v1965, 16
        %v2046 = vrot.slane %v2044, 1
        %v2047 = vsel %vm1087, %v2042, %v2046
        %v2049 = vshrl.u32 %v1966, 16
        %v2051 = vshll.u32 %v1966, 16
        %v2053 = vrot.slane %v2051, 1
        %v2054 = vor.u32 %v2049, %v2053
        %v2056 = vshll.u32 %v1967, 16
        %v2058 = vrot.slane %v2056, 1
        %v2059 = vsel %vm1087, %v2054, %v2058
        %v2061 = vshrl.u32 %v1968, 16
        %v2063 = vshll.u32 %v1968, 16
        %v2065 = vrot.slane %v2063, 1
        %v2066 = vor.u32 %v2061, %v2065
        %v2068 = vshll.u32 %v1969, 16
        %v2070 = vrot.slane %v2068, 1
        %v2071 = vsel %vm1087, %v2066, %v2070
        %v2073 = vshrl.u32 %v1970, 16
        %v2075 = vshll.u32 %v1970, 16
        %v2077 = vrot.slane %v2075, 1
        %v2078 = vor.u32 %v2073, %v2077
        %v2080 = vshll.u32 %v1971, 16
        %v2082 = vrot.slane %v2080, 1
        %v2083 = vsel %vm1087, %v2078, %v2082
        %v2085 = vshrl.u32 %v1972, 16
        %v2087 = vshll.u32 %v1972, 16
        %v2089 = vrot.slane %v2087, 1
        %v2090 = vor.u32 %v2085, %v2089
        %v2092 = vshll.u32 %v1973, 16
        %v2094 = vrot.slane %v2092, 1
        %v2095 = vsel %vm1087, %v2090, %v2094
        %v2097 = vshrl.u32 %v1974, 16
        %v2099 = vshll.u32 %v1974, 16
        %v2101 = vrot.slane %v2099, 1
        %v2102 = vor.u32 %v2097, %v2101
        %v2104 = vshll.u32 %v1975, 16
        %v2106 = vrot.slane %v2104, 1
        %v2107 = vsel %vm1087, %v2102, %v2106
        %v2109 = vshrl.u32 %v1976, 16
        %v2111 = vshll.u32 %v1976, 16
        %v2113 = vrot.slane %v2111, 1
        %v2114 = vor.u32 %v2109, %v2113
        %v2116 = vshll.u32 %v1977, 16
        %v2118 = vrot.slane %v2116, 1
        %v2119 = vsel %vm1087, %v2114, %v2118
        %v2121 = vshrl.u32 %v1978, 16
        %v2123 = vshll.u32 %v1978, 16
        %v2125 = vrot.slane %v2123, 1
        %v2126 = vor.u32 %v2121, %v2125
        %v2128 = vshll.u32 %v1979, 16
        %v2130 = vrot.slane %v2128, 1
        %v2131 = vsel %vm1087, %v2126, %v2130
        %v2133 = vshrl.u32 %v1980, 16
        %v2135 = vshll.u32 %v1980, 16
        %v2137 = vrot.slane %v2135, 1
        %v2138 = vor.u32 %v2133, %v2137
        %v2140 = vshll.u32 %v1981, 16
        %v2142 = vrot.slane %v2140, 1
        %v2143 = vsel %vm1087, %v2138, %v2142
        %v2145 = vshrl.u32 %v1982, 16
        %v2147 = vshll.u32 %v1982, 16
        %v2149 = vrot.slane %v2147, 1
        %v2150 = vor.u32 %v2145, %v2149
        %v2152 = vshll.u32 %v1983, 16
        %v2154 = vrot.slane %v2152, 1
        %v2155 = vsel %vm1087, %v2150, %v2154
        %v2157 = vshrl.u32 %v1984, 16
        %v2159 = vshll.u32 %v1984, 16
        %v2161 = vrot.slane %v2159, 1
        %v2162 = vor.u32 %v2157, %v2161
        %v2164 = vshll.u32 %v1985, 16
        %v2166 = vrot.slane %v2164, 1
        %v2167 = vsel %vm1087, %v2162, %v2166
        %v2169 = vshrl.u32 %v1986, 16
        %v2171 = vshll.u32 %v1986, 16
        %v2173 = vrot.slane %v2171, 1
        %v2174 = vor.u32 %v2169, %v2173
        %v2176 = vshll.u32 %v1987, 16
        %v2178 = vrot.slane %v2176, 1
        %v2179 = vsel %vm1087, %v2174, %v2178
        %2180 = vrot.lane.b32.xlu0 %v1999, 12
        %v2181 = vpop.permute.xlu0 %2180
        %2182 = vrot.lane.b32.xlu0 %v2011, 12
        %v2183 = vpop.permute.xlu0 %2182
        %2184 = vrot.lane.b32.xlu0 %v2023, 12
        %v2185 = vpop.permute.xlu0 %2184
        %2186 = vrot.lane.b32.xlu0 %v2035, 12
        %v2187 = vpop.permute.xlu0 %2186
        %2188 = vrot.lane.b32.xlu0 %v2047, 12
        %v2189 = vpop.permute.xlu0 %2188
        %2190 = vrot.lane.b32.xlu0 %v2059, 12
        %v2191 = vpop.permute.xlu0 %2190
        %2192 = vrot.lane.b32.xlu0 %v2071, 12
        %v2193 = vpop.permute.xlu0 %2192
        %2194 = vrot.lane.b32.xlu0 %v2083, 12
        %v2195 = vpop.permute.xlu0 %2194
        %2196 = vrot.lane.b32.xlu0 %v2095, 12
        %v2197 = vpop.permute.xlu0 %2196
        %2198 = vrot.lane.b32.xlu0 %v2107, 12
        %v2199 = vpop.permute.xlu0 %2198
        %2200 = vrot.lane.b32.xlu0 %v2119, 12
        %v2201 = vpop.permute.xlu0 %2200
        %2202 = vrot.lane.b32.xlu0 %v2131, 12
        %v2203 = vpop.permute.xlu0 %2202
        %2204 = vrot.lane.b32.xlu0 %v2143, 12
        %v2205 = vpop.permute.xlu0 %2204
        %2206 = vrot.lane.b32.xlu0 %v2155, 12
        %v2207 = vpop.permute.xlu0 %2206
        %2208 = vrot.lane.b32.xlu0 %v2167, 12
        %v2209 = vpop.permute.xlu0 %2208
        %2210 = vrot.lane.b32.xlu0 %v2179, 12
        %v2211 = vpop.permute.xlu0 %2210
        %vm2228 = vcmask 121952
        %2229 = vst.msk [vmem:[#allocation3] sm:$0xff] %vm2228, %v2181
        %2230 = vst.msk [vmem:[#allocation3 + $0x8] sm:$0xff] %vm2228, %v2183
        %2231 = vst.msk [vmem:[#allocation3 + $0x10] sm:$0xff] %vm2228, %v2185
        %2232 = vst.msk [vmem:[#allocation3 + $0x18] sm:$0xff] %vm2228, %v2187
        %2233 = vst.msk [vmem:[#allocation3 + $0x20] sm:$0xff] %vm2228, %v2189
        %2234 = vst.msk [vmem:[#allocation3 + $0x28] sm:$0xff] %vm2228, %v2191
        %2235 = vst.msk [vmem:[#allocation3 + $0x30] sm:$0xff] %vm2228, %v2193
        %2236 = vst.msk [vmem:[#allocation3 + $0x38] sm:$0xff] %vm2228, %v2195
        %2237 = vst.msk [vmem:[#allocation3 + $0x40] sm:$0xff] %vm2228, %v2197
        %2238 = vst.msk [vmem:[#allocation3 + $0x48] sm:$0xff] %vm2228, %v2199
        %2239 = vst.msk [vmem:[#allocation3 + $0x50] sm:$0xff] %vm2228, %v2201
        %2240 = vst.msk [vmem:[#allocation3 + $0x58] sm:$0xff] %vm2228, %v2203
        %2241 = vst.msk [vmem:[#allocation3 + $0x60] sm:$0xff] %vm2228, %v2205
        %2242 = vst.msk [vmem:[#allocation3 + $0x68] sm:$0xff] %vm2228, %v2207
        %2243 = vst.msk [vmem:[#allocation3 + $0x70] sm:$0xff] %vm2228, %v2209
        %2244 = vst.msk [vmem:[#allocation3 + $0x78] sm:$0xff] %vm2228, %v2211
        %v2245 = vld [vmem:[%s646] sm:$0xe]
        %v2246 = vld [vmem:[%s646 + $0x4] sm:$0xf]
        %v2247 = vld [vmem:[%s646 + $0x8] sm:$0x1]
        %v2248 = vld [vmem:[%s646 + $0xc] sm:$0xe]
        %v2249 = vld [vmem:[%s646 + $0x10] sm:$0xf]
        %v2250 = vld [vmem:[%s646 + $0x14] sm:$0x1]
        %v2251 = vld [vmem:[%s646 + $0x18] sm:$0xe]
        %v2252 = vld [vmem:[%s646 + $0x1c] sm:$0xf]
        %v2253 = vld [vmem:[%s646 + $0x20] sm:$0x1]
        %v2254 = vld [vmem:[%s646 + $0x24] sm:$0xe]
        %v2255 = vld [vmem:[%s646 + $0x28] sm:$0xf]
        %v2256 = vld [vmem:[%s646 + $0x2c] sm:$0x1]
        %v2257 = vld [vmem:[%s646 + $0x30] sm:$0xe]
        %v2258 = vld [vmem:[%s646 + $0x34] sm:$0xf]
        %v2259 = vld [vmem:[%s646 + $0x38] sm:$0x1]
        %v2260 = vld [vmem:[%s646 + $0x3c] sm:$0xe]
        %v2261 = vld [vmem:[%s646 + $0x40] sm:$0xf]
        %v2262 = vld [vmem:[%s646 + $0x44] sm:$0x1]
        %v2263 = vld [vmem:[%s646 + $0x48] sm:$0xe]
        %v2264 = vld [vmem:[%s646 + $0x4c] sm:$0xf]
        %v2265 = vld [vmem:[%s646 + $0x50] sm:$0x1]
        %v2266 = vld [vmem:[%s646 + $0x54] sm:$0xe]
        %v2267 = vld [vmem:[%s646 + $0x58] sm:$0xf]
        %v2268 = vld [vmem:[%s646 + $0x5c] sm:$0x1]
        %v2269 = vld [vmem:[%s646 + $0x60] sm:$0xe]
        %v2270 = vld [vmem:[%s646 + $0x64] sm:$0xf]
        %v2271 = vld [vmem:[%s646 + $0x68] sm:$0x1]
        %v2272 = vld [vmem:[%s646 + $0x6c] sm:$0xe]
        %v2273 = vld [vmem:[%s646 + $0x70] sm:$0xf]
        %v2274 = vld [vmem:[%s646 + $0x74] sm:$0x1]
        %v2275 = vld [vmem:[%s646 + $0x78] sm:$0xe]
        %v2276 = vld [vmem:[%s646 + $0x7c] sm:$0xf]
        %v2277 = vld [vmem:[%s646 + $0x80] sm:$0x1]
        %v2278 = vld [vmem:[%s646 + $0x84] sm:$0xe]
        %v2279 = vld [vmem:[%s646 + $0x88] sm:$0xf]
        %v2280 = vld [vmem:[%s646 + $0x8c] sm:$0x1]
        %v2281 = vld [vmem:[%s646 + $0x90] sm:$0xe]
        %v2282 = vld [vmem:[%s646 + $0x94] sm:$0xf]
        %v2283 = vld [vmem:[%s646 + $0x98] sm:$0x1]
        %v2284 = vld [vmem:[%s646 + $0x9c] sm:$0xe]
        %v2285 = vld [vmem:[%s646 + $0xa0] sm:$0xf]
        %v2286 = vld [vmem:[%s646 + $0xa4] sm:$0x1]
        %v2287 = vld [vmem:[%s646 + $0xa8] sm:$0xe]
        %v2288 = vld [vmem:[%s646 + $0xac] sm:$0xf]
        %v2289 = vld [vmem:[%s646 + $0xb0] sm:$0x1]
        %v2290 = vld [vmem:[%s646 + $0xb4] sm:$0xe]
        %v2291 = vld [vmem:[%s646 + $0xb8] sm:$0xf]
        %v2292 = vld [vmem:[%s646 + $0xbc] sm:$0x1]
        %v2341 = vunpack.c.l.b16 %v2245
        %v2342 = vunpack.c.l.b16 %v2246
        %v2343 = vunpack.c.l.b16 %v2247
        %v2344 = vunpack.c.l.b16 %v2248
        %v2345 = vunpack.c.l.b16 %v2249
        %v2346 = vunpack.c.l.b16 %v2250
        %v2347 = vunpack.c.l.b16 %v2251
        %v2348 = vunpack.c.l.b16 %v2252
        %v2349 = vunpack.c.l.b16 %v2253
        %v2350 = vunpack.c.l.b16 %v2254
        %v2351 = vunpack.c.l.b16 %v2255
        %v2352 = vunpack.c.l.b16 %v2256
        %v2353 = vunpack.c.l.b16 %v2257
        %v2354 = vunpack.c.l.b16 %v2258
        %v2355 = vunpack.c.l.b16 %v2259
        %v2356 = vunpack.c.l.b16 %v2260
        %v2357 = vunpack.c.l.b16 %v2261
        %v2358 = vunpack.c.l.b16 %v2262
        %v2359 = vunpack.c.l.b16 %v2263
        %v2360 = vunpack.c.l.b16 %v2264
        %v2361 = vunpack.c.l.b16 %v2265
        %v2362 = vunpack.c.l.b16 %v2266
        %v2363 = vunpack.c.l.b16 %v2267
        %v2364 = vunpack.c.l.b16 %v2268
        %v2365 = vunpack.c.l.b16 %v2269
        %v2366 = vunpack.c.l.b16 %v2270
        %v2367 = vunpack.c.l.b16 %v2271
        %v2368 = vunpack.c.l.b16 %v2272
        %v2369 = vunpack.c.l.b16 %v2273
        %v2370 = vunpack.c.l.b16 %v2274
        %v2371 = vunpack.c.l.b16 %v2275
        %v2372 = vunpack.c.l.b16 %v2276
        %v2373 = vunpack.c.l.b16 %v2277
        %v2374 = vunpack.c.l.b16 %v2278
        %v2375 = vunpack.c.l.b16 %v2279
        %v2376 = vunpack.c.l.b16 %v2280
        %v2377 = vunpack.c.l.b16 %v2281
        %v2378 = vunpack.c.l.b16 %v2282
        %v2379 = vunpack.c.l.b16 %v2283
        %v2380 = vunpack.c.l.b16 %v2284
        %v2381 = vunpack.c.l.b16 %v2285
        %v2382 = vunpack.c.l.b16 %v2286
        %v2383 = vunpack.c.l.b16 %v2287
        %v2384 = vunpack.c.l.b16 %v2288
        %v2385 = vunpack.c.l.b16 %v2289
        %v2386 = vunpack.c.l.b16 %v2290
        %v2387 = vunpack.c.l.b16 %v2291
        %v2388 = vunpack.c.l.b16 %v2292
        %v2389 = vpack.c.b16 %v2342, %v2341
        %v2390 = vpack.c.b16 %v2343, %v2343
        %v2391 = vpack.c.b16 %v2345, %v2344
        %v2392 = vpack.c.b16 %v2346, %v2346
        %v2393 = vpack.c.b16 %v2348, %v2347
        %v2394 = vpack.c.b16 %v2349, %v2349
        %v2395 = vpack.c.b16 %v2351, %v2350
        %v2396 = vpack.c.b16 %v2352, %v2352
        %v2397 = vpack.c.b16 %v2354, %v2353
        %v2398 = vpack.c.b16 %v2355, %v2355
        %v2399 = vpack.c.b16 %v2357, %v2356
        %v2400 = vpack.c.b16 %v2358, %v2358
        %v2401 = vpack.c.b16 %v2360, %v2359
        %v2402 = vpack.c.b16 %v2361, %v2361
        %v2403 = vpack.c.b16 %v2363, %v2362
        %v2404 = vpack.c.b16 %v2364, %v2364
        %v2405 = vpack.c.b16 %v2366, %v2365
        %v2406 = vpack.c.b16 %v2367, %v2367
        %v2407 = vpack.c.b16 %v2369, %v2368
        %v2408 = vpack.c.b16 %v2370, %v2370
        %v2409 = vpack.c.b16 %v2372, %v2371
        %v2410 = vpack.c.b16 %v2373, %v2373
        %v2411 = vpack.c.b16 %v2375, %v2374
        %v2412 = vpack.c.b16 %v2376, %v2376
        %v2413 = vpack.c.b16 %v2378, %v2377
        %v2414 = vpack.c.b16 %v2379, %v2379
        %v2415 = vpack.c.b16 %v2381, %v2380
        %v2416 = vpack.c.b16 %v2382, %v2382
        %v2417 = vpack.c.b16 %v2384, %v2383
        %v2418 = vpack.c.b16 %v2385, %v2385
        %v2419 = vpack.c.b16 %v2387, %v2386
        %v2420 = vpack.c.b16 %v2388, %v2388
        %v2421 = vrot.slane %v2389, 1
        %v2422 = vrot.slane %v2390, 1
        %v2423 = vsel %vm1521, %v2421, %v2422
        %v2424 = vrot.slane %v2391, 1
        %v2425 = vrot.slane %v2392, 1
        %v2426 = vsel %vm1521, %v2424, %v2425
        %v2427 = vrot.slane %v2393, 1
        %v2428 = vrot.slane %v2394, 1
        %v2429 = vsel %vm1521, %v2427, %v2428
        %v2430 = vrot.slane %v2395, 1
        %v2431 = vrot.slane %v2396, 1
        %v2432 = vsel %vm1521, %v2430, %v2431
        %v2433 = vrot.slane %v2397, 1
        %v2434 = vrot.slane %v2398, 1
        %v2435 = vsel %vm1521, %v2433, %v2434
        %v2436 = vrot.slane %v2399, 1
        %v2437 = vrot.slane %v2400, 1
        %v2438 = vsel %vm1521, %v2436, %v2437
        %v2439 = vrot.slane %v2401, 1
        %v2440 = vrot.slane %v2402, 1
        %v2441 = vsel %vm1521, %v2439, %v2440
        %v2442 = vrot.slane %v2403, 1
        %v2443 = vrot.slane %v2404, 1
        %v2444 = vsel %vm1521, %v2442, %v2443
        %v2445 = vrot.slane %v2405, 1
        %v2446 = vrot.slane %v2406, 1
        %v2447 = vsel %vm1521, %v2445, %v2446
        %v2448 = vrot.slane %v2407, 1
        %v2449 = vrot.slane %v2408, 1
        %v2450 = vsel %vm1521, %v2448, %v2449
        %v2451 = vrot.slane %v2409, 1
        %v2452 = vrot.slane %v2410, 1
        %v2453 = vsel %vm1521, %v2451, %v2452
        %v2454 = vrot.slane %v2411, 1
        %v2455 = vrot.slane %v2412, 1
        %v2456 = vsel %vm1521, %v2454, %v2455
        %v2457 = vrot.slane %v2413, 1
        %v2458 = vrot.slane %v2414, 1
        %v2459 = vsel %vm1521, %v2457, %v2458
        %v2460 = vrot.slane %v2415, 1
        %v2461 = vrot.slane %v2416, 1
        %v2462 = vsel %vm1521, %v2460, %v2461
        %v2463 = vrot.slane %v2417, 1
        %v2464 = vrot.slane %v2418, 1
        %v2465 = vsel %vm1521, %v2463, %v2464
        %v2466 = vrot.slane %v2419, 1
        %v2467 = vrot.slane %v2420, 1
        %v2468 = vsel %vm1521, %v2466, %v2467
        %2469 = vrot.lane.b32.xlu0 %v2423, 15
        %v2470 = vpop.permute.xlu0 %2469
        %2471 = vrot.lane.b32.xlu0 %v2426, 15
        %v2472 = vpop.permute.xlu0 %2471
        %2473 = vrot.lane.b32.xlu0 %v2429, 15
        %v2474 = vpop.permute.xlu0 %2473
        %2475 = vrot.lane.b32.xlu0 %v2432, 15
        %v2476 = vpop.permute.xlu0 %2475
        %2477 = vrot.lane.b32.xlu0 %v2435, 15
        %v2478 = vpop.permute.xlu0 %2477
        %2479 = vrot.lane.b32.xlu0 %v2438, 15
        %v2480 = vpop.permute.xlu0 %2479
        %2481 = vrot.lane.b32.xlu0 %v2441, 15
        %v2482 = vpop.permute.xlu0 %2481
        %2483 = vrot.lane.b32.xlu0 %v2444, 15
        %v2484 = vpop.permute.xlu0 %2483
        %2485 = vrot.lane.b32.xlu0 %v2447, 15
        %v2486 = vpop.permute.xlu0 %2485
        %2487 = vrot.lane.b32.xlu0 %v2450, 15
        %v2488 = vpop.permute.xlu0 %2487
        %2489 = vrot.lane.b32.xlu0 %v2453, 15
        %v2490 = vpop.permute.xlu0 %2489
        %2491 = vrot.lane.b32.xlu0 %v2456, 15
        %v2492 = vpop.permute.xlu0 %2491
        %2493 = vrot.lane.b32.xlu0 %v2459, 15
        %v2494 = vpop.permute.xlu0 %2493
        %2495 = vrot.lane.b32.xlu0 %v2462, 15
        %v2496 = vpop.permute.xlu0 %2495
        %2497 = vrot.lane.b32.xlu0 %v2465, 15
        %v2498 = vpop.permute.xlu0 %2497
        %2499 = vrot.lane.b32.xlu0 %v2468, 15
        %v2500 = vpop.permute.xlu0 %2499
        %vm2517 = vcmask 146552
        %2518 = vst.msk [vmem:[#allocation3] sm:$0xff] %vm2517, %v2470
        %2519 = vst.msk [vmem:[#allocation3 + $0x8] sm:$0xff] %vm2517, %v2472
        %2520 = vst.msk [vmem:[#allocation3 + $0x10] sm:$0xff] %vm2517, %v2474
        %2521 = vst.msk [vmem:[#allocation3 + $0x18] sm:$0xff] %vm2517, %v2476
        %2522 = vst.msk [vmem:[#allocation3 + $0x20] sm:$0xff] %vm2517, %v2478
        %2523 = vst.msk [vmem:[#allocation3 + $0x28] sm:$0xff] %vm2517, %v2480
        %2524 = vst.msk [vmem:[#allocation3 + $0x30] sm:$0xff] %vm2517, %v2482
        %2525 = vst.msk [vmem:[#allocation3 + $0x38] sm:$0xff] %vm2517, %v2484
        %2526 = vst.msk [vmem:[#allocation3 + $0x40] sm:$0xff] %vm2517, %v2486
        %2527 = vst.msk [vmem:[#allocation3 + $0x48] sm:$0xff] %vm2517, %v2488
        %2528 = vst.msk [vmem:[#allocation3 + $0x50] sm:$0xff] %vm2517, %v2490
        %2529 = vst.msk [vmem:[#allocation3 + $0x58] sm:$0xff] %vm2517, %v2492
        %2530 = vst.msk [vmem:[#allocation3 + $0x60] sm:$0xff] %vm2517, %v2494
        %2531 = vst.msk [vmem:[#allocation3 + $0x68] sm:$0xff] %vm2517, %v2496
        %2532 = vst.msk [vmem:[#allocation3 + $0x70] sm:$0xff] %vm2517, %v2498
        %2533 = vst.msk [vmem:[#allocation3 + $0x78] sm:$0xff] %vm2517, %v2500
        %s2534 = scalar_lea.vmem [#allocation2], 24
        %v2535 = vld [vmem:[%s2534] sm:$0xf]
        %v2536 = vld [vmem:[%s2534 + $0x4] sm:$0xf]
        %v2537 = vld [vmem:[%s2534 + $0xc] sm:$0xf]
        %v2538 = vld [vmem:[%s2534 + $0x10] sm:$0xf]
        %v2539 = vld [vmem:[%s2534 + $0x18] sm:$0xf]
        %v2540 = vld [vmem:[%s2534 + $0x1c] sm:$0xf]
        %v2541 = vld [vmem:[%s2534 + $0x24] sm:$0xf]
        %v2542 = vld [vmem:[%s2534 + $0x28] sm:$0xf]
        %v2543 = vld [vmem:[%s2534 + $0x30] sm:$0xf]
        %v2544 = vld [vmem:[%s2534 + $0x34] sm:$0xf]
        %v2545 = vld [vmem:[%s2534 + $0x3c] sm:$0xf]
        %v2546 = vld [vmem:[%s2534 + $0x40] sm:$0xf]
        %v2547 = vld [vmem:[%s2534 + $0x48] sm:$0xf]
        %v2548 = vld [vmem:[%s2534 + $0x4c] sm:$0xf]
        %v2549 = vld [vmem:[%s2534 + $0x54] sm:$0xf]
        %v2550 = vld [vmem:[%s2534 + $0x58] sm:$0xf]
        %v2551 = vld [vmem:[%s2534 + $0x60] sm:$0xf]
        %v2552 = vld [vmem:[%s2534 + $0x64] sm:$0xf]
        %v2553 = vld [vmem:[%s2534 + $0x6c] sm:$0xf]
        %v2554 = vld [vmem:[%s2534 + $0x70] sm:$0xf]
        %v2555 = vld [vmem:[%s2534 + $0x78] sm:$0xf]
        %v2556 = vld [vmem:[%s2534 + $0x7c] sm:$0xf]
        %v2557 = vld [vmem:[%s2534 + $0x84] sm:$0xf]
        %v2558 = vld [vmem:[%s2534 + $0x88] sm:$0xf]
        %v2559 = vld [vmem:[%s2534 + $0x90] sm:$0xf]
        %v2560 = vld [vmem:[%s2534 + $0x94] sm:$0xf]
        %v2561 = vld [vmem:[%s2534 + $0x9c] sm:$0xf]
        %v2562 = vld [vmem:[%s2534 + $0xa0] sm:$0xf]
        %v2563 = vld [vmem:[%s2534 + $0xa8] sm:$0xf]
        %v2564 = vld [vmem:[%s2534 + $0xac] sm:$0xf]
        %v2565 = vld [vmem:[%s2534 + $0xb4] sm:$0xf]
        %v2566 = vld [vmem:[%s2534 + $0xb8] sm:$0xf]
        %v2599 = vunpack.c.l.b16 %v2535
        %v2600 = vunpack.c.l.b16 %v2536
        %v2601 = vunpack.c.l.b16 %v2537
        %v2602 = vunpack.c.l.b16 %v2538
        %v2603 = vunpack.c.l.b16 %v2539
        %v2604 = vunpack.c.l.b16 %v2540
        %v2605 = vunpack.c.l.b16 %v2541
        %v2606 = vunpack.c.l.b16 %v2542
        %v2607 = vunpack.c.l.b16 %v2543
        %v2608 = vunpack.c.l.b16 %v2544
        %v2609 = vunpack.c.l.b16 %v2545
        %v2610 = vunpack.c.l.b16 %v2546
        %v2611 = vunpack.c.l.b16 %v2547
        %v2612 = vunpack.c.l.b16 %v2548
        %v2613 = vunpack.c.l.b16 %v2549
        %v2614 = vunpack.c.l.b16 %v2550
        %v2615 = vunpack.c.l.b16 %v2551
        %v2616 = vunpack.c.l.b16 %v2552
        %v2617 = vunpack.c.l.b16 %v2553
        %v2618 = vunpack.c.l.b16 %v2554
        %v2619 = vunpack.c.l.b16 %v2555
        %v2620 = vunpack.c.l.b16 %v2556
        %v2621 = vunpack.c.l.b16 %v2557
        %v2622 = vunpack.c.l.b16 %v2558
        %v2623 = vunpack.c.l.b16 %v2559
        %v2624 = vunpack.c.l.b16 %v2560
        %v2625 = vunpack.c.l.b16 %v2561
        %v2626 = vunpack.c.l.b16 %v2562
        %v2627 = vunpack.c.l.b16 %v2563
        %v2628 = vunpack.c.l.b16 %v2564
        %v2629 = vunpack.c.l.b16 %v2565
        %v2630 = vunpack.c.l.b16 %v2566
        %v2631 = vpack.c.b16 %v2600, %v2599
        %v2632 = vpack.c.b16 %v2602, %v2601
        %v2633 = vpack.c.b16 %v2604, %v2603
        %v2634 = vpack.c.b16 %v2606, %v2605
        %v2635 = vpack.c.b16 %v2608, %v2607
        %v2636 = vpack.c.b16 %v2610, %v2609
        %v2637 = vpack.c.b16 %v2612, %v2611
        %v2638 = vpack.c.b16 %v2614, %v2613
        %v2639 = vpack.c.b16 %v2616, %v2615
        %v2640 = vpack.c.b16 %v2618, %v2617
        %v2641 = vpack.c.b16 %v2620, %v2619
        %v2642 = vpack.c.b16 %v2622, %v2621
        %v2643 = vpack.c.b16 %v2624, %v2623
        %v2644 = vpack.c.b16 %v2626, %v2625
        %v2645 = vpack.c.b16 %v2628, %v2627
        %v2646 = vpack.c.b16 %v2630, %v2629
        %2647 = vrot.lane.b32.xlu0 %v2631, 18
        %v2648 = vpop.permute.xlu0 %2647
        %2649 = vrot.lane.b32.xlu0 %v2632, 18
        %v2650 = vpop.permute.xlu0 %2649
        %2651 = vrot.lane.b32.xlu0 %v2633, 18
        %v2652 = vpop.permute.xlu0 %2651
        %2653 = vrot.lane.b32.xlu0 %v2634, 18
        %v2654 = vpop.permute.xlu0 %2653
        %2655 = vrot.lane.b32.xlu0 %v2635, 18
        %v2656 = vpop.permute.xlu0 %2655
        %2657 = vrot.lane.b32.xlu0 %v2636, 18
        %v2658 = vpop.permute.xlu0 %2657
        %2659 = vrot.lane.b32.xlu0 %v2637, 18
        %v2660 = vpop.permute.xlu0 %2659
        %2661 = vrot.lane.b32.xlu0 %v2638, 18
        %v2662 = vpop.permute.xlu0 %2661
        %2663 = vrot.lane.b32.xlu0 %v2639, 18
        %v2664 = vpop.permute.xlu0 %2663
        %2665 = vrot.lane.b32.xlu0 %v2640, 18
        %v2666 = vpop.permute.xlu0 %2665
        %2667 = vrot.lane.b32.xlu0 %v2641, 18
        %v2668 = vpop.permute.xlu0 %2667
        %2669 = vrot.lane.b32.xlu0 %v2642, 18
        %v2670 = vpop.permute.xlu0 %2669
        %2671 = vrot.lane.b32.xlu0 %v2643, 18
        %v2672 = vpop.permute.xlu0 %2671
        %2673 = vrot.lane.b32.xlu0 %v2644, 18
        %v2674 = vpop.permute.xlu0 %2673
        %2675 = vrot.lane.b32.xlu0 %v2645, 18
        %v2676 = vpop.permute.xlu0 %2675
        %2677 = vrot.lane.b32.xlu0 %v2646, 18
        %v2678 = vpop.permute.xlu0 %2677
        %vm2695 = vcmask 171152
        %2696 = vst.msk [vmem:[#allocation3] sm:$0xff] %vm2695, %v2648
        %2697 = vst.msk [vmem:[#allocation3 + $0x8] sm:$0xff] %vm2695, %v2650
        %2698 = vst.msk [vmem:[#allocation3 + $0x10] sm:$0xff] %vm2695, %v2652
        %2699 = vst.msk [vmem:[#allocation3 + $0x18] sm:$0xff] %vm2695, %v2654
        %2700 = vst.msk [vmem:[#allocation3 + $0x20] sm:$0xff] %vm2695, %v2656
        %2701 = vst.msk [vmem:[#allocation3 + $0x28] sm:$0xff] %vm2695, %v2658
        %2702 = vst.msk [vmem:[#allocation3 + $0x30] sm:$0xff] %vm2695, %v2660
        %2703 = vst.msk [vmem:[#allocation3 + $0x38] sm:$0xff] %vm2695, %v2662
        %2704 = vst.msk [vmem:[#allocation3 + $0x40] sm:$0xff] %vm2695, %v2664
        %2705 = vst.msk [vmem:[#allocation3 + $0x48] sm:$0xff] %vm2695, %v2666
        %2706 = vst.msk [vmem:[#allocation3 + $0x50] sm:$0xff] %vm2695, %v2668
        %2707 = vst.msk [vmem:[#allocation3 + $0x58] sm:$0xff] %vm2695, %v2670
        %2708 = vst.msk [vmem:[#allocation3 + $0x60] sm:$0xff] %vm2695, %v2672
        %2709 = vst.msk [vmem:[#allocation3 + $0x68] sm:$0xff] %vm2695, %v2674
        %2710 = vst.msk [vmem:[#allocation3 + $0x70] sm:$0xff] %vm2695, %v2676
        %2711 = vst.msk [vmem:[#allocation3 + $0x78] sm:$0xff] %vm2695, %v2678
        %v2712 = vld [vmem:[%s2534] sm:$0xf]
        %v2713 = vld [vmem:[%s2534 + $0x4] sm:$0xf]
        %v2714 = vld [vmem:[%s2534 + $0x8] sm:$0x1]
        %v2715 = vld [vmem:[%s2534 + $0xc] sm:$0xf]
        %v2716 = vld [vmem:[%s2534 + $0x10] sm:$0xf]
        %v2717 = vld [vmem:[%s2534 + $0x14] sm:$0x1]
        %v2718 = vld [vmem:[%s2534 + $0x18] sm:$0xf]
        %v2719 = vld [vmem:[%s2534 + $0x1c] sm:$0xf]
        %v2720 = vld [vmem:[%s2534 + $0x20] sm:$0x1]
        %v2721 = vld [vmem:[%s2534 + $0x24] sm:$0xf]
        %v2722 = vld [vmem:[%s2534 + $0x28] sm:$0xf]
        %v2723 = vld [vmem:[%s2534 + $0x2c] sm:$0x1]
        %v2724 = vld [vmem:[%s2534 + $0x30] sm:$0xf]
        %v2725 = vld [vmem:[%s2534 + $0x34] sm:$0xf]
        %v2726 = vld [vmem:[%s2534 + $0x38] sm:$0x1]
        %v2727 = vld [vmem:[%s2534 + $0x3c] sm:$0xf]
        %v2728 = vld [vmem:[%s2534 + $0x40] sm:$0xf]
        %v2729 = vld [vmem:[%s2534 + $0x44] sm:$0x1]
        %v2730 = vld [vmem:[%s2534 + $0x48] sm:$0xf]
        %v2731 = vld [vmem:[%s2534 + $0x4c] sm:$0xf]
        %v2732 = vld [vmem:[%s2534 + $0x50] sm:$0x1]
        %v2733 = vld [vmem:[%s2534 + $0x54] sm:$0xf]
        %v2734 = vld [vmem:[%s2534 + $0x58] sm:$0xf]
        %v2735 = vld [vmem:[%s2534 + $0x5c] sm:$0x1]
        %v2736 = vld [vmem:[%s2534 + $0x60] sm:$0xf]
        %v2737 = vld [vmem:[%s2534 + $0x64] sm:$0xf]
        %v2738 = vld [vmem:[%s2534 + $0x68] sm:$0x1]
        %v2739 = vld [vmem:[%s2534 + $0x6c] sm:$0xf]
        %v2740 = vld [vmem:[%s2534 + $0x70] sm:$0xf]
        %v2741 = vld [vmem:[%s2534 + $0x74] sm:$0x1]
        %v2742 = vld [vmem:[%s2534 + $0x78] sm:$0xf]
        %v2743 = vld [vmem:[%s2534 + $0x7c] sm:$0xf]
        %v2744 = vld [vmem:[%s2534 + $0x80] sm:$0x1]
        %v2745 = vld [vmem:[%s2534 + $0x84] sm:$0xf]
        %v2746 = vld [vmem:[%s2534 + $0x88] sm:$0xf]
        %v2747 = vld [vmem:[%s2534 + $0x8c] sm:$0x1]
        %v2748 = vld [vmem:[%s2534 + $0x90] sm:$0xf]
        %v2749 = vld [vmem:[%s2534 + $0x94] sm:$0xf]
        %v2750 = vld [vmem:[%s2534 + $0x98] sm:$0x1]
        %v2751 = vld [vmem:[%s2534 + $0x9c] sm:$0xf]
        %v2752 = vld [vmem:[%s2534 + $0xa0] sm:$0xf]
        %v2753 = vld [vmem:[%s2534 + $0xa4] sm:$0x1]
        %v2754 = vld [vmem:[%s2534 + $0xa8] sm:$0xf]
        %v2755 = vld [vmem:[%s2534 + $0xac] sm:$0xf]
        %v2756 = vld [vmem:[%s2534 + $0xb0] sm:$0x1]
        %v2757 = vld [vmem:[%s2534 + $0xb4] sm:$0xf]
        %v2758 = vld [vmem:[%s2534 + $0xb8] sm:$0xf]
        %v2759 = vld [vmem:[%s2534 + $0xbc] sm:$0x1]
        %v2808 = vunpack.c.l.b16 %v2712
        %v2809 = vunpack.c.l.b16 %v2713
        %v2810 = vunpack.c.l.b16 %v2714
        %v2811 = vunpack.c.l.b16 %v2715
        %v2812 = vunpack.c.l.b16 %v2716
        %v2813 = vunpack.c.l.b16 %v2717
        %v2814 = vunpack.c.l.b16 %v2718
        %v2815 = vunpack.c.l.b16 %v2719
        %v2816 = vunpack.c.l.b16 %v2720
        %v2817 = vunpack.c.l.b16 %v2721
        %v2818 = vunpack.c.l.b16 %v2722
        %v2819 = vunpack.c.l.b16 %v2723
        %v2820 = vunpack.c.l.b16 %v2724
        %v2821 = vunpack.c.l.b16 %v2725
        %v2822 = vunpack.c.l.b16 %v2726
        %v2823 = vunpack.c.l.b16 %v2727
        %v2824 = vunpack.c.l.b16 %v2728
        %v2825 = vunpack.c.l.b16 %v2729
        %v2826 = vunpack.c.l.b16 %v2730
        %v2827 = vunpack.c.l.b16 %v2731
        %v2828 = vunpack.c.l.b16 %v2732
        %v2829 = vunpack.c.l.b16 %v2733
        %v2830 = vunpack.c.l.b16 %v2734
        %v2831 = vunpack.c.l.b16 %v2735
        %v2832 = vunpack.c.l.b16 %v2736
        %v2833 = vunpack.c.l.b16 %v2737
        %v2834 = vunpack.c.l.b16 %v2738
        %v2835 = vunpack.c.l.b16 %v2739
        %v2836 = vunpack.c.l.b16 %v2740
        %v2837 = vunpack.c.l.b16 %v2741
        %v2838 = vunpack.c.l.b16 %v2742
        %v2839 = vunpack.c.l.b16 %v2743
        %v2840 = vunpack.c.l.b16 %v2744
        %v2841 = vunpack.c.l.b16 %v2745
        %v2842 = vunpack.c.l.b16 %v2746
        %v2843 = vunpack.c.l.b16 %v2747
        %v2844 = vunpack.c.l.b16 %v2748
        %v2845 = vunpack.c.l.b16 %v2749
        %v2846 = vunpack.c.l.b16 %v2750
        %v2847 = vunpack.c.l.b16 %v2751
        %v2848 = vunpack.c.l.b16 %v2752
        %v2849 = vunpack.c.l.b16 %v2753
        %v2850 = vunpack.c.l.b16 %v2754
        %v2851 = vunpack.c.l.b16 %v2755
        %v2852 = vunpack.c.l.b16 %v2756
        %v2853 = vunpack.c.l.b16 %v2757
        %v2854 = vunpack.c.l.b16 %v2758
        %v2855 = vunpack.c.l.b16 %v2759
        %v2856 = vpack.c.b16 %v2809, %v2808
        %v2857 = vpack.c.b16 %v2810, %v2810
        %v2858 = vpack.c.b16 %v2812, %v2811
        %v2859 = vpack.c.b16 %v2813, %v2813
        %v2860 = vpack.c.b16 %v2815, %v2814
        %v2861 = vpack.c.b16 %v2816, %v2816
        %v2862 = vpack.c.b16 %v2818, %v2817
        %v2863 = vpack.c.b16 %v2819, %v2819
        %v2864 = vpack.c.b16 %v2821, %v2820
        %v2865 = vpack.c.b16 %v2822, %v2822
        %v2866 = vpack.c.b16 %v2824, %v2823
        %v2867 = vpack.c.b16 %v2825, %v2825
        %v2868 = vpack.c.b16 %v2827, %v2826
        %v2869 = vpack.c.b16 %v2828, %v2828
        %v2870 = vpack.c.b16 %v2830, %v2829
        %v2871 = vpack.c.b16 %v2831, %v2831
        %v2872 = vpack.c.b16 %v2833, %v2832
        %v2873 = vpack.c.b16 %v2834, %v2834
        %v2874 = vpack.c.b16 %v2836, %v2835
        %v2875 = vpack.c.b16 %v2837, %v2837
        %v2876 = vpack.c.b16 %v2839, %v2838
        %v2877 = vpack.c.b16 %v2840, %v2840
        %v2878 = vpack.c.b16 %v2842, %v2841
        %v2879 = vpack.c.b16 %v2843, %v2843
        %v2880 = vpack.c.b16 %v2845, %v2844
        %v2881 = vpack.c.b16 %v2846, %v2846
        %v2882 = vpack.c.b16 %v2848, %v2847
        %v2883 = vpack.c.b16 %v2849, %v2849
        %v2884 = vpack.c.b16 %v2851, %v2850
        %v2885 = vpack.c.b16 %v2852, %v2852
        %v2886 = vpack.c.b16 %v2854, %v2853
        %v2887 = vpack.c.b16 %v2855, %v2855
        %v2889 = vshrl.u32 %v2856, 16
        %v2891 = vshll.u32 %v2856, 16
        %v2893 = vrot.slane %v2891, 1
        %v2894 = vor.u32 %v2889, %v2893
        %v2896 = vshll.u32 %v2857, 16
        %v2898 = vrot.slane %v2896, 1
        %v2899 = vsel %vm1087, %v2894, %v2898
        %v2901 = vshrl.u32 %v2858, 16
        %v2903 = vshll.u32 %v2858, 16
        %v2905 = vrot.slane %v2903, 1
        %v2906 = vor.u32 %v2901, %v2905
        %v2908 = vshll.u32 %v2859, 16
        %v2910 = vrot.slane %v2908, 1
        %v2911 = vsel %vm1087, %v2906, %v2910
        %v2913 = vshrl.u32 %v2860, 16
        %v2915 = vshll.u32 %v2860, 16
        %v2917 = vrot.slane %v2915, 1
        %v2918 = vor.u32 %v2913, %v2917
        %v2920 = vshll.u32 %v2861, 16
        %v2922 = vrot.slane %v2920, 1
        %v2923 = vsel %vm1087, %v2918, %v2922
        %v2925 = vshrl.u32 %v2862, 16
        %v2927 = vshll.u32 %v2862, 16
        %v2929 = vrot.slane %v2927, 1
        %v2930 = vor.u32 %v2925, %v2929
        %v2932 = vshll.u32 %v2863, 16
        %v2934 = vrot.slane %v2932, 1
        %v2935 = vsel %vm1087, %v2930, %v2934
        %v2937 = vshrl.u32 %v2864, 16
        %v2939 = vshll.u32 %v2864, 16
        %v2941 = vrot.slane %v2939, 1
        %v2942 = vor.u32 %v2937, %v2941
        %v2944 = vshll.u32 %v2865, 16
        %v2946 = vrot.slane %v2944, 1
        %v2947 = vsel %vm1087, %v2942, %v2946
        %v2949 = vshrl.u32 %v2866, 16
        %v2951 = vshll.u32 %v2866, 16
        %v2953 = vrot.slane %v2951, 1
        %v2954 = vor.u32 %v2949, %v2953
        %v2956 = vshll.u32 %v2867, 16
        %v2958 = vrot.slane %v2956, 1
        %v2959 = vsel %vm1087, %v2954, %v2958
        %v2961 = vshrl.u32 %v2868, 16
        %v2963 = vshll.u32 %v2868, 16
        %v2965 = vrot.slane %v2963, 1
        %v2966 = vor.u32 %v2961, %v2965
        %v2968 = vshll.u32 %v2869, 16
        %v2970 = vrot.slane %v2968, 1
        %v2971 = vsel %vm1087, %v2966, %v2970
        %v2973 = vshrl.u32 %v2870, 16
        %v2975 = vshll.u32 %v2870, 16
        %v2977 = vrot.slane %v2975, 1
        %v2978 = vor.u32 %v2973, %v2977
        %v2980 = vshll.u32 %v2871, 16
        %v2982 = vrot.slane %v2980, 1
        %v2983 = vsel %vm1087, %v2978, %v2982
        %v2985 = vshrl.u32 %v2872, 16
        %v2987 = vshll.u32 %v2872, 16
        %v2989 = vrot.slane %v2987, 1
        %v2990 = vor.u32 %v2985, %v2989
        %v2992 = vshll.u32 %v2873, 16
        %v2994 = vrot.slane %v2992, 1
        %v2995 = vsel %vm1087, %v2990, %v2994
        %v2997 = vshrl.u32 %v2874, 16
        %v2999 = vshll.u32 %v2874, 16
        %v3001 = vrot.slane %v2999, 1
        %v3002 = vor.u32 %v2997, %v3001
        %v3004 = vshll.u32 %v2875, 16
        %v3006 = vrot.slane %v3004, 1
        %v3007 = vsel %vm1087, %v3002, %v3006
        %v3009 = vshrl.u32 %v2876, 16
        %v3011 = vshll.u32 %v2876, 16
        %v3013 = vrot.slane %v3011, 1
        %v3014 = vor.u32 %v3009, %v3013
        %v3016 = vshll.u32 %v2877, 16
        %v3018 = vrot.slane %v3016, 1
        %v3019 = vsel %vm1087, %v3014, %v3018
        %v3021 = vshrl.u32 %v2878, 16
        %v3023 = vshll.u32 %v2878, 16
        %v3025 = vrot.slane %v3023, 1
        %v3026 = vor.u32 %v3021, %v3025
        %v3028 = vshll.u32 %v2879, 16
        %v3030 = vrot.slane %v3028, 1
        %v3031 = vsel %vm1087, %v3026, %v3030
        %v3033 = vshrl.u32 %v2880, 16
        %v3035 = vshll.u32 %v2880, 16
        %v3037 = vrot.slane %v3035, 1
        %v3038 = vor.u32 %v3033, %v3037
        %v3040 = vshll.u32 %v2881, 16
        %v3042 = vrot.slane %v3040, 1
        %v3043 = vsel %vm1087, %v3038, %v3042
        %v3045 = vshrl.u32 %v2882, 16
        %v3047 = vshll.u32 %v2882, 16
        %v3049 = vrot.slane %v3047, 1
        %v3050 = vor.u32 %v3045, %v3049
        %v3052 = vshll.u32 %v2883, 16
        %v3054 = vrot.slane %v3052, 1
        %v3055 = vsel %vm1087, %v3050, %v3054
        %v3057 = vshrl.u32 %v2884, 16
        %v3059 = vshll.u32 %v2884, 16
        %v3061 = vrot.slane %v3059, 1
        %v3062 = vor.u32 %v3057, %v3061
        %v3064 = vshll.u32 %v2885, 16
        %v3066 = vrot.slane %v3064, 1
        %v3067 = vsel %vm1087, %v3062, %v3066
        %v3069 = vshrl.u32 %v2886, 16
        %v3071 = vshll.u32 %v2886, 16
        %v3073 = vrot.slane %v3071, 1
        %v3074 = vor.u32 %v3069, %v3073
        %v3076 = vshll.u32 %v2887, 16
        %v3078 = vrot.slane %v3076, 1
        %v3079 = vsel %vm1087, %v3074, %v3078
        %3080 = vrot.lane.b32.xlu0 %v2899, 21
        %v3081 = vpop.permute.xlu0 %3080
        %3082 = vrot.lane.b32.xlu0 %v2911, 21
        %v3083 = vpop.permute.xlu0 %3082
        %3084 = vrot.lane.b32.xlu0 %v2923, 21
        %v3085 = vpop.permute.xlu0 %3084
        %3086 = vrot.lane.b32.xlu0 %v2935, 21
        %v3087 = vpop.permute.xlu0 %3086
        %3088 = vrot.lane.b32.xlu0 %v2947, 21
        %v3089 = vpop.permute.xlu0 %3088
        %3090 = vrot.lane.b32.xlu0 %v2959, 21
        %v3091 = vpop.permute.xlu0 %3090
        %3092 = vrot.lane.b32.xlu0 %v2971, 21
        %v3093 = vpop.permute.xlu0 %3092
        %3094 = vrot.lane.b32.xlu0 %v2983, 21
        %v3095 = vpop.permute.xlu0 %3094
        %3096 = vrot.lane.b32.xlu0 %v2995, 21
        %v3097 = vpop.permute.xlu0 %3096
        %3098 = vrot.lane.b32.xlu0 %v3007, 21
        %v3099 = vpop.permute.xlu0 %3098
        %3100 = vrot.lane.b32.xlu0 %v3019, 21
        %v3101 = vpop.permute.xlu0 %3100
        %3102 = vrot.lane.b32.xlu0 %v3031, 21
        %v3103 = vpop.permute.xlu0 %3102
        %3104 = vrot.lane.b32.xlu0 %v3043, 21
        %v3105 = vpop.permute.xlu0 %3104
        %3106 = vrot.lane.b32.xlu0 %v3055, 21
        %v3107 = vpop.permute.xlu0 %3106
        %3108 = vrot.lane.b32.xlu0 %v3067, 21
        %v3109 = vpop.permute.xlu0 %3108
        %3110 = vrot.lane.b32.xlu0 %v3079, 21
        %v3111 = vpop.permute.xlu0 %3110
        %vm3128 = vcmask 195752
        %3129 = vst.msk [vmem:[#allocation3] sm:$0xff] %vm3128, %v3081
        %3130 = vst.msk [vmem:[#allocation3 + $0x8] sm:$0xff] %vm3128, %v3083
        %3131 = vst.msk [vmem:[#allocation3 + $0x10] sm:$0xff] %vm3128, %v3085
        %3132 = vst.msk [vmem:[#allocation3 + $0x18] sm:$0xff] %vm3128, %v3087
        %3133 = vst.msk [vmem:[#allocation3 + $0x20] sm:$0xff] %vm3128, %v3089
        %3134 = vst.msk [vmem:[#allocation3 + $0x28] sm:$0xff] %vm3128, %v3091
        %3135 = vst.msk [vmem:[#allocation3 + $0x30] sm:$0xff] %vm3128, %v3093
        %3136 = vst.msk [vmem:[#allocation3 + $0x38] sm:$0xff] %vm3128, %v3095
        %3137 = vst.msk [vmem:[#allocation3 + $0x40] sm:$0xff] %vm3128, %v3097
        %3138 = vst.msk [vmem:[#allocation3 + $0x48] sm:$0xff] %vm3128, %v3099
        %3139 = vst.msk [vmem:[#allocation3 + $0x50] sm:$0xff] %vm3128, %v3101
        %3140 = vst.msk [vmem:[#allocation3 + $0x58] sm:$0xff] %vm3128, %v3103
        %3141 = vst.msk [vmem:[#allocation3 + $0x60] sm:$0xff] %vm3128, %v3105
        %3142 = vst.msk [vmem:[#allocation3 + $0x68] sm:$0xff] %vm3128, %v3107
        %3143 = vst.msk [vmem:[#allocation3 + $0x70] sm:$0xff] %vm3128, %v3109
        %3144 = vst.msk [vmem:[#allocation3 + $0x78] sm:$0xff] %vm3128, %v3111
        %v3145 = vld [vmem:[%s2534] sm:$0xe]
        %v3146 = vld [vmem:[%s2534 + $0x4] sm:$0xf]
        %v3147 = vld [vmem:[%s2534 + $0x8] sm:$0x1]
        %v3148 = vld [vmem:[%s2534 + $0xc] sm:$0xe]
        %v3149 = vld [vmem:[%s2534 + $0x10] sm:$0xf]
        %v3150 = vld [vmem:[%s2534 + $0x14] sm:$0x1]
        %v3151 = vld [vmem:[%s2534 + $0x18] sm:$0xe]
        %v3152 = vld [vmem:[%s2534 + $0x1c] sm:$0xf]
        %v3153 = vld [vmem:[%s2534 + $0x20] sm:$0x1]
        %v3154 = vld [vmem:[%s2534 + $0x24] sm:$0xe]
        %v3155 = vld [vmem:[%s2534 + $0x28] sm:$0xf]
        %v3156 = vld [vmem:[%s2534 + $0x2c] sm:$0x1]
        %v3157 = vld [vmem:[%s2534 + $0x30] sm:$0xe]
        %v3158 = vld [vmem:[%s2534 + $0x34] sm:$0xf]
        %v3159 = vld [vmem:[%s2534 + $0x38] sm:$0x1]
        %v3160 = vld [vmem:[%s2534 + $0x3c] sm:$0xe]
        %v3161 = vld [vmem:[%s2534 + $0x40] sm:$0xf]
        %v3162 = vld [vmem:[%s2534 + $0x44] sm:$0x1]
        %v3163 = vld [vmem:[%s2534 + $0x48] sm:$0xe]
        %v3164 = vld [vmem:[%s2534 + $0x4c] sm:$0xf]
        %v3165 = vld [vmem:[%s2534 + $0x50] sm:$0x1]
        %v3166 = vld [vmem:[%s2534 + $0x54] sm:$0xe]
        %v3167 = vld [vmem:[%s2534 + $0x58] sm:$0xf]
        %v3168 = vld [vmem:[%s2534 + $0x5c] sm:$0x1]
        %v3169 = vld [vmem:[%s2534 + $0x60] sm:$0xe]
        %v3170 = vld [vmem:[%s2534 + $0x64] sm:$0xf]
        %v3171 = vld [vmem:[%s2534 + $0x68] sm:$0x1]
        %v3172 = vld [vmem:[%s2534 + $0x6c] sm:$0xe]
        %v3173 = vld [vmem:[%s2534 + $0x70] sm:$0xf]
        %v3174 = vld [vmem:[%s2534 + $0x74] sm:$0x1]
        %v3175 = vld [vmem:[%s2534 + $0x78] sm:$0xe]
        %v3176 = vld [vmem:[%s2534 + $0x7c] sm:$0xf]
        %v3177 = vld [vmem:[%s2534 + $0x80] sm:$0x1]
        %v3178 = vld [vmem:[%s2534 + $0x84] sm:$0xe]
        %v3179 = vld [vmem:[%s2534 + $0x88] sm:$0xf]
        %v3180 = vld [vmem:[%s2534 + $0x8c] sm:$0x1]
        %v3181 = vld [vmem:[%s2534 + $0x90] sm:$0xe]
        %v3182 = vld [vmem:[%s2534 + $0x94] sm:$0xf]
        %v3183 = vld [vmem:[%s2534 + $0x98] sm:$0x1]
        %v3184 = vld [vmem:[%s2534 + $0x9c] sm:$0xe]
        %v3185 = vld [vmem:[%s2534 + $0xa0] sm:$0xf]
        %v3186 = vld [vmem:[%s2534 + $0xa4] sm:$0x1]
        %v3187 = vld [vmem:[%s2534 + $0xa8] sm:$0xe]
        %v3188 = vld [vmem:[%s2534 + $0xac] sm:$0xf]
        %v3189 = vld [vmem:[%s2534 + $0xb0] sm:$0x1]
        %v3190 = vld [vmem:[%s2534 + $0xb4] sm:$0xe]
        %v3191 = vld [vmem:[%s2534 + $0xb8] sm:$0xf]
        %v3192 = vld [vmem:[%s2534 + $0xbc] sm:$0x1]
        %v3241 = vunpack.c.l.b16 %v3145
        %v3242 = vunpack.c.l.b16 %v3146
        %v3243 = vunpack.c.l.b16 %v3147
        %v3244 = vunpack.c.l.b16 %v3148
        %v3245 = vunpack.c.l.b16 %v3149
        %v3246 = vunpack.c.l.b16 %v3150
        %v3247 = vunpack.c.l.b16 %v3151
        %v3248 = vunpack.c.l.b16 %v3152
        %v3249 = vunpack.c.l.b16 %v3153
        %v3250 = vunpack.c.l.b16 %v3154
        %v3251 = vunpack.c.l.b16 %v3155
        %v3252 = vunpack.c.l.b16 %v3156
        %v3253 = vunpack.c.l.b16 %v3157
        %v3254 = vunpack.c.l.b16 %v3158
        %v3255 = vunpack.c.l.b16 %v3159
        %v3256 = vunpack.c.l.b16 %v3160
        %v3257 = vunpack.c.l.b16 %v3161
        %v3258 = vunpack.c.l.b16 %v3162
        %v3259 = vunpack.c.l.b16 %v3163
        %v3260 = vunpack.c.l.b16 %v3164
        %v3261 = vunpack.c.l.b16 %v3165
        %v3262 = vunpack.c.l.b16 %v3166
        %v3263 = vunpack.c.l.b16 %v3167
        %v3264 = vunpack.c.l.b16 %v3168
        %v3265 = vunpack.c.l.b16 %v3169
        %v3266 = vunpack.c.l.b16 %v3170
        %v3267 = vunpack.c.l.b16 %v3171
        %v3268 = vunpack.c.l.b16 %v3172
        %v3269 = vunpack.c.l.b16 %v3173
        %v3270 = vunpack.c.l.b16 %v3174
        %v3271 = vunpack.c.l.b16 %v3175
        %v3272 = vunpack.c.l.b16 %v3176
        %v3273 = vunpack.c.l.b16 %v3177
        %v3274 = vunpack.c.l.b16 %v3178
        %v3275 = vunpack.c.l.b16 %v3179
        %v3276 = vunpack.c.l.b16 %v3180
        %v3277 = vunpack.c.l.b16 %v3181
        %v3278 = vunpack.c.l.b16 %v3182
        %v3279 = vunpack.c.l.b16 %v3183
        %v3280 = vunpack.c.l.b16 %v3184
        %v3281 = vunpack.c.l.b16 %v3185
        %v3282 = vunpack.c.l.b16 %v3186
        %v3283 = vunpack.c.l.b16 %v3187
        %v3284 = vunpack.c.l.b16 %v3188
        %v3285 = vunpack.c.l.b16 %v3189
        %v3286 = vunpack.c.l.b16 %v3190
        %v3287 = vunpack.c.l.b16 %v3191
        %v3288 = vunpack.c.l.b16 %v3192
        %v3289 = vpack.c.b16 %v3242, %v3241
        %v3290 = vpack.c.b16 %v3243, %v3243
        %v3291 = vpack.c.b16 %v3245, %v3244
        %v3292 = vpack.c.b16 %v3246, %v3246
        %v3293 = vpack.c.b16 %v3248, %v3247
        %v3294 = vpack.c.b16 %v3249, %v3249
        %v3295 = vpack.c.b16 %v3251, %v3250
        %v3296 = vpack.c.b16 %v3252, %v3252
        %v3297 = vpack.c.b16 %v3254, %v3253
        %v3298 = vpack.c.b16 %v3255, %v3255
        %v3299 = vpack.c.b16 %v3257, %v3256
        %v3300 = vpack.c.b16 %v3258, %v3258
        %v3301 = vpack.c.b16 %v3260, %v3259
        %v3302 = vpack.c.b16 %v3261, %v3261
        %v3303 = vpack.c.b16 %v3263, %v3262
        %v3304 = vpack.c.b16 %v3264, %v3264
        %v3305 = vpack.c.b16 %v3266, %v3265
        %v3306 = vpack.c.b16 %v3267, %v3267
        %v3307 = vpack.c.b16 %v3269, %v3268
        %v3308 = vpack.c.b16 %v3270, %v3270
        %v3309 = vpack.c.b16 %v3272, %v3271
        %v3310 = vpack.c.b16 %v3273, %v3273
        %v3311 = vpack.c.b16 %v3275, %v3274
        %v3312 = vpack.c.b16 %v3276, %v3276
        %v3313 = vpack.c.b16 %v3278, %v3277
        %v3314 = vpack.c.b16 %v3279, %v3279
        %v3315 = vpack.c.b16 %v3281, %v3280
        %v3316 = vpack.c.b16 %v3282, %v3282
        %v3317 = vpack.c.b16 %v3284, %v3283
        %v3318 = vpack.c.b16 %v3285, %v3285
        %v3319 = vpack.c.b16 %v3287, %v3286
        %v3320 = vpack.c.b16 %v3288, %v3288
        %v3321 = vrot.slane %v3289, 1
        %v3322 = vrot.slane %v3290, 1
        %v3323 = vsel %vm1521, %v3321, %v3322
        %v3324 = vrot.slane %v3291, 1
        %v3325 = vrot.slane %v3292, 1
        %v3326 = vsel %vm1521, %v3324, %v3325
        %v3327 = vrot.slane %v3293, 1
        %v3328 = vrot.slane %v3294, 1
        %v3329 = vsel %vm1521, %v3327, %v3328
        %v3330 = vrot.slane %v3295, 1
        %v3331 = vrot.slane %v3296, 1
        %v3332 = vsel %vm1521, %v3330, %v3331
        %v3333 = vrot.slane %v3297, 1
        %v3334 = vrot.slane %v3298, 1
        %v3335 = vsel %vm1521, %v3333, %v3334
        %v3336 = vrot.slane %v3299, 1
        %v3337 = vrot.slane %v3300, 1
        %v3338 = vsel %vm1521, %v3336, %v3337
        %v3339 = vrot.slane %v3301, 1
        %v3340 = vrot.slane %v3302, 1
        %v3341 = vsel %vm1521, %v3339, %v3340
        %v3342 = vrot.slane %v3303, 1
        %v3343 = vrot.slane %v3304, 1
        %v3344 = vsel %vm1521, %v3342, %v3343
        %v3345 = vrot.slane %v3305, 1
        %v3346 = vrot.slane %v3306, 1
        %v3347 = vsel %vm1521, %v3345, %v3346
        %v3348 = vrot.slane %v3307, 1
        %v3349 = vrot.slane %v3308, 1
        %v3350 = vsel %vm1521, %v3348, %v3349
        %v3351 = vrot.slane %v3309, 1
        %v3352 = vrot.slane %v3310, 1
        %v3353 = vsel %vm1521, %v3351, %v3352
        %v3354 = vrot.slane %v3311, 1
        %v3355 = vrot.slane %v3312, 1
        %v3356 = vsel %vm1521, %v3354, %v3355
        %v3357 = vrot.slane %v3313, 1
        %v3358 = vrot.slane %v3314, 1
        %v3359 = vsel %vm1521, %v3357, %v3358
        %v3360 = vrot.slane %v3315, 1
        %v3361 = vrot.slane %v3316, 1
        %v3362 = vsel %vm1521, %v3360, %v3361
        %v3363 = vrot.slane %v3317, 1
        %v3364 = vrot.slane %v3318, 1
        %v3365 = vsel %vm1521, %v3363, %v3364
        %v3366 = vrot.slane %v3319, 1
        %v3367 = vrot.slane %v3320, 1
        %v3368 = vsel %vm1521, %v3366, %v3367
        %3369 = vrot.lane.b32.xlu0 %v3323, 24
        %v3370 = vpop.permute.xlu0 %3369
        %3371 = vrot.lane.b32.xlu0 %v3326, 24
        %v3372 = vpop.permute.xlu0 %3371
        %3373 = vrot.lane.b32.xlu0 %v3329, 24
        %v3374 = vpop.permute.xlu0 %3373
        %3375 = vrot.lane.b32.xlu0 %v3332, 24
        %v3376 = vpop.permute.xlu0 %3375
        %3377 = vrot.lane.b32.xlu0 %v3335, 24
        %v3378 = vpop.permute.xlu0 %3377
        %3379 = vrot.lane.b32.xlu0 %v3338, 24
        %v3380 = vpop.permute.xlu0 %3379
        %3381 = vrot.lane.b32.xlu0 %v3341, 24
        %v3382 = vpop.permute.xlu0 %3381
        %3383 = vrot.lane.b32.xlu0 %v3344, 24
        %v3384 = vpop.permute.xlu0 %3383
        %3385 = vrot.lane.b32.xlu0 %v3347, 24
        %v3386 = vpop.permute.xlu0 %3385
        %3387 = vrot.lane.b32.xlu0 %v3350, 24
        %v3388 = vpop.permute.xlu0 %3387
        %3389 = vrot.lane.b32.xlu0 %v3353, 24
        %v3390 = vpop.permute.xlu0 %3389
        %3391 = vrot.lane.b32.xlu0 %v3356, 24
        %v3392 = vpop.permute.xlu0 %3391
        %3393 = vrot.lane.b32.xlu0 %v3359, 24
        %v3394 = vpop.permute.xlu0 %3393
        %3395 = vrot.lane.b32.xlu0 %v3362, 24
        %v3396 = vpop.permute.xlu0 %3395
        %3397 = vrot.lane.b32.xlu0 %v3365, 24
        %v3398 = vpop.permute.xlu0 %3397
        %3399 = vrot.lane.b32.xlu0 %v3368, 24
        %v3400 = vpop.permute.xlu0 %3399
        %vm3417 = vcmask 220352
        %3418 = vst.msk [vmem:[#allocation3] sm:$0xff] %vm3417, %v3370
        %3419 = vst.msk [vmem:[#allocation3 + $0x8] sm:$0xff] %vm3417, %v3372
        %3420 = vst.msk [vmem:[#allocation3 + $0x10] sm:$0xff] %vm3417, %v3374
        %3421 = vst.msk [vmem:[#allocation3 + $0x18] sm:$0xff] %vm3417, %v3376
        %3422 = vst.msk [vmem:[#allocation3 + $0x20] sm:$0xff] %vm3417, %v3378
        %3423 = vst.msk [vmem:[#allocation3 + $0x28] sm:$0xff] %vm3417, %v3380
        %3424 = vst.msk [vmem:[#allocation3 + $0x30] sm:$0xff] %vm3417, %v3382
        %3425 = vst.msk [vmem:[#allocation3 + $0x38] sm:$0xff] %vm3417, %v3384
        %3426 = vst.msk [vmem:[#allocation3 + $0x40] sm:$0xff] %vm3417, %v3386
        %3427 = vst.msk [vmem:[#allocation3 + $0x48] sm:$0xff] %vm3417, %v3388
        %3428 = vst.msk [vmem:[#allocation3 + $0x50] sm:$0xff] %vm3417, %v3390
        %3429 = vst.msk [vmem:[#allocation3 + $0x58] sm:$0xff] %vm3417, %v3392
        %3430 = vst.msk [vmem:[#allocation3 + $0x60] sm:$0xff] %vm3417, %v3394
        %3431 = vst.msk [vmem:[#allocation3 + $0x68] sm:$0xff] %vm3417, %v3396
        %3432 = vst.msk [vmem:[#allocation3 + $0x70] sm:$0xff] %vm3417, %v3398
        %3433 = vst.msk [vmem:[#allocation3 + $0x78] sm:$0xff] %vm3417, %v3400
        %v3434 = vld [vmem:[#allocation3] sm:$0xff]
        %v3435 = vld [vmem:[#allocation3 + $0x8] sm:$0xff]
        %v3436 = vld [vmem:[#allocation3 + $0x10] sm:$0xff]
        %v3437 = vld [vmem:[#allocation3 + $0x18] sm:$0xff]
        %v3438 = vld [vmem:[#allocation3 + $0x20] sm:$0xff]
        %v3439 = vld [vmem:[#allocation3 + $0x28] sm:$0xff]
        %v3440 = vld [vmem:[#allocation3 + $0x30] sm:$0xff]
        %v3441 = vld [vmem:[#allocation3 + $0x38] sm:$0xff]
        %v3442 = vld [vmem:[#allocation3 + $0x40] sm:$0xff]
        %v3443 = vld [vmem:[#allocation3 + $0x48] sm:$0xff]
        %v3444 = vld [vmem:[#allocation3 + $0x50] sm:$0xff]
        %v3445 = vld [vmem:[#allocation3 + $0x58] sm:$0xff]
        %v3446 = vld [vmem:[#allocation3 + $0x60] sm:$0xff]
        %v3447 = vld [vmem:[#allocation3 + $0x68] sm:$0xff]
        %v3448 = vld [vmem:[#allocation3 + $0x70] sm:$0xff]
        %v3449 = vld [vmem:[#allocation3 + $0x78] sm:$0xff]
        %v3451 = vlaneseq
        %v3452 = vshrl.u32 %v3451, 7
        %v3453 = vsub.s32 0, %v3452
        %v3454 = vrot.slane %v765, %v3453
        %v3460 = vunpack.c.l.b16 %v761
        %v3461 = vunpack.c.l.b16 %v762
        %v3462 = vunpack.c.l.b16 %v763
        %v3463 = vunpack.c.l.b16 %v764
        %v3464 = vpack.c.b16 %v3461, %v3460
        %v3465 = vpack.c.b16 %v3463, %v3462
        %vm3467 = vcmask 220160
        %v3469 = vsel %vm3467, %v3434, 0
        %v3472 = vsel %vm3467, %v3435, 0
        %v3475 = vsel %vm3467, %v3436, 0
        %v3478 = vsel %vm3467, %v3437, 0
        %v3481 = vsel %vm3467, %v3438, 0
        %v3484 = vsel %vm3467, %v3439, 0
        %v3487 = vsel %vm3467, %v3440, 0
        %v3490 = vsel %vm3467, %v3441, 0
        %v3493 = vsel %vm3467, %v3442, 0
        %v3496 = vsel %vm3467, %v3443, 0
        %v3499 = vsel %vm3467, %v3444, 0
        %v3502 = vsel %vm3467, %v3445, 0
        %v3505 = vsel %vm3467, %v3446, 0
        %v3508 = vsel %vm3467, %v3447, 0
        %v3511 = vsel %vm3467, %v3448, 0
        %v3514 = vsel %vm3467, %v3449, 0
        %vm3516 = vcmask 1044480
        %vm3517 = vcmask 1045504
        %v3518 = vsel %vm3516, 4294967295, 65535
        %v3519 = vsel %vm3517, %v3518, 0
        %v3521 = vand.u32 %v3465, %v3519
        %3523 = vmatprep.subr.bf16.mxu0 0
        %3524 = vmatpush1.bf16.msra.mxu0 %v3464
        %3525 = vmatprep.subr.bf16.mxu0 0
        %3526 = vmatpush1.bf16.msra.mxu0 %v3521
        %3527 = vmatprep.subr.bf16.mxu0 0
        %3528 = vmatpush1.bf16.msra.mxu0 0
        %3529 = vmatprep.subr.bf16.mxu0 0
        %3530 = vmatpush1.bf16.msra.mxu0 0
        %3531 = vmatprep.subr.bf16.mxu0 0
        %3532 = vmatpush1.bf16.msra.mxu0 0
        %3533 = vmatprep.subr.bf16.mxu0 0
        %3534 = vmatpush1.bf16.msra.mxu0 0
        %3535 = vmatprep.subr.bf16.mxu0 0
        %3536 = vmatpush1.bf16.msra.mxu0 0
        %3537 = vmatprep.subr.bf16.mxu0 0
        %3538 = vmatpush1.bf16.msra.mxu0 0
        %3539 = vmatprep.subr.bf16.mxu0 0
        %3540 = vmatpush1.bf16.msra.mxu0 0
        %3541 = vmatprep.subr.bf16.mxu0 0
        %3542 = vmatpush1.bf16.msra.mxu0 0
        %3543 = vmatprep.subr.bf16.mxu0 0
        %3544 = vmatpush1.bf16.msra.mxu0 0
        %3545 = vmatprep.subr.bf16.mxu0 0
        %3546 = vmatpush1.bf16.msra.mxu0 0
        %3547 = vmatprep.subr.bf16.mxu0 0
        %3548 = vmatpush1.bf16.msra.mxu0 0
        %3549 = vmatprep.subr.bf16.mxu0 0
        %3550 = vmatpush1.bf16.msra.mxu0 0
        %3551 = vmatprep.subr.bf16.mxu0 0
        %3552 = vmatpush1.bf16.msra.mxu0 0
        %3553 = vmatprep.subr.bf16.mxu0 0
        %3554 = vmatpush1.bf16.msra.mxu0 0
        %3555 = vmatprep.mubr.bf16.mxu0 0
        %3556 = vmatmul.mubr.bf16.gmra.mrb[0].mxu0 %v3469
        %v3557 = vpop.f32.mrb[0].mxu0
        %v3558 = vadd.f32 %v3454, %v3557
        %v3559 = vpop.f32.mrb[0].mxu0
        %v3560 = vpop.f32.mrb[0].mxu0
        %v3561 = vadd.f32 %v3454, %v3560
        %v3562 = vpop.f32.mrb[0].mxu0
        %3563 = vmatprep.mubr.bf16.mxu0 0
        %3564 = vmatmul.mubr.bf16.gmra.mrb[0].mxu0 %v3472
        %v3565 = vpop.f32.mrb[0].mxu0
        %v3566 = vadd.f32 %v3454, %v3565
        %v3567 = vpop.f32.mrb[0].mxu0
        %v3568 = vpop.f32.mrb[0].mxu0
        %v3569 = vadd.f32 %v3454, %v3568
        %v3570 = vpop.f32.mrb[0].mxu0
        %3571 = vmatprep.mubr.bf16.mxu0 0
        %3572 = vmatmul.mubr.bf16.gmra.mrb[0].mxu0 %v3475
        %v3573 = vpop.f32.mrb[0].mxu0
        %v3574 = vadd.f32 %v3454, %v3573
        %v3575 = vpop.f32.mrb[0].mxu0
        %v3576 = vpop.f32.mrb[0].mxu0
        %v3577 = vadd.f32 %v3454, %v3576
        %v3578 = vpop.f32.mrb[0].mxu0
        %3579 = vmatprep.mubr.bf16.mxu0 0
        %3580 = vmatmul.mubr.bf16.gmra.mrb[0].mxu0 %v3478
        %v3581 = vpop.f32.mrb[0].mxu0
        %v3582 = vadd.f32 %v3454, %v3581
        %v3583 = vpop.f32.mrb[0].mxu0
        %v3584 = vpop.f32.mrb[0].mxu0
        %v3585 = vadd.f32 %v3454, %v3584
        %v3586 = vpop.f32.mrb[0].mxu0
        %3587 = vmatprep.mubr.bf16.mxu0 0
        %3588 = vmatmul.mubr.bf16.gmra.mrb[0].mxu0 %v3481
        %v3589 = vpop.f32.mrb[0].mxu0
        %v3590 = vadd.f32 %v3454, %v3589
        %v3591 = vpop.f32.mrb[0].mxu0
        %v3592 = vpop.f32.mrb[0].mxu0
        %v3593 = vadd.f32 %v3454, %v3592
        %v3594 = vpop.f32.mrb[0].mxu0
        %3595 = vmatprep.mubr.bf16.mxu0 0
        %3596 = vmatmul.mubr.bf16.gmra.mrb[0].mxu0 %v3484
        %v3597 = vpop.f32.mrb[0].mxu0
        %v3598 = vadd.f32 %v3454, %v3597
        %v3599 = vpop.f32.mrb[0].mxu0
        %v3600 = vpop.f32.mrb[0].mxu0
        %v3601 = vadd.f32 %v3454, %v3600
        %v3602 = vpop.f32.mrb[0].mxu0
        %3603 = vmatprep.mubr.bf16.mxu0 0
        %3604 = vmatmul.mubr.bf16.gmra.mrb[0].mxu0 %v3487
        %v3605 = vpop.f32.mrb[0].mxu0
        %v3606 = vadd.f32 %v3454, %v3605
        %v3607 = vpop.f32.mrb[0].mxu0
        %v3608 = vpop.f32.mrb[0].mxu0
        %v3609 = vadd.f32 %v3454, %v3608
        %v3610 = vpop.f32.mrb[0].mxu0
        %3611 = vmatprep.mubr.bf16.mxu0 0
        %3612 = vmatmul.mubr.bf16.gmra.mrb[0].mxu0 %v3490
        %v3613 = vpop.f32.mrb[0].mxu0
        %v3614 = vadd.f32 %v3454, %v3613
        %v3615 = vpop.f32.mrb[0].mxu0
        %v3616 = vpop.f32.mrb[0].mxu0
        %v3617 = vadd.f32 %v3454, %v3616
        %v3618 = vpop.f32.mrb[0].mxu0
        %3619 = vmatprep.mubr.bf16.mxu0 0
        %3620 = vmatmul.mubr.bf16.gmra.mrb[0].mxu0 %v3493
        %v3621 = vpop.f32.mrb[0].mxu0
        %v3622 = vadd.f32 %v3454, %v3621
        %v3623 = vpop.f32.mrb[0].mxu0
        %v3624 = vpop.f32.mrb[0].mxu0
        %v3625 = vadd.f32 %v3454, %v3624
        %v3626 = vpop.f32.mrb[0].mxu0
        %3627 = vmatprep.mubr.bf16.mxu0 0
        %3628 = vmatmul.mubr.bf16.gmra.mrb[0].mxu0 %v3496
        %v3629 = vpop.f32.mrb[0].mxu0
        %v3630 = vadd.f32 %v3454, %v3629
        %v3631 = vpop.f32.mrb[0].mxu0
        %v3632 = vpop.f32.mrb[0].mxu0
        %v3633 = vadd.f32 %v3454, %v3632
        %v3634 = vpop.f32.mrb[0].mxu0
        %3635 = vmatprep.mubr.bf16.mxu0 0
        %3636 = vmatmul.mubr.bf16.gmra.mrb[0].mxu0 %v3499
        %v3637 = vpop.f32.mrb[0].mxu0
        %v3638 = vadd.f32 %v3454, %v3637
        %v3639 = vpop.f32.mrb[0].mxu0
        %v3640 = vpop.f32.mrb[0].mxu0
        %v3641 = vadd.f32 %v3454, %v3640
        %v3642 = vpop.f32.mrb[0].mxu0
        %3643 = vmatprep.mubr.bf16.mxu0 0
        %3644 = vmatmul.mubr.bf16.gmra.mrb[0].mxu0 %v3502
        %v3645 = vpop.f32.mrb[0].mxu0
        %v3646 = vadd.f32 %v3454, %v3645
        %v3647 = vpop.f32.mrb[0].mxu0
        %v3648 = vpop.f32.mrb[0].mxu0
        %v3649 = vadd.f32 %v3454, %v3648
        %v3650 = vpop.f32.mrb[0].mxu0
        %3651 = vmatprep.mubr.bf16.mxu0 0
        %3652 = vmatmul.mubr.bf16.gmra.mrb[0].mxu0 %v3505
        %v3653 = vpop.f32.mrb[0].mxu0
        %v3654 = vadd.f32 %v3454, %v3653
        %v3655 = vpop.f32.mrb[0].mxu0
        %v3656 = vpop.f32.mrb[0].mxu0
        %v3657 = vadd.f32 %v3454, %v3656
        %v3658 = vpop.f32.mrb[0].mxu0
        %3659 = vmatprep.mubr.bf16.mxu0 0
        %3660 = vmatmul.mubr.bf16.gmra.mrb[0].mxu0 %v3508
        %v3661 = vpop.f32.mrb[0].mxu0
        %v3662 = vadd.f32 %v3454, %v3661
        %v3663 = vpop.f32.mrb[0].mxu0
        %v3664 = vpop.f32.mrb[0].mxu0
        %v3665 = vadd.f32 %v3454, %v3664
        %v3666 = vpop.f32.mrb[0].mxu0
        %3667 = vmatprep.mubr.bf16.mxu0 0
        %3668 = vmatmul.mubr.bf16.gmra.mrb[0].mxu0 %v3511
        %v3669 = vpop.f32.mrb[0].mxu0
        %v3670 = vadd.f32 %v3454, %v3669
        %v3671 = vpop.f32.mrb[0].mxu0
        %v3672 = vpop.f32.mrb[0].mxu0
        %v3673 = vadd.f32 %v3454, %v3672
        %v3674 = vpop.f32.mrb[0].mxu0
        %3675 = vmatprep.mubr.bf16.mxu0 0
        %3676 = vmatmul.mubr.bf16.gmra.mrb[0].mxu0 %v3514
        %v3677 = vpop.f32.mrb[0].mxu0
        %v3678 = vadd.f32 %v3454, %v3677
        %v3679 = vpop.f32.mrb[0].mxu0
        %v3680 = vpop.f32.mrb[0].mxu0
        %v3681 = vadd.f32 %v3454, %v3680
        %v3682 = vpop.f32.mrb[0].mxu0
        %3683 = vdwg.mxu0
        %v3684 = vpack.c.bf16 %v3561, %v3558
        %v3685 = vpack.c.bf16 %v3569, %v3566
        %v3686 = vpack.c.bf16 %v3577, %v3574
        %v3687 = vpack.c.bf16 %v3585, %v3582
        %v3688 = vpack.c.bf16 %v3593, %v3590
        %v3689 = vpack.c.bf16 %v3601, %v3598
        %v3690 = vpack.c.bf16 %v3609, %v3606
        %v3691 = vpack.c.bf16 %v3617, %v3614
        %v3692 = vpack.c.bf16 %v3625, %v3622
        %v3693 = vpack.c.bf16 %v3633, %v3630
        %v3694 = vpack.c.bf16 %v3641, %v3638
        %v3695 = vpack.c.bf16 %v3649, %v3646
        %v3696 = vpack.c.bf16 %v3657, %v3654
        %v3697 = vpack.c.bf16 %v3665, %v3662
        %v3698 = vpack.c.bf16 %v3673, %v3670
        %v3699 = vpack.c.bf16 %v3681, %v3678
        %v3716 = vunpack.c.l.b16 %v3684
        %v3717 = vunpack.c.h.b16 %v3684
        %v3718 = vunpack.c.l.b16 %v3685
        %v3719 = vunpack.c.h.b16 %v3685
        %v3720 = vunpack.c.l.b16 %v3686
        %v3721 = vunpack.c.h.b16 %v3686
        %v3722 = vunpack.c.l.b16 %v3687
        %v3723 = vunpack.c.h.b16 %v3687
        %v3724 = vunpack.c.l.b16 %v3688
        %v3725 = vunpack.c.h.b16 %v3688
        %v3726 = vunpack.c.l.b16 %v3689
        %v3727 = vunpack.c.h.b16 %v3689
        %v3728 = vunpack.c.l.b16 %v3690
        %v3729 = vunpack.c.h.b16 %v3690
        %v3730 = vunpack.c.l.b16 %v3691
        %v3731 = vunpack.c.h.b16 %v3691
        %v3732 = vunpack.c.l.b16 %v3692
        %v3733 = vunpack.c.h.b16 %v3692
        %v3734 = vunpack.c.l.b16 %v3693
        %v3735 = vunpack.c.h.b16 %v3693
        %v3736 = vunpack.c.l.b16 %v3694
        %v3737 = vunpack.c.h.b16 %v3694
        %v3738 = vunpack.c.l.b16 %v3695
        %v3739 = vunpack.c.h.b16 %v3695
        %v3740 = vunpack.c.l.b16 %v3696
        %v3741 = vunpack.c.h.b16 %v3696
        %v3742 = vunpack.c.l.b16 %v3697
        %v3743 = vunpack.c.h.b16 %v3697
        %v3744 = vunpack.c.l.b16 %v3698
        %v3745 = vunpack.c.h.b16 %v3698
        %v3746 = vunpack.c.l.b16 %v3699
        %v3747 = vunpack.c.h.b16 %v3699
        %v3748 = vpack.c.b16 %v3716, %v3716
        %v3749 = vpack.c.b16 %v3717, %v3717
        %v3750 = vpack.c.b16 %v3718, %v3718
        %v3751 = vpack.c.b16 %v3719, %v3719
        %v3752 = vpack.c.b16 %v3720, %v3720
        %v3753 = vpack.c.b16 %v3721, %v3721
        %v3754 = vpack.c.b16 %v3722, %v3722
        %v3755 = vpack.c.b16 %v3723, %v3723
        %v3756 = vpack.c.b16 %v3724, %v3724
        %v3757 = vpack.c.b16 %v3725, %v3725
        %v3758 = vpack.c.b16 %v3726, %v3726
        %v3759 = vpack.c.b16 %v3727, %v3727
        %v3760 = vpack.c.b16 %v3728, %v3728
        %v3761 = vpack.c.b16 %v3729, %v3729
        %v3762 = vpack.c.b16 %v3730, %v3730
        %v3763 = vpack.c.b16 %v3731, %v3731
        %v3764 = vpack.c.b16 %v3732, %v3732
        %v3765 = vpack.c.b16 %v3733, %v3733
        %v3766 = vpack.c.b16 %v3734, %v3734
        %v3767 = vpack.c.b16 %v3735, %v3735
        %v3768 = vpack.c.b16 %v3736, %v3736
        %v3769 = vpack.c.b16 %v3737, %v3737
        %v3770 = vpack.c.b16 %v3738, %v3738
        %v3771 = vpack.c.b16 %v3739, %v3739
        %v3772 = vpack.c.b16 %v3740, %v3740
        %v3773 = vpack.c.b16 %v3741, %v3741
        %v3774 = vpack.c.b16 %v3742, %v3742
        %v3775 = vpack.c.b16 %v3743, %v3743
        %v3776 = vpack.c.b16 %v3744, %v3744
        %v3777 = vpack.c.b16 %v3745, %v3745
        %v3778 = vpack.c.b16 %v3746, %v3746
        %v3779 = vpack.c.b16 %v3747, %v3747
        %3812 = vst [vmem:[%s163] sm:$0xf] %v3748
        %3813 = vst [vmem:[%s163 + $0x4] sm:$0xf] %v3749
        %3814 = vst [vmem:[%s163 + $0x8] sm:$0xf] %v3750
        %3815 = vst [vmem:[%s163 + $0xc] sm:$0xf] %v3751
        %3816 = vst [vmem:[%s163 + $0x10] sm:$0xf] %v3752
        %3817 = vst [vmem:[%s163 + $0x14] sm:$0xf] %v3753
        %3818 = vst [vmem:[%s163 + $0x18] sm:$0xf] %v3754
        %3819 = vst [vmem:[%s163 + $0x1c] sm:$0xf] %v3755
        %3820 = vst [vmem:[%s163 + $0x20] sm:$0xf] %v3756
        %3821 = vst [vmem:[%s163 + $0x24] sm:$0xf] %v3757
        %3822 = vst [vmem:[%s163 + $0x28] sm:$0xf] %v3758
        %3823 = vst [vmem:[%s163 + $0x2c] sm:$0xf] %v3759
        %3824 = vst [vmem:[%s163 + $0x30] sm:$0xf] %v3760
        %3825 = vst [vmem:[%s163 + $0x34] sm:$0xf] %v3761
        %3826 = vst [vmem:[%s163 + $0x38] sm:$0xf] %v3762
        %3827 = vst [vmem:[%s163 + $0x3c] sm:$0xf] %v3763
        %3828 = vst [vmem:[%s163 + $0x40] sm:$0xf] %v3764
        %3829 = vst [vmem:[%s163 + $0x44] sm:$0xf] %v3765
        %3830 = vst [vmem:[%s163 + $0x48] sm:$0xf] %v3766
        %3831 = vst [vmem:[%s163 + $0x4c] sm:$0xf] %v3767
        %3832 = vst [vmem:[%s163 + $0x50] sm:$0xf] %v3768
        %3833 = vst [vmem:[%s163 + $0x54] sm:$0xf] %v3769
        %3834 = vst [vmem:[%s163 + $0x58] sm:$0xf] %v3770
        %3835 = vst [vmem:[%s163 + $0x5c] sm:$0xf] %v3771
        %3836 = vst [vmem:[%s163 + $0x60] sm:$0xf] %v3772
        %3837 = vst [vmem:[%s163 + $0x64] sm:$0xf] %v3773
        %3838 = vst [vmem:[%s163 + $0x68] sm:$0xf] %v3774
        %3839 = vst [vmem:[%s163 + $0x6c] sm:$0xf] %v3775
        %3840 = vst [vmem:[%s163 + $0x70] sm:$0xf] %v3776
        %3841 = vst [vmem:[%s163 + $0x74] sm:$0xf] %v3777
        %3842 = vst [vmem:[%s163 + $0x78] sm:$0xf] %v3778
        %3843 = vst [vmem:[%s163 + $0x7c] sm:$0xf] %v3779
        %s3844 = sand.u32 %s93, 1
        %s3845 = scalar_lea.sflag [#allocation5], %s3844
        %s3846 = sand.u32 %s93, 1
        %s3847 = smul.addr %s3846, 128
        %s3848 = scalar_lea.vmem [#allocation4], %s3847
        // Predicated region
        $region33: #{tpu_custom_call.1} parent=31 // pred_check
          %p3849 = pneg %p103
        $region34: #{tpu_custom_call.1} parent=31 // pred_check_branch
          %3851 = sbr.rel (%p3849) target = $region36
        $region35: #{tpu_custom_call.1} parent=31 // pred_region
          %s3853 = ssub.s32 2048, 2048
          %3854 = vsyncadd %s3845, %s3853
          %s3855 = smul.addr %s17, 32
          %s3856 = smul.addr %s3855, 64
          %s3857 = scalar_lea.hbm %s3, %s3856
          %s3858 = sshll.u32 %s3848, 4
          %s3859 = int_to_ptr.vmem [resolvable:$true] %s3858
          %3864 = dma.vmem_to_hbm [thread:$0]  %s3859, 2048, %s3857, %s3845, 64, 64, 4
        $region36: #{tpu_custom_call.1} parent=31 // pred_fallthru
          _
      $region32: #{tpu_custom_call.1} parent=5 // pred_fallthru
        _
      %p3865 = scmp.le.s32.totalorder 2, %s12
      // Predicated region
      $region37: #{tpu_custom_call.1} parent=5 // pred_check
        %p3866 = pneg %p3865
      $region38: #{tpu_custom_call.1} parent=5 // pred_check_branch
        %3868 = sbr.rel (%p3866) target = $region40
      $region39: #{tpu_custom_call.1} parent=5 // pred_region
        %s3869 = ssub.s32 %s12, 2
        // Predicated region
        $region41: #{tpu_custom_call.1} parent=39 // pred_check
          %p3870 = pneg %p109
        $region42: #{tpu_custom_call.1} parent=39 // pred_check_branch
          %3872 = sbr.rel (%p3870) target = $region44
        $region43: #{tpu_custom_call.1} parent=39 // pred_region
          %s3873 = sand.u32 %s94, 1
          %s3874 = scalar_lea.sflag [#allocation5], %s3873
          %s3875 = sand.u32 %s94, 1
          %s3876 = smul.addr %s3875, 128
          %s3877 = scalar_lea.vmem [#allocation4], %s3876
          %3878 = dma.done %s3874, 2048
        $region44: #{tpu_custom_call.1} parent=39 // pred_fallthru
          _
      $region40: #{tpu_custom_call.1} parent=5 // pred_fallthru
        _
    $region6: #{tpu_custom_call.1} parent=1 // loop_footer
      %s16 = sadd.s32 1, %s12
    $region7: #{tpu_custom_call.1} parent=1 // loop_footer_branch
      %11 = sbr.rel target = $region3
    $region8: #{tpu_custom_call.1} parent=1 // loop_exit
      _
    %3879 = vsyncpa [#allocation5], 1
    %s3880 = scalar_lea.sflag [#allocation5], 1
    %3881 = vsyncpa %s3880, 1

</llo_original>
